<compile_context>
chip_gen: v7x
topology: tpu7x:2x2x1
jax: 0.10.0
libtpu: 0.0.40
codegen_flags: <defaults>
</compile_context>

<pallas_src>
import functools

import jax
import jax.numpy as jnp
from jax.experimental import pallas as pl
from jax.experimental.pallas import tpu as pltpu

CONV_K = 16          # ConvTranspose1d kernel_size == stride
D_STATE = 64         # S4 d_state
FF_EXPAND = 2        # FFBlock expansion
LN_EPS = 1e-5


# ----------------------------------------------------------------------------
# helpers
# ----------------------------------------------------------------------------
def _pick_tile(n, candidates=(512, 256, 128)):
    """Largest candidate tile (multiple of 128) dividing n, else full n."""
    for t in candidates:
        if n >= t and n % t == 0:
            return t
    return n


def _pick_dc(d, ts, budget_bytes=4 * 1024 * 1024):
    """Channel chunk for the Toeplitz matmul.

    Keeps the (double-buffered) bf16 T block <= budget (sized for v7x's 64 MiB
    VMEM) and keeps >= 2 channel chunks so both v7x TensorCores get parallel
    grid work even when S // ts == 1.
    """
    cap = max(d // 2, 1)
    for dc in (32, 16, 8, 4, 2, 1):
        if dc <= cap and d % dc == 0 and dc * ts * ts * 2 <= budget_bytes:
            return dc
    return 1


# ----------------------------------------------------------------------------
# Pallas kernels
# ----------------------------------------------------------------------------
def deconv_ln_kernel(xu_ref, we_ref, cb_ref, g_ref, b_ref, h_ref, z_ref):
    # Fused ConvTranspose1d (stride == kernel) + first pair's prenorm LN.
    #   xu: (B, ts) f32   input repeated at the conv stride (x[b, s // K])
    #   we: (D, ts) f32   tiled ConvTranspose1d weight   (W[d, s % K])
    #   cb, g, b: (D, 1)  conv bias / LN gamma / LN beta
    #   h : (B, D, ts) f32 residual stream,   z: (B, D, ts) bf16 = LN(h)
    h = (xu_ref[...][:, None, :] * we_ref[...][None, :, :]
         + cb_ref[...][None, :, :])
    mu = jnp.mean(h, axis=1, keepdims=True)
    var = jnp.mean(jnp.square(h - mu), axis=1, keepdims=True)
    z = (h - mu) * jax.lax.rsqrt(var + LN_EPS) * g_ref[...][None] \
        + b_ref[...][None]
    h_ref[...] = h
    z_ref[...] = z.astype(z_ref.dtype)


def dwconv_kernel(t_ref, u_ref, o_ref, acc_ref):
    # Per-channel causal conv as blocked Toeplitz matmul, S on lanes.
    #   t  : (dc, tsk, tsq) bf16  transposed-Toeplitz block (rows=in, cols=out)
    #   u  : (B, dc, tsk)  bf16   o: (B, dc, tsq) bf16   acc: (dc, B, tsq) f32
    q = pl.program_id(1)
    k = pl.program_id(2)

    @pl.when(k == 0)
    def _init():
        acc_ref[...] = jnp.zeros_like(acc_ref)

    # Causal block skip (tsk == tsq): strictly-future blocks are zero.  The
    # index_maps clamp k -> min(k, q) for those steps, so no DMA is issued
    # either; this guard only skips the (useless) compute.
    @pl.when(k <= q)
    def _acc():
        acc_ref[...] += jax.lax.dot_general(
            u_ref[...], t_ref[...],
            dimension_numbers=(((2,), (1,)), ((1,), (0,))),
            preferred_element_type=jnp.float32)            # -> (dc, B, tsq)

    @pl.when(k == pl.num_programs(2) - 1)
    def _store():
        acc = acc_ref[...]
        for c in range(acc.shape[0]):                      # static dc loop
            o_ref[:, c, :] = acc[c].astype(o_ref.dtype)


def _s4_ff_core(y, z, x, dsk, wo, bo, lg, lb, w1, b1, w2, b2):
    # Channel-first (D, ts) tiles; matmuls are W(out, in) @ act(in, ts).
    u = y + z * dsk
    # TODO(synk): PyTorch nn.GELU default is exact erf-GELU; tanh approx used.
    u = jax.nn.gelu(u, approximate=True)
    v = jnp.dot(wo, u.astype(jnp.bfloat16),
                preferred_element_type=jnp.float32) + bo
    h = x + v                                              # S4 residual out
    # FF residual block (prenorm LN over D = sublane axis)
    mu = jnp.mean(h, axis=0, keepdims=True)
    var = jnp.mean(jnp.square(h - mu), axis=0, keepdims=True)
    n = (h - mu) * jax.lax.rsqrt(var + LN_EPS) * lg + lb
    f = jnp.dot(w1, n.astype(jnp.bfloat16),
                preferred_element_type=jnp.float32) + b1
    f = jax.nn.gelu(f, approximate=True)
    f = jnp.dot(w2, f.astype(jnp.bfloat16),
                preferred_element_type=jnp.float32) + b2
    return h + f


def s4post_ff_ln_kernel(y_ref, z_ref, x_ref, dsk_ref, wo_ref, bo_ref,
                        lg_ref, lb_ref, w1_ref, b1_ref, w2_ref, b2_ref,
                        ng_ref, nb_ref, h_ref, zo_ref):
    # Fused: S4 post (D-skip + GELU + Wo + residual) + FF block + *next* pair's
    # prenorm LN.  All activations channel-first (B, D, ts).
    dsk = dsk_ref[...]
    wo = wo_ref[...]
    bo = bo_ref[...]
    lg = lg_ref[...]
    lb = lb_ref[...]
    w1 = w1_ref[...]
    b1 = b1_ref[...]
    w2 = w2_ref[...]
    b2 = b2_ref[...]
    ng = ng_ref[...]
    nbeta = nb_ref[...]

    @pl.loop(0, x_ref.shape[0])            # bounded live ranges across batch
    def _(b):
        h2 = _s4_ff_core(y_ref[b].astype(jnp.float32),
                         z_ref[b].astype(jnp.float32),
                         x_ref[b], dsk, wo, bo, lg, lb, w1, b1, w2, b2)
        h_ref[b] = h2
        mu = jnp.mean(h2, axis=0, keepdims=True)
        var = jnp.mean(jnp.square(h2 - mu), axis=0, keepdims=True)
        zn = (h2 - mu) * jax.lax.rsqrt(var + LN_EPS) * ng + nbeta
        zo_ref[b] = zn.astype(zo_ref.dtype)


def s4post_ff_out_kernel(y_ref, z_ref, x_ref, dsk_ref, wo_ref, bo_ref,
                         lg_ref, lb_ref, w1_ref, b1_ref, w2_ref, b2_ref,
                         ow_ref, ob_ref, o_ref):
    # Last pair: S4 post + FF block + fused out_proj -> lane-dense (B, ts).
    dsk = dsk_ref[...]
    wo = wo_ref[...]
    bo = bo_ref[...]
    lg = lg_ref[...]
    lb = lb_ref[...]
    w1 = w1_ref[...]
    b1 = b1_ref[...]
    w2 = w2_ref[...]
    b2 = b2_ref[...]
    ow = ow_ref[...]
    ob = ob_ref[...]
    rows = []
    for b in range(x_ref.shape[0]):        # static loop -> static row writes
        h2 = _s4_ff_core(y_ref[b].astype(jnp.float32),
                         z_ref[b].astype(jnp.float32),
                         x_ref[b], dsk, wo, bo, lg, lb, w1, b1, w2, b2)
        rows.append(jnp.sum(h2 * ow, axis=0, keepdims=True) + ob)
    o_ref[...] = jnp.concatenate(rows, axis=0)


# ----------------------------------------------------------------------------
# pallas_call wrappers
# ----------------------------------------------------------------------------
def deconv_ln_apply(x, w_dk, conv_b, ln_g, ln_b):
    # x: (B, L) -> h, z : (B, D, S) channel-first, S = L * K.
    B, L = x.shape
    D = w_dk.shape[0]
    S = L * CONV_K
    x_up = jnp.repeat(x, CONV_K, axis=1)          # (B, S): x[b, s // K]
    w_exp = jnp.tile(w_dk, (1, L))                # (D, S): W[d, s % K]
    ts = _pick_tile(S)
    return pl.pallas_call(
        deconv_ln_kernel,
        out_shape=(jax.ShapeDtypeStruct((B, D, S), jnp.float32),
                   jax.ShapeDtypeStruct((B, D, S), jnp.bfloat16)),
        grid=(S // ts,),
        in_specs=[pl.BlockSpec((B, ts), lambda s: (0, s)),
                  pl.BlockSpec((D, ts), lambda s: (0, s)),
                  pl.BlockSpec((D, 1), lambda s: (0, 0)),
                  pl.BlockSpec((D, 1), lambda s: (0, 0)),
                  pl.BlockSpec((D, 1), lambda s: (0, 0))],
        out_specs=(pl.BlockSpec((B, D, ts), lambda s: (0, 0, s)),
                   pl.BlockSpec((B, D, ts), lambda s: (0, 0, s))),
        compiler_params=pltpu.CompilerParams(dimension_semantics=("parallel",)),
    )(x_up, w_exp, conv_b, ln_g, ln_b)


def dwconv_apply(tmat_t, z):
    # tmat_t: (D, S, S) bf16 transposed Toeplitz, z: (B, D, S) bf16 -> y bf16
    D, S, _ = tmat_t.shape
    B = z.shape[0]
    ts = _pick_tile(S)
    dc = _pick_dc(D, ts)
    return pl.pallas_call(
        dwconv_kernel,
        out_shape=jax.ShapeDtypeStruct((B, D, S), jnp.bfloat16),
        grid=(D // dc, S // ts, S // ts),
        in_specs=[
            # Clamp k -> min(k, q): strictly-future (all-zero) Toeplitz blocks
            # re-reference the already-resident diagonal block => no DMA.
            pl.BlockSpec((dc, ts, ts),
                         lambda d, q, k: (d, jnp.minimum(k, q), q)),
            pl.BlockSpec((B, dc, ts),
                         lambda d, q, k: (0, d, jnp.minimum(k, q))),
        ],
        out_specs=pl.BlockSpec((B, dc, ts), lambda d, q, k: (0, d, q)),
        scratch_shapes=[pltpu.VMEM((dc, B, ts), jnp.float32)],
        compiler_params=pltpu.CompilerParams(
            dimension_semantics=("parallel", "parallel", "arbitrary"),
            vmem_limit_bytes=32 * 1024 * 1024),          # sized for v7x 64 MiB
    )(tmat_t, z)


def _pair_weight_specs(D, H):
    return [pl.BlockSpec((D, 1), lambda s: (0, 0)),   # dskip
            pl.BlockSpec((D, D), lambda s: (0, 0)),   # wo (out, in) bf16
            pl.BlockSpec((D, 1), lambda s: (0, 0)),   # bo
            pl.BlockSpec((D, 1), lambda s: (0, 0)),   # ff ln gamma
            pl.BlockSpec((D, 1), lambda s: (0, 0)),   # ff ln beta
            pl.BlockSpec((H, D), lambda s: (0, 0)),   # w1 bf16
            pl.BlockSpec((H, 1), lambda s: (0, 0)),   # b1
            pl.BlockSpec((D, H), lambda s: (0, 0)),   # w2 bf16
            pl.BlockSpec((D, 1), lambda s: (0, 0))]   # b2


def s4post_ff_ln_apply(y, z, x, p, next_ln_g, next_ln_b):
    B, D, S = x.shape
    H = p["w1"].shape[0]
    ts = _pick_tile(S, (256, 128))        # bound vreg pressure in VPU kernel
    act_spec = pl.BlockSpec((B, D, ts), lambda s: (0, 0, s))
    return pl.pallas_call(
        s4post_ff_ln_kernel,
        out_shape=(jax.ShapeDtypeStruct((B, D, S), jnp.float32),
                   jax.ShapeDtypeStruct((B, D, S), jnp.bfloat16)),
        grid=(S // ts,),
        in_specs=[act_spec, act_spec, act_spec] + _pair_weight_specs(D, H)
                 + [pl.BlockSpec((D, 1), lambda s: (0, 0)),
                    pl.BlockSpec((D, 1), lambda s: (0, 0))],
        out_specs=(act_spec, act_spec),
        compiler_params=pltpu.CompilerParams(dimension_semantics=("parallel",)),
    )(y, z, x, p["dskip"], p["wo"], p["bo"], p["ff_ln_g"], p["ff_ln_b"],
      p["w1"], p["b1"], p["w2"], p["b2"], next_ln_g, next_ln_b)


def s4post_ff_out_apply(y, z, x, p, out_w, out_b):
    B, D, S = x.shape
    H = p["w1"].shape[0]
    ts = _pick_tile(S, (256, 128))
    act_spec = pl.BlockSpec((B, D, ts), lambda s: (0, 0, s))
    out = pl.pallas_call(
        s4post_ff_out_kernel,
        out_shape=jax.ShapeDtypeStruct((B, S), jnp.float32),
        grid=(S // ts,),
        in_specs=[act_spec, act_spec, act_spec] + _pair_weight_specs(D, H)
                 + [pl.BlockSpec((D, 1), lambda s: (0, 0)),
                    pl.BlockSpec((1, 1), lambda s: (0, 0))],
        out_specs=pl.BlockSpec((B, ts), lambda s: (0, s)),
        compiler_params=pltpu.CompilerParams(dimension_semantics=("parallel",)),
    )(y, z, x, p["dskip"], p["wo"], p["bo"], p["ff_ln_g"], p["ff_ln_b"],
      p["w1"], p["b1"], p["w2"], p["b2"], out_w, out_b)
    return out[..., None]


# ----------------------------------------------------------------------------
# Forward composition
# ----------------------------------------------------------------------------
def s4decoder_forward(x, params, *, bidirectional=False, add_mean=False):
    pairs = params["pairs"]

    def _fwd(xin):
        if add_mean:
            xin = xin.at[:, 1:].add(xin[:, 0:1])          # x[:, 1:] += x[:, 0:1]
        h, z = deconv_ln_apply(xin, params["conv_w"], params["conv_b"],
                               pairs[0]["ln_g"], pairs[0]["ln_b"])
        n = len(pairs)
        out = None
        for i, bp in enumerate(pairs):
            y = dwconv_apply(bp["tmatT"], z)              # (B, D, S) bf16
            if i + 1 < n:
                h, z = s4post_ff_ln_apply(
                    y, z, h, bp, pairs[i + 1]["ln_g"], pairs[i + 1]["ln_b"])
            else:
                out = s4post_ff_out_apply(
                    y, z, h, bp, params["out_w"], params["out_b"])
        return out                                        # (B, S, 1)

    if bidirectional:
        # Batch the reversed copy (one pass).  NOTE: matches the PyTorch
        # reference, which does NOT flip the reversed branch's output back
        # before adding.
        b0 = x.shape[0]
        xx = jnp.concatenate([x, jnp.flip(x, axis=1)], axis=0)
        yb = _fwd(xx)
        return yb[:b0] + yb[b0:]
    return _fwd(x)


# ----------------------------------------------------------------------------
# Deterministic parameter init (synthetic)
# ----------------------------------------------------------------------------
def _s4d_ssm_toeplitz_t(key, d_model, d_state, seq_len):
    # S4D-Lin style diagonal-SSM conv kernel K (d_model, seq_len) materialized
    # as per-channel *transposed* Toeplitz matrices T^T[d, t_in, t_out].
    k1, k2 = jax.random.split(key)
    n = d_state // 2
    log_dt = jnp.linspace(jnp.log(0.001), jnp.log(0.1), d_model)
    dt = jnp.exp(log_dt)[:, None]                               # (H, 1)
    A = -0.5 + 1j * jnp.pi * jnp.arange(n)                      # (n,)
    C = (jax.random.normal(k1, (d_model, n)) +
         1j * jax.random.normal(k2, (d_model, n))) * (0.5 ** 0.5)
    dtA = dt * A[None, :]                                       # (H, n)
    Cb = C * (jnp.exp(dtA) - 1.0) / A[None, :]
    V = jnp.exp(dtA[:, :, None] * jnp.arange(seq_len)[None, None, :])
    K = 2.0 * jnp.real(jnp.einsum("hn,hnl->hl", Cb, V)).astype(jnp.float32)

    idx = jnp.arange(seq_len)
    lag = idx[None, :] - idx[:, None]                           # [t_in, t_out]
    gathered = K[:, jnp.clip(lag, 0, seq_len - 1)]              # (H, S, S)
    tmat_t = jnp.where((lag >= 0)[None, :, :], gathered, 0.0)
    return tmat_t.astype(jnp.bfloat16)                          # bf16 MXU operand


def init_params(key, d_model, n_blocks, seq_len):
    keys = iter(jax.random.split(key, 8 + 8 * n_blocks))

    def u(shape, scale):
        return jax.random.uniform(next(keys), shape, jnp.float32, -scale, scale)

    D = d_model
    H = FF_EXPAND * D
    s_conv = 1.0 / jnp.sqrt(float(CONV_K))
    params = {
        # ConvTranspose1d weight (1, D, K) stored as (D, K); bias (D, 1)
        "conv_w": u((D, CONV_K), s_conv),
        "conv_b": u((D, 1), s_conv),
        # out_proj: Linear(D, 1) weight stored channel-first (D, 1)
        "out_w": u((D, 1), 1.0 / jnp.sqrt(float(D))),
        "out_b": u((1, 1), 1.0 / jnp.sqrt(float(D))),
        "pairs": [],
    }
    for _ in range(n_blocks):
        pair = {
            # S4 residual block
            "ln_g": jnp.ones((D, 1), jnp.float32),
            "ln_b": jnp.zeros((D, 1), jnp.float32),
            "tmatT": _s4d_ssm_toeplitz_t(next(keys), D, D_STATE, seq_len),
            "dskip": jax.random.normal(next(keys), (D, 1), jnp.float32),
            "wo": u((D, D), 1.0 / jnp.sqrt(float(D))).astype(jnp.bfloat16),
            "bo": u((D, 1), 1.0 / jnp.sqrt(float(D))),
            # FF residual block (weights stored (out, in) like nn.Linear)
            "ff_ln_g": jnp.ones((D, 1), jnp.float32),
            "ff_ln_b": jnp.zeros((D, 1), jnp.float32),
            "w1": u((H, D), 1.0 / jnp.sqrt(float(D))).astype(jnp.bfloat16),
            "b1": u((H, 1), 1.0 / jnp.sqrt(float(D))),
            "w2": u((D, H), 1.0 / jnp.sqrt(float(H))).astype(jnp.bfloat16),
            "b2": u((D, 1), 1.0 / jnp.sqrt(float(H))),
        }
        params["pairs"].append(pair)
    return params


# ----------------------------------------------------------------------------
if __name__ == "__main__":
    d_model = 16
    n_blocks = 2
    B, L = 2, 8                    # input (B, L); output seq len S = 16*L = 128
    S = CONV_K * L

    key = jax.random.PRNGKey(0)
    kx, kp = jax.random.split(key)
    x = jax.random.normal(kx, (B, L), jnp.float32)
    params = init_params(kp, d_model, n_blocks, S)

    fwd = jax.jit(functools.partial(s4decoder_forward,
                                    bidirectional=False, add_mean=False))
    y = jax.block_until_ready(fwd(x, params))

    assert y.shape == (B, S, 1), y.shape
    assert bool(jnp.all(jnp.isfinite(y))), "non-finite output"
    print("KERNEL_OK")
</pallas_src>

<mosaic_0001>
module attributes {stable_mosaic.version = 11 : i64} {
  func.func @deconv_ln_kernel(%arg0: i32, %arg1: memref<2x128xf32, #tpu.memory_space<vmem>>, %arg2: memref<16x128xf32, #tpu.memory_space<vmem>>, %arg3: memref<16x1xf32, #tpu.memory_space<vmem>>, %arg4: memref<16x1xf32, #tpu.memory_space<vmem>>, %arg5: memref<16x1xf32, #tpu.memory_space<vmem>>, %arg6: memref<2x16x128xf32, #tpu.memory_space<vmem>>, %arg7: memref<2x16x128xbf16, #tpu.memory_space<vmem>>) attributes {dimension_semantics = [#tpu.dimension_semantics<parallel>], iteration_bounds = array<i64: 1>, scalar_prefetch = 0 : i64, scratch_operands = 0 : i64, tpu.core_type = #tpu.core_type<tc>, window_params = [{transform_indices = @transform_0, window_bounds = array<i64: 2, 128>}, {transform_indices = @transform_1, window_bounds = array<i64: 16, 128>}, {pipeline_mode = #tpu.pipeline_mode<synchronous>, transform_indices = @transform_2, window_bounds = array<i64: 16, 1>}, {pipeline_mode = #tpu.pipeline_mode<synchronous>, transform_indices = @transform_3, window_bounds = array<i64: 16, 1>}, {pipeline_mode = #tpu.pipeline_mode<synchronous>, transform_indices = @transform_4, window_bounds = array<i64: 16, 1>}, {transform_indices = @transform_5, window_bounds = array<i64: 2, 16, 128>}, {transform_indices = @transform_6, window_bounds = array<i64: 2, 16, 128>}]} {
    %c0 = arith.constant 0 : index
    %c0_0 = arith.constant 0 : index
    %0 = vector.load %arg1[%c0, %c0_0] : memref<2x128xf32, #tpu.memory_space<vmem>>, vector<2x128xf32>
    %1 = vector.shape_cast %0 : vector<2x128xf32> to vector<2x1x128xf32>
    %c0_1 = arith.constant 0 : index
    %c0_2 = arith.constant 0 : index
    %2 = vector.load %arg2[%c0_1, %c0_2] : memref<16x128xf32, #tpu.memory_space<vmem>>, vector<16x128xf32>
    %3 = vector.shape_cast %2 : vector<16x128xf32> to vector<1x16x128xf32>
    %4 = vector.broadcast %1 : vector<2x1x128xf32> to vector<2x16x128xf32>
    %5 = vector.broadcast %3 : vector<1x16x128xf32> to vector<2x16x128xf32>
    %6 = arith.mulf %4, %5 : vector<2x16x128xf32>
    %c0_3 = arith.constant 0 : index
    %c0_4 = arith.constant 0 : index
    %7 = vector.load %arg3[%c0_3, %c0_4] : memref<16x1xf32, #tpu.memory_space<vmem>>, vector<16x1xf32>
    %8 = vector.shape_cast %7 : vector<16x1xf32> to vector<1x16x1xf32>
    %9 = vector.broadcast %8 : vector<1x16x1xf32> to vector<2x16x128xf32>
    %10 = arith.addf %6, %9 : vector<2x16x128xf32>
    %cst = arith.constant dense<0.000000e+00> : vector<2x128xf32>
    %11 = vector.multi_reduction <add>, %10, %cst [1] : vector<2x16x128xf32> to vector<2x128xf32>
    %12 = vector.shape_cast %11 : vector<2x128xf32> to vector<2x1x128xf32>
    %cst_5 = arith.constant 1.600000e+01 : f32
    %13 = vector.broadcast %cst_5 : f32 to vector<2x1x128xf32>
    %14 = arith.divf %12, %13 : vector<2x1x128xf32>
    %15 = vector.broadcast %14 : vector<2x1x128xf32> to vector<2x16x128xf32>
    %16 = arith.subf %10, %15 : vector<2x16x128xf32>
    %17 = arith.mulf %16, %16 : vector<2x16x128xf32>
    %cst_6 = arith.constant dense<0.000000e+00> : vector<2x128xf32>
    %18 = vector.multi_reduction <add>, %17, %cst_6 [1] : vector<2x16x128xf32> to vector<2x128xf32>
    %19 = vector.shape_cast %18 : vector<2x128xf32> to vector<2x1x128xf32>
    %cst_7 = arith.constant 1.600000e+01 : f32
    %20 = vector.broadcast %cst_7 : f32 to vector<2x1x128xf32>
    %21 = arith.divf %19, %20 : vector<2x1x128xf32>
    %22 = vector.broadcast %14 : vector<2x1x128xf32> to vector<2x16x128xf32>
    %23 = arith.subf %10, %22 : vector<2x16x128xf32>
    %cst_8 = arith.constant 9.99999974E-6 : f32
    %24 = vector.broadcast %cst_8 : f32 to vector<2x1x128xf32>
    %25 = arith.addf %21, %24 : vector<2x1x128xf32>
    %26 = math.rsqrt %25 : vector<2x1x128xf32>
    %27 = vector.broadcast %26 : vector<2x1x128xf32> to vector<2x16x128xf32>
    %28 = arith.mulf %23, %27 : vector<2x16x128xf32>
    %c0_9 = arith.constant 0 : index
    %c0_10 = arith.constant 0 : index
    %29 = vector.load %arg4[%c0_9, %c0_10] : memref<16x1xf32, #tpu.memory_space<vmem>>, vector<16x1xf32>
    %30 = vector.shape_cast %29 : vector<16x1xf32> to vector<1x16x1xf32>
    %31 = vector.broadcast %30 : vector<1x16x1xf32> to vector<2x16x128xf32>
    %32 = arith.mulf %28, %31 : vector<2x16x128xf32>
    %c0_11 = arith.constant 0 : index
    %c0_12 = arith.constant 0 : index
    %33 = vector.load %arg5[%c0_11, %c0_12] : memref<16x1xf32, #tpu.memory_space<vmem>>, vector<16x1xf32>
    %34 = vector.shape_cast %33 : vector<16x1xf32> to vector<1x16x1xf32>
    %35 = vector.broadcast %34 : vector<1x16x1xf32> to vector<2x16x128xf32>
    %36 = arith.addf %32, %35 : vector<2x16x128xf32>
    %c0_13 = arith.constant 0 : index
    %c0_14 = arith.constant 0 : index
    %c0_15 = arith.constant 0 : index
    %37 = vector.load %arg6[%c0_13, %c0_14, %c0_15] : memref<2x16x128xf32, #tpu.memory_space<vmem>>, vector<2x16x128xf32>
    tpu.vector_store %arg6[%c0_13, %c0_14, %c0_15], %10 {strides = array<i32>} : memref<2x16x128xf32, #tpu.memory_space<vmem>>, vector<2x16x128xf32>,
    %38 = arith.truncf %36 : vector<2x16x128xf32> to vector<2x16x128xbf16>
    %c0_16 = arith.constant 0 : index
    %c0_17 = arith.constant 0 : index
    %c0_18 = arith.constant 0 : index
    %39 = vector.load %arg7[%c0_16, %c0_17, %c0_18] : memref<2x16x128xbf16, #tpu.memory_space<vmem>>, vector<2x16x128xbf16>
    tpu.vector_store %arg7[%c0_16, %c0_17, %c0_18], %38 {strides = array<i32>} : memref<2x16x128xbf16, #tpu.memory_space<vmem>>, vector<2x16x128xbf16>,
    return
  }
  func.func @transform_0(%arg0: i32) -> (i32, i32) {
    %c0_i32 = arith.constant 0 : i32
    %c0_i32_0 = arith.constant 0 : i32
    return %c0_i32, %arg0 : i32, i32
  }
  func.func @transform_1(%arg0: i32) -> (i32, i32) {
    %c0_i32 = arith.constant 0 : i32
    %c0_i32_0 = arith.constant 0 : i32
    return %c0_i32, %arg0 : i32, i32
  }
  func.func @transform_2(%arg0: i32) -> (i32, i32) {
    %c0_i32 = arith.constant 0 : i32
    %c0_i32_0 = arith.constant 0 : i32
    %c0_i32_1 = arith.constant 0 : i32
    return %c0_i32, %c0_i32_0 : i32, i32
  }
  func.func @transform_3(%arg0: i32) -> (i32, i32) {
    %c0_i32 = arith.constant 0 : i32
    %c0_i32_0 = arith.constant 0 : i32
    %c0_i32_1 = arith.constant 0 : i32
    return %c0_i32, %c0_i32_0 : i32, i32
  }
  func.func @transform_4(%arg0: i32) -> (i32, i32) {
    %c0_i32 = arith.constant 0 : i32
    %c0_i32_0 = arith.constant 0 : i32
    %c0_i32_1 = arith.constant 0 : i32
    return %c0_i32, %c0_i32_0 : i32, i32
  }
  func.func @transform_5(%arg0: i32) -> (i32, i32, i32) {
    %c0_i32 = arith.constant 0 : i32
    %c0_i32_0 = arith.constant 0 : i32
    %c0_i32_1 = arith.constant 0 : i32
    return %c0_i32, %c0_i32_0, %arg0 : i32, i32, i32
  }
  func.func @transform_6(%arg0: i32) -> (i32, i32, i32) {
    %c0_i32 = arith.constant 0 : i32
    %c0_i32_0 = arith.constant 0 : i32
    %c0_i32_1 = arith.constant 0 : i32
    return %c0_i32, %c0_i32_0, %arg0 : i32, i32, i32
  }
}

module attributes {stable_mosaic.version = 11 : i64} {
  func.func @dwconv_kernel(%arg0: i32, %arg1: i32, %arg2: i32, %arg3: memref<8x128x128xbf16, #tpu.memory_space<vmem>>, %arg4: memref<2x8x128xbf16, #tpu.memory_space<vmem>>, %arg5: memref<2x8x128xbf16, #tpu.memory_space<vmem>>, %arg6: memref<8x2x128xf32, #tpu.memory_space<vmem>>) attributes {dimension_semantics = [#tpu.dimension_semantics<parallel>, #tpu.dimension_semantics<parallel>, #tpu.dimension_semantics<arbitrary>], iteration_bounds = array<i64: 2, 1, 1>, scalar_prefetch = 0 : i64, scratch_operands = 1 : i64, tpu.core_type = #tpu.core_type<tc>, window_params = [{transform_indices = @transform_0, window_bounds = array<i64: 8, 128, 128>}, {transform_indices = @transform_1, window_bounds = array<i64: 2, 8, 128>}, {transform_indices = @transform_2, window_bounds = array<i64: 2, 8, 128>}]} {
    %c0_i32 = arith.constant 0 : i32
    %0 = arith.cmpi eq, %arg2, %c0_i32 : i32
    %1 = arith.extui %0 : i1 to i32
    %c0_i32_0 = arith.constant 0 : i32
    %2 = arith.cmpi ne, %1, %c0_i32_0 : i32
    scf.if %2 {
      %cst = arith.constant 0.000000e+00 : f32
      %9 = vector.broadcast %cst : f32 to vector<8x2x128xf32>
      %c0 = arith.constant 0 : index
      %c0_4 = arith.constant 0 : index
      %c0_5 = arith.constant 0 : index
      %10 = vector.load %arg6[%c0, %c0_4, %c0_5] : memref<8x2x128xf32, #tpu.memory_space<vmem>>, vector<8x2x128xf32>
      tpu.vector_store %arg6[%c0, %c0_4, %c0_5], %9 {strides = array<i32>} : memref<8x2x128xf32, #tpu.memory_space<vmem>>, vector<8x2x128xf32>,
    } else {
    }
    %3 = arith.cmpi sle, %arg2, %arg1 : i32
    %4 = arith.extui %3 : i1 to i32
    %c0_i32_1 = arith.constant 0 : i32
    %5 = arith.cmpi ne, %4, %c0_i32_1 : i32
    scf.if %5 {
      %c0 = arith.constant 0 : index
      %c0_4 = arith.constant 0 : index
      %c0_5 = arith.constant 0 : index
      %9 = vector.load %arg6[%c0, %c0_4, %c0_5] : memref<8x2x128xf32, #tpu.memory_space<vmem>>, vector<8x2x128xf32>
      %c0_6 = arith.constant 0 : index
      %c0_7 = arith.constant 0 : index
      %c0_8 = arith.constant 0 : index
      %10 = vector.load %arg4[%c0_6, %c0_7, %c0_8] : memref<2x8x128xbf16, #tpu.memory_space<vmem>>, vector<2x8x128xbf16>
      %c0_9 = arith.constant 0 : index
      %c0_10 = arith.constant 0 : index
      %c0_11 = arith.constant 0 : index
      %11 = vector.load %arg3[%c0_9, %c0_10, %c0_11] : memref<8x128x128xbf16, #tpu.memory_space<vmem>>, vector<8x128x128xbf16>
      %cst = arith.constant dense<0.000000e+00> : vector<8x2x128xf32>
      %12 = tpu.matmul %10, %11, %cst {dimension_numbers = #tpu.dot_dimension_numbers<[2], [1], [0], [2], [0, 1, 0, 0, 1, 2], [1], [0]>} : vector<2x8x128xbf16>, vector<8x128x128xbf16>, vector<8x2x128xf32> -> vector<8x2x128xf32>
      %13 = arith.addf %9, %12 : vector<8x2x128xf32>
      %c0_12 = arith.constant 0 : index
      %c0_13 = arith.constant 0 : index
      %c0_14 = arith.constant 0 : index
      %14 = vector.load %arg6[%c0_12, %c0_13, %c0_14] : memref<8x2x128xf32, #tpu.memory_space<vmem>>, vector<8x2x128xf32>
      tpu.vector_store %arg6[%c0_12, %c0_13, %c0_14], %13 {strides = array<i32>} : memref<8x2x128xf32, #tpu.memory_space<vmem>>, vector<8x2x128xf32>,
    } else {
    }
    %c0_i32_2 = arith.constant 0 : i32
    %6 = arith.cmpi eq, %arg2, %c0_i32_2 : i32
    %7 = arith.extui %6 : i1 to i32
    %c0_i32_3 = arith.constant 0 : i32
    %8 = arith.cmpi ne, %7, %c0_i32_3 : i32
    scf.if %8 {
      %c0 = arith.constant 0 : index
      %c0_4 = arith.constant 0 : index
      %c0_5 = arith.constant 0 : index
      %9 = vector.load %arg6[%c0, %c0_4, %c0_5] : memref<8x2x128xf32, #tpu.memory_space<vmem>>, vector<8x2x128xf32>
      %10 = vector.extract_strided_slice %9 {offsets = [0, 0, 0], sizes = [1, 2, 128], strides = [1, 1, 1]} : vector<8x2x128xf32> to vector<1x2x128xf32>
      %11 = vector.shape_cast %10 : vector<1x2x128xf32> to vector<2x128xf32>
      %12 = arith.truncf %11 : vector<2x128xf32> to vector<2x128xbf16>
      %c0_6 = arith.constant 0 : index
      %c0_7 = arith.constant 0 : index
      %c0_8 = arith.constant 0 : index
      %13 = vector.load %arg5[%c0_6, %c0_7, %c0_8] : memref<2x8x128xbf16, #tpu.memory_space<vmem>>, vector<2x1x128xbf16>
      %14 = vector.shape_cast %13 : vector<2x1x128xbf16> to vector<2x128xbf16>
      %15 = vector.shape_cast %12 : vector<2x128xbf16> to vector<2x1x128xbf16>
      tpu.vector_store %arg5[%c0_6, %c0_7, %c0_8], %15 {strides = array<i32>} : memref<2x8x128xbf16, #tpu.memory_space<vmem>>, vector<2x1x128xbf16>,
      %16 = vector.extract_strided_slice %9 {offsets = [1, 0, 0], sizes = [1, 2, 128], strides = [1, 1, 1]} : vector<8x2x128xf32> to vector<1x2x128xf32>
      %17 = vector.shape_cast %16 : vector<1x2x128xf32> to vector<2x128xf32>
      %18 = arith.truncf %17 : vector<2x128xf32> to vector<2x128xbf16>
      %c0_9 = arith.constant 0 : index
      %c1 = arith.constant 1 : index
      %c0_10 = arith.constant 0 : index
      %19 = vector.load %arg5[%c0_9, %c1, %c0_10] : memref<2x8x128xbf16, #tpu.memory_space<vmem>>, vector<2x1x128xbf16>
      %20 = vector.shape_cast %19 : vector<2x1x128xbf16> to vector<2x128xbf16>
      %21 = vector.shape_cast %18 : vector<2x128xbf16> to vector<2x1x128xbf16>
      tpu.vector_store %arg5[%c0_9, %c1, %c0_10], %21 {strides = array<i32>} : memref<2x8x128xbf16, #tpu.memory_space<vmem>>, vector<2x1x128xbf16>,
      %22 = vector.extract_strided_slice %9 {offsets = [2, 0, 0], sizes = [1, 2, 128], strides = [1, 1, 1]} : vector<8x2x128xf32> to vector<1x2x128xf32>
      %23 = vector.shape_cast %22 : vector<1x2x128xf32> to vector<2x128xf32>
      %24 = arith.truncf %23 : vector<2x128xf32> to vector<2x128xbf16>
      %c0_11 = arith.constant 0 : index
      %c2 = arith.constant 2 : index
      %c0_12 = arith.constant 0 : index
      %25 = vector.load %arg5[%c0_11, %c2, %c0_12] : memref<2x8x128xbf16, #tpu.memory_space<vmem>>, vector<2x1x128xbf16>
      %26 = vector.shape_cast %25 : vector<2x1x128xbf16> to vector<2x128xbf16>
      %27 = vector.shape_cast %24 : vector<2x128xbf16> to vector<2x1x128xbf16>
      tpu.vector_store %arg5[%c0_11, %c2, %c0_12], %27 {strides = array<i32>} : memref<2x8x128xbf16, #tpu.memory_space<vmem>>, vector<2x1x128xbf16>,
      %28 = vector.extract_strided_slice %9 {offsets = [3, 0, 0], sizes = [1, 2, 128], strides = [1, 1, 1]} : vector<8x2x128xf32> to vector<1x2x128xf32>
      %29 = vector.shape_cast %28 : vector<1x2x128xf32> to vector<2x128xf32>
      %30 = arith.truncf %29 : vector<2x128xf32> to vector<2x128xbf16>
      %c0_13 = arith.constant 0 : index
      %c3 = arith.constant 3 : index
      %c0_14 = arith.constant 0 : index
      %31 = vector.load %arg5[%c0_13, %c3, %c0_14] : memref<2x8x128xbf16, #tpu.memory_space<vmem>>, vector<2x1x128xbf16>
      %32 = vector.shape_cast %31 : vector<2x1x128xbf16> to vector<2x128xbf16>
      %33 = vector.shape_cast %30 : vector<2x128xbf16> to vector<2x1x128xbf16>
      tpu.vector_store %arg5[%c0_13, %c3, %c0_14], %33 {strides = array<i32>} : memref<2x8x128xbf16, #tpu.memory_space<vmem>>, vector<2x1x128xbf16>,
      %34 = vector.extract_strided_slice %9 {offsets = [4, 0, 0], sizes = [1, 2, 128], strides = [1, 1, 1]} : vector<8x2x128xf32> to vector<1x2x128xf32>
      %35 = vector.shape_cast %34 : vector<1x2x128xf32> to vector<2x128xf32>
      %36 = arith.truncf %35 : vector<2x128xf32> to vector<2x128xbf16>
      %c0_15 = arith.constant 0 : index
      %c4 = arith.constant 4 : index
      %c0_16 = arith.constant 0 : index
      %37 = vector.load %arg5[%c0_15, %c4, %c0_16] : memref<2x8x128xbf16, #tpu.memory_space<vmem>>, vector<2x1x128xbf16>
      %38 = vector.shape_cast %37 : vector<2x1x128xbf16> to vector<2x128xbf16>
      %39 = vector.shape_cast %36 : vector<2x128xbf16> to vector<2x1x128xbf16>
      tpu.vector_store %arg5[%c0_15, %c4, %c0_16], %39 {strides = array<i32>} : memref<2x8x128xbf16, #tpu.memory_space<vmem>>, vector<2x1x128xbf16>,
      %40 = vector.extract_strided_slice %9 {offsets = [5, 0, 0], sizes = [1, 2, 128], strides = [1, 1, 1]} : vector<8x2x128xf32> to vector<1x2x128xf32>
      %41 = vector.shape_cast %40 : vector<1x2x128xf32> to vector<2x128xf32>
      %42 = arith.truncf %41 : vector<2x128xf32> to vector<2x128xbf16>
      %c0_17 = arith.constant 0 : index
      %c5 = arith.constant 5 : index
      %c0_18 = arith.constant 0 : index
      %43 = vector.load %arg5[%c0_17, %c5, %c0_18] : memref<2x8x128xbf16, #tpu.memory_space<vmem>>, vector<2x1x128xbf16>
      %44 = vector.shape_cast %43 : vector<2x1x128xbf16> to vector<2x128xbf16>
      %45 = vector.shape_cast %42 : vector<2x128xbf16> to vector<2x1x128xbf16>
      tpu.vector_store %arg5[%c0_17, %c5, %c0_18], %45 {strides = array<i32>} : memref<2x8x128xbf16, #tpu.memory_space<vmem>>, vector<2x1x128xbf16>,
      %46 = vector.extract_strided_slice %9 {offsets = [6, 0, 0], sizes = [1, 2, 128], strides = [1, 1, 1]} : vector<8x2x128xf32> to vector<1x2x128xf32>
      %47 = vector.shape_cast %46 : vector<1x2x128xf32> to vector<2x128xf32>
      %48 = arith.truncf %47 : vector<2x128xf32> to vector<2x128xbf16>
      %c0_19 = arith.constant 0 : index
      %c6 = arith.constant 6 : index
      %c0_20 = arith.constant 0 : index
      %49 = vector.load %arg5[%c0_19, %c6, %c0_20] : memref<2x8x128xbf16, #tpu.memory_space<vmem>>, vector<2x1x128xbf16>
      %50 = vector.shape_cast %49 : vector<2x1x128xbf16> to vector<2x128xbf16>
      %51 = vector.shape_cast %48 : vector<2x128xbf16> to vector<2x1x128xbf16>
      tpu.vector_store %arg5[%c0_19, %c6, %c0_20], %51 {strides = array<i32>} : memref<2x8x128xbf16, #tpu.memory_space<vmem>>, vector<2x1x128xbf16>,
      %52 = vector.extract_strided_slice %9 {offsets = [7, 0, 0], sizes = [1, 2, 128], strides = [1, 1, 1]} : vector<8x2x128xf32> to vector<1x2x128xf32>
      %53 = vector.shape_cast %52 : vector<1x2x128xf32> to vector<2x128xf32>
      %54 = arith.truncf %53 : vector<2x128xf32> to vector<2x128xbf16>
      %c0_21 = arith.constant 0 : index
      %c7 = arith.constant 7 : index
      %c0_22 = arith.constant 0 : index
      %55 = vector.load %arg5[%c0_21, %c7, %c0_22] : memref<2x8x128xbf16, #tpu.memory_space<vmem>>, vector<2x1x128xbf16>
      %56 = vector.shape_cast %55 : vector<2x1x128xbf16> to vector<2x128xbf16>
      %57 = vector.shape_cast %54 : vector<2x128xbf16> to vector<2x1x128xbf16>
      tpu.vector_store %arg5[%c0_21, %c7, %c0_22], %57 {strides = array<i32>} : memref<2x8x128xbf16, #tpu.memory_space<vmem>>, vector<2x1x128xbf16>,
    } else {
    }
    return
  }
  func.func @transform_0(%arg0: i32, %arg1: i32, %arg2: i32) -> (i32, i32, i32) {
    %0 = arith.minsi %arg2, %arg1 : i32
    %c0_i32 = arith.constant 0 : i32
    return %arg0, %0, %arg1 : i32, i32, i32
  }
  func.func @transform_1(%arg0: i32, %arg1: i32, %arg2: i32) -> (i32, i32, i32) {
    %0 = arith.minsi %arg2, %arg1 : i32
    %c0_i32 = arith.constant 0 : i32
    %c0_i32_0 = arith.constant 0 : i32
    return %c0_i32, %arg0, %0 : i32, i32, i32
  }
  func.func @transform_2(%arg0: i32, %arg1: i32, %arg2: i32) -> (i32, i32, i32) {
    %c0_i32 = arith.constant 0 : i32
    %c0_i32_0 = arith.constant 0 : i32
    return %c0_i32, %arg0, %arg1 : i32, i32, i32
  }
}

module attributes {stable_mosaic.version = 11 : i64} {
  func.func @dwconv_kernel(%arg0: i32, %arg1: i32, %arg2: i32, %arg3: memref<8x128x128xbf16, #tpu.memory_space<vmem>>, %arg4: memref<2x8x128xbf16, #tpu.memory_space<vmem>>, %arg5: memref<2x8x128xbf16, #tpu.memory_space<vmem>>, %arg6: memref<8x2x128xf32, #tpu.memory_space<vmem>>) attributes {dimension_semantics = [#tpu.dimension_semantics<parallel>, #tpu.dimension_semantics<parallel>, #tpu.dimension_semantics<arbitrary>], iteration_bounds = array<i64: 2, 1, 1>, scalar_prefetch = 0 : i64, scratch_operands = 1 : i64, tpu.core_type = #tpu.core_type<tc>, window_params = [{transform_indices = @transform_0, window_bounds = array<i64: 8, 128, 128>}, {transform_indices = @transform_1, window_bounds = array<i64: 2, 8, 128>}, {transform_indices = @transform_2, window_bounds = array<i64: 2, 8, 128>}]} {
    %c0_i32 = arith.constant 0 : i32
    %0 = arith.cmpi eq, %arg2, %c0_i32 : i32
    %1 = arith.extui %0 : i1 to i32
    %c0_i32_0 = arith.constant 0 : i32
    %2 = arith.cmpi ne, %1, %c0_i32_0 : i32
    scf.if %2 {
      %cst = arith.constant 0.000000e+00 : f32
      %9 = vector.broadcast %cst : f32 to vector<8x2x128xf32>
      %c0 = arith.constant 0 : index
      %c0_4 = arith.constant 0 : index
      %c0_5 = arith.constant 0 : index
      %10 = vector.load %arg6[%c0, %c0_4, %c0_5] : memref<8x2x128xf32, #tpu.memory_space<vmem>>, vector<8x2x128xf32>
      tpu.vector_store %arg6[%c0, %c0_4, %c0_5], %9 {strides = array<i32>} : memref<8x2x128xf32, #tpu.memory_space<vmem>>, vector<8x2x128xf32>,
    } else {
    }
    %3 = arith.cmpi sle, %arg2, %arg1 : i32
    %4 = arith.extui %3 : i1 to i32
    %c0_i32_1 = arith.constant 0 : i32
    %5 = arith.cmpi ne, %4, %c0_i32_1 : i32
    scf.if %5 {
      %c0 = arith.constant 0 : index
      %c0_4 = arith.constant 0 : index
      %c0_5 = arith.constant 0 : index
      %9 = vector.load %arg6[%c0, %c0_4, %c0_5] : memref<8x2x128xf32, #tpu.memory_space<vmem>>, vector<8x2x128xf32>
      %c0_6 = arith.constant 0 : index
      %c0_7 = arith.constant 0 : index
      %c0_8 = arith.constant 0 : index
      %10 = vector.load %arg4[%c0_6, %c0_7, %c0_8] : memref<2x8x128xbf16, #tpu.memory_space<vmem>>, vector<2x8x128xbf16>
      %c0_9 = arith.constant 0 : index
      %c0_10 = arith.constant 0 : index
      %c0_11 = arith.constant 0 : index
      %11 = vector.load %arg3[%c0_9, %c0_10, %c0_11] : memref<8x128x128xbf16, #tpu.memory_space<vmem>>, vector<8x128x128xbf16>
      %cst = arith.constant dense<0.000000e+00> : vector<8x2x128xf32>
      %12 = tpu.matmul %10, %11, %cst {dimension_numbers = #tpu.dot_dimension_numbers<[2], [1], [0], [2], [0, 1, 0, 0, 1, 2], [1], [0]>} : vector<2x8x128xbf16>, vector<8x128x128xbf16>, vector<8x2x128xf32> -> vector<8x2x128xf32>
      %13 = arith.addf %9, %12 : vector<8x2x128xf32>
      %c0_12 = arith.constant 0 : index
      %c0_13 = arith.constant 0 : index
      %c0_14 = arith.constant 0 : index
      %14 = vector.load %arg6[%c0_12, %c0_13, %c0_14] : memref<8x2x128xf32, #tpu.memory_space<vmem>>, vector<8x2x128xf32>
      tpu.vector_store %arg6[%c0_12, %c0_13, %c0_14], %13 {strides = array<i32>} : memref<8x2x128xf32, #tpu.memory_space<vmem>>, vector<8x2x128xf32>,
    } else {
    }
    %c0_i32_2 = arith.constant 0 : i32
    %6 = arith.cmpi eq, %arg2, %c0_i32_2 : i32
    %7 = arith.extui %6 : i1 to i32
    %c0_i32_3 = arith.constant 0 : i32
    %8 = arith.cmpi ne, %7, %c0_i32_3 : i32
    scf.if %8 {
      %c0 = arith.constant 0 : index
      %c0_4 = arith.constant 0 : index
      %c0_5 = arith.constant 0 : index
      %9 = vector.load %arg6[%c0, %c0_4, %c0_5] : memref<8x2x128xf32, #tpu.memory_space<vmem>>, vector<8x2x128xf32>
      %10 = vector.extract_strided_slice %9 {offsets = [0, 0, 0], sizes = [1, 2, 128], strides = [1, 1, 1]} : vector<8x2x128xf32> to vector<1x2x128xf32>
      %11 = vector.shape_cast %10 : vector<1x2x128xf32> to vector<2x128xf32>
      %12 = arith.truncf %11 : vector<2x128xf32> to vector<2x128xbf16>
      %c0_6 = arith.constant 0 : index
      %c0_7 = arith.constant 0 : index
      %c0_8 = arith.constant 0 : index
      %13 = vector.load %arg5[%c0_6, %c0_7, %c0_8] : memref<2x8x128xbf16, #tpu.memory_space<vmem>>, vector<2x1x128xbf16>
      %14 = vector.shape_cast %13 : vector<2x1x128xbf16> to vector<2x128xbf16>
      %15 = vector.shape_cast %12 : vector<2x128xbf16> to vector<2x1x128xbf16>
      tpu.vector_store %arg5[%c0_6, %c0_7, %c0_8], %15 {strides = array<i32>} : memref<2x8x128xbf16, #tpu.memory_space<vmem>>, vector<2x1x128xbf16>,
      %16 = vector.extract_strided_slice %9 {offsets = [1, 0, 0], sizes = [1, 2, 128], strides = [1, 1, 1]} : vector<8x2x128xf32> to vector<1x2x128xf32>
      %17 = vector.shape_cast %16 : vector<1x2x128xf32> to vector<2x128xf32>
      %18 = arith.truncf %17 : vector<2x128xf32> to vector<2x128xbf16>
      %c0_9 = arith.constant 0 : index
      %c1 = arith.constant 1 : index
      %c0_10 = arith.constant 0 : index
      %19 = vector.load %arg5[%c0_9, %c1, %c0_10] : memref<2x8x128xbf16, #tpu.memory_space<vmem>>, vector<2x1x128xbf16>
      %20 = vector.shape_cast %19 : vector<2x1x128xbf16> to vector<2x128xbf16>
      %21 = vector.shape_cast %18 : vector<2x128xbf16> to vector<2x1x128xbf16>
      tpu.vector_store %arg5[%c0_9, %c1, %c0_10], %21 {strides = array<i32>} : memref<2x8x128xbf16, #tpu.memory_space<vmem>>, vector<2x1x128xbf16>,
      %22 = vector.extract_strided_slice %9 {offsets = [2, 0, 0], sizes = [1, 2, 128], strides = [1, 1, 1]} : vector<8x2x128xf32> to vector<1x2x128xf32>
      %23 = vector.shape_cast %22 : vector<1x2x128xf32> to vector<2x128xf32>
      %24 = arith.truncf %23 : vector<2x128xf32> to vector<2x128xbf16>
      %c0_11 = arith.constant 0 : index
      %c2 = arith.constant 2 : index
      %c0_12 = arith.constant 0 : index
      %25 = vector.load %arg5[%c0_11, %c2, %c0_12] : memref<2x8x128xbf16, #tpu.memory_space<vmem>>, vector<2x1x128xbf16>
      %26 = vector.shape_cast %25 : vector<2x1x128xbf16> to vector<2x128xbf16>
      %27 = vector.shape_cast %24 : vector<2x128xbf16> to vector<2x1x128xbf16>
      tpu.vector_store %arg5[%c0_11, %c2, %c0_12], %27 {strides = array<i32>} : memref<2x8x128xbf16, #tpu.memory_space<vmem>>, vector<2x1x128xbf16>,
      %28 = vector.extract_strided_slice %9 {offsets = [3, 0, 0], sizes = [1, 2, 128], strides = [1, 1, 1]} : vector<8x2x128xf32> to vector<1x2x128xf32>
      %29 = vector.shape_cast %28 : vector<1x2x128xf32> to vector<2x128xf32>
      %30 = arith.truncf %29 : vector<2x128xf32> to vector<2x128xbf16>
      %c0_13 = arith.constant 0 : index
      %c3 = arith.constant 3 : index
      %c0_14 = arith.constant 0 : index
      %31 = vector.load %arg5[%c0_13, %c3, %c0_14] : memref<2x8x128xbf16, #tpu.memory_space<vmem>>, vector<2x1x128xbf16>
      %32 = vector.shape_cast %31 : vector<2x1x128xbf16> to vector<2x128xbf16>
      %33 = vector.shape_cast %30 : vector<2x128xbf16> to vector<2x1x128xbf16>
      tpu.vector_store %arg5[%c0_13, %c3, %c0_14], %33 {strides = array<i32>} : memref<2x8x128xbf16, #tpu.memory_space<vmem>>, vector<2x1x128xbf16>,
      %34 = vector.extract_strided_slice %9 {offsets = [4, 0, 0], sizes = [1, 2, 128], strides = [1, 1, 1]} : vector<8x2x128xf32> to vector<1x2x128xf32>
      %35 = vector.shape_cast %34 : vector<1x2x128xf32> to vector<2x128xf32>
      %36 = arith.truncf %35 : vector<2x128xf32> to vector<2x128xbf16>
      %c0_15 = arith.constant 0 : index
      %c4 = arith.constant 4 : index
      %c0_16 = arith.constant 0 : index
      %37 = vector.load %arg5[%c0_15, %c4, %c0_16] : memref<2x8x128xbf16, #tpu.memory_space<vmem>>, vector<2x1x128xbf16>
      %38 = vector.shape_cast %37 : vector<2x1x128xbf16> to vector<2x128xbf16>
      %39 = vector.shape_cast %36 : vector<2x128xbf16> to vector<2x1x128xbf16>
      tpu.vector_store %arg5[%c0_15, %c4, %c0_16], %39 {strides = array<i32>} : memref<2x8x128xbf16, #tpu.memory_space<vmem>>, vector<2x1x128xbf16>,
      %40 = vector.extract_strided_slice %9 {offsets = [5, 0, 0], sizes = [1, 2, 128], strides = [1, 1, 1]} : vector<8x2x128xf32> to vector<1x2x128xf32>
      %41 = vector.shape_cast %40 : vector<1x2x128xf32> to vector<2x128xf32>
      %42 = arith.truncf %41 : vector<2x128xf32> to vector<2x128xbf16>
      %c0_17 = arith.constant 0 : index
      %c5 = arith.constant 5 : index
      %c0_18 = arith.constant 0 : index
      %43 = vector.load %arg5[%c0_17, %c5, %c0_18] : memref<2x8x128xbf16, #tpu.memory_space<vmem>>, vector<2x1x128xbf16>
      %44 = vector.shape_cast %43 : vector<2x1x128xbf16> to vector<2x128xbf16>
      %45 = vector.shape_cast %42 : vector<2x128xbf16> to vector<2x1x128xbf16>
      tpu.vector_store %arg5[%c0_17, %c5, %c0_18], %45 {strides = array<i32>} : memref<2x8x128xbf16, #tpu.memory_space<vmem>>, vector<2x1x128xbf16>,
      %46 = vector.extract_strided_slice %9 {offsets = [6, 0, 0], sizes = [1, 2, 128], strides = [1, 1, 1]} : vector<8x2x128xf32> to vector<1x2x128xf32>
      %47 = vector.shape_cast %46 : vector<1x2x128xf32> to vector<2x128xf32>
      %48 = arith.truncf %47 : vector<2x128xf32> to vector<2x128xbf16>
      %c0_19 = arith.constant 0 : index
      %c6 = arith.constant 6 : index
      %c0_20 = arith.constant 0 : index
      %49 = vector.load %arg5[%c0_19, %c6, %c0_20] : memref<2x8x128xbf16, #tpu.memory_space<vmem>>, vector<2x1x128xbf16>
      %50 = vector.shape_cast %49 : vector<2x1x128xbf16> to vector<2x128xbf16>
      %51 = vector.shape_cast %48 : vector<2x128xbf16> to vector<2x1x128xbf16>
      tpu.vector_store %arg5[%c0_19, %c6, %c0_20], %51 {strides = array<i32>} : memref<2x8x128xbf16, #tpu.memory_space<vmem>>, vector<2x1x128xbf16>,
      %52 = vector.extract_strided_slice %9 {offsets = [7, 0, 0], sizes = [1, 2, 128], strides = [1, 1, 1]} : vector<8x2x128xf32> to vector<1x2x128xf32>
      %53 = vector.shape_cast %52 : vector<1x2x128xf32> to vector<2x128xf32>
      %54 = arith.truncf %53 : vector<2x128xf32> to vector<2x128xbf16>
      %c0_21 = arith.constant 0 : index
      %c7 = arith.constant 7 : index
      %c0_22 = arith.constant 0 : index
      %55 = vector.load %arg5[%c0_21, %c7, %c0_22] : memref<2x8x128xbf16, #tpu.memory_space<vmem>>, vector<2x1x128xbf16>
      %56 = vector.shape_cast %55 : vector<2x1x128xbf16> to vector<2x128xbf16>
      %57 = vector.shape_cast %54 : vector<2x128xbf16> to vector<2x1x128xbf16>
      tpu.vector_store %arg5[%c0_21, %c7, %c0_22], %57 {strides = array<i32>} : memref<2x8x128xbf16, #tpu.memory_space<vmem>>, vector<2x1x128xbf16>,
    } else {
    }
    return
  }
  func.func @transform_0(%arg0: i32, %arg1: i32, %arg2: i32) -> (i32, i32, i32) {
    %0 = arith.minsi %arg2, %arg1 : i32
    %c0_i32 = arith.constant 0 : i32
    return %arg0, %0, %arg1 : i32, i32, i32
  }
  func.func @transform_1(%arg0: i32, %arg1: i32, %arg2: i32) -> (i32, i32, i32) {
    %0 = arith.minsi %arg2, %arg1 : i32
    %c0_i32 = arith.constant 0 : i32
    %c0_i32_0 = arith.constant 0 : i32
    return %c0_i32, %arg0, %0 : i32, i32, i32
  }
  func.func @transform_2(%arg0: i32, %arg1: i32, %arg2: i32) -> (i32, i32, i32) {
    %c0_i32 = arith.constant 0 : i32
    %c0_i32_0 = arith.constant 0 : i32
    return %c0_i32, %arg0, %arg1 : i32, i32, i32
  }
}

module attributes {stable_mosaic.version = 11 : i64} {
  func.func @s4post_ff_ln_kernel(%arg0: i32, %arg1: memref<2x16x128xbf16, #tpu.memory_space<vmem>>, %arg2: memref<2x16x128xbf16, #tpu.memory_space<vmem>>, %arg3: memref<2x16x128xf32, #tpu.memory_space<vmem>>, %arg4: memref<16x1xf32, #tpu.memory_space<vmem>>, %arg5: memref<16x16xbf16, #tpu.memory_space<vmem>>, %arg6: memref<16x1xf32, #tpu.memory_space<vmem>>, %arg7: memref<16x1xf32, #tpu.memory_space<vmem>>, %arg8: memref<16x1xf32, #tpu.memory_space<vmem>>, %arg9: memref<32x16xbf16, #tpu.memory_space<vmem>>, %arg10: memref<32x1xf32, #tpu.memory_space<vmem>>, %arg11: memref<16x32xbf16, #tpu.memory_space<vmem>>, %arg12: memref<16x1xf32, #tpu.memory_space<vmem>>, %arg13: memref<16x1xf32, #tpu.memory_space<vmem>>, %arg14: memref<16x1xf32, #tpu.memory_space<vmem>>, %arg15: memref<2x16x128xf32, #tpu.memory_space<vmem>>, %arg16: memref<2x16x128xbf16, #tpu.memory_space<vmem>>) attributes {dimension_semantics = [#tpu.dimension_semantics<parallel>], iteration_bounds = array<i64: 1>, scalar_prefetch = 0 : i64, scratch_operands = 0 : i64, tpu.core_type = #tpu.core_type<tc>, window_params = [{transform_indices = @transform_0, window_bounds = array<i64: 2, 16, 128>}, {transform_indices = @transform_1, window_bounds = array<i64: 2, 16, 128>}, {transform_indices = @transform_2, window_bounds = array<i64: 2, 16, 128>}, {pipeline_mode = #tpu.pipeline_mode<synchronous>, transform_indices = @transform_3, window_bounds = array<i64: 16, 1>}, {pipeline_mode = #tpu.pipeline_mode<synchronous>, transform_indices = @transform_4, window_bounds = array<i64: 16, 16>}, {pipeline_mode = #tpu.pipeline_mode<synchronous>, transform_indices = @transform_5, window_bounds = array<i64: 16, 1>}, {pipeline_mode = #tpu.pipeline_mode<synchronous>, transform_indices = @transform_6, window_bounds = array<i64: 16, 1>}, {pipeline_mode = #tpu.pipeline_mode<synchronous>, transform_indices = @transform_7, window_bounds = array<i64: 16, 1>}, {pipeline_mode = #tpu.pipeline_mode<synchronous>, transform_indices = @transform_8, window_bounds = array<i64: 32, 16>}, {pipeline_mode = #tpu.pipeline_mode<synchronous>, transform_indices = @transform_9, window_bounds = array<i64: 32, 1>}, {pipeline_mode = #tpu.pipeline_mode<synchronous>, transform_indices = @transform_10, window_bounds = array<i64: 16, 32>}, {pipeline_mode = #tpu.pipeline_mode<synchronous>, transform_indices = @transform_11, window_bounds = array<i64: 16, 1>}, {pipeline_mode = #tpu.pipeline_mode<synchronous>, transform_indices = @transform_12, window_bounds = array<i64: 16, 1>}, {pipeline_mode = #tpu.pipeline_mode<synchronous>, transform_indices = @transform_13, window_bounds = array<i64: 16, 1>}, {transform_indices = @transform_14, window_bounds = array<i64: 2, 16, 128>}, {transform_indices = @transform_15, window_bounds = array<i64: 2, 16, 128>}]} {
    %c0 = arith.constant 0 : index
    %c0_0 = arith.constant 0 : index
    %0 = vector.load %arg4[%c0, %c0_0] : memref<16x1xf32, #tpu.memory_space<vmem>>, vector<16x1xf32>
    %c0_1 = arith.constant 0 : index
    %c0_2 = arith.constant 0 : index
    %1 = vector.load %arg5[%c0_1, %c0_2] : memref<16x16xbf16, #tpu.memory_space<vmem>>, vector<16x16xbf16>
    %c0_3 = arith.constant 0 : index
    %c0_4 = arith.constant 0 : index
    %2 = vector.load %arg6[%c0_3, %c0_4] : memref<16x1xf32, #tpu.memory_space<vmem>>, vector<16x1xf32>
    %c0_5 = arith.constant 0 : index
    %c0_6 = arith.constant 0 : index
    %3 = vector.load %arg7[%c0_5, %c0_6] : memref<16x1xf32, #tpu.memory_space<vmem>>, vector<16x1xf32>
    %c0_7 = arith.constant 0 : index
    %c0_8 = arith.constant 0 : index
    %4 = vector.load %arg8[%c0_7, %c0_8] : memref<16x1xf32, #tpu.memory_space<vmem>>, vector<16x1xf32>
    %c0_9 = arith.constant 0 : index
    %c0_10 = arith.constant 0 : index
    %5 = vector.load %arg9[%c0_9, %c0_10] : memref<32x16xbf16, #tpu.memory_space<vmem>>, vector<32x16xbf16>
    %c0_11 = arith.constant 0 : index
    %c0_12 = arith.constant 0 : index
    %6 = vector.load %arg10[%c0_11, %c0_12] : memref<32x1xf32, #tpu.memory_space<vmem>>, vector<32x1xf32>
    %c0_13 = arith.constant 0 : index
    %c0_14 = arith.constant 0 : index
    %7 = vector.load %arg11[%c0_13, %c0_14] : memref<16x32xbf16, #tpu.memory_space<vmem>>, vector<16x32xbf16>
    %c0_15 = arith.constant 0 : index
    %c0_16 = arith.constant 0 : index
    %8 = vector.load %arg12[%c0_15, %c0_16] : memref<16x1xf32, #tpu.memory_space<vmem>>, vector<16x1xf32>
    %c0_17 = arith.constant 0 : index
    %c0_18 = arith.constant 0 : index
    %9 = vector.load %arg13[%c0_17, %c0_18] : memref<16x1xf32, #tpu.memory_space<vmem>>, vector<16x1xf32>
    %c0_19 = arith.constant 0 : index
    %c0_20 = arith.constant 0 : index
    %10 = vector.load %arg14[%c0_19, %c0_20] : memref<16x1xf32, #tpu.memory_space<vmem>>, vector<16x1xf32>
    %c0_i32 = arith.constant 0 : i32
    %c2_i32 = arith.constant 2 : i32
    %11 = arith.addi %c0_i32, %c2_i32 : i32
    %c1_i32 = arith.constant 1 : i32
    scf.for %arg17 = %c0_i32 to %11 step %c1_i32  : i32 {
      %c1_i32_22 = arith.constant 1 : i32
      %12 = arith.muli %arg17, %c1_i32_22 : i32
      %c0_i32_23 = arith.constant 0 : i32
      %13 = arith.addi %c0_i32_23, %12 : i32
      %14 = arith.index_cast %13 : i32 to index
      %c0_24 = arith.constant 0 : index
      %c0_25 = arith.constant 0 : index
      %15 = vector.load %arg1[%14, %c0_24, %c0_25] : memref<2x16x128xbf16, #tpu.memory_space<vmem>>, vector<1x16x128xbf16>
      %16 = vector.shape_cast %15 : vector<1x16x128xbf16> to vector<16x128xbf16>
      %17 = arith.extf %16 : vector<16x128xbf16> to vector<16x128xf32>
      %18 = arith.index_cast %13 : i32 to index
      %c0_26 = arith.constant 0 : index
      %c0_27 = arith.constant 0 : index
      %19 = vector.load %arg2[%18, %c0_26, %c0_27] : memref<2x16x128xbf16, #tpu.memory_space<vmem>>, vector<1x16x128xbf16>
      %20 = vector.shape_cast %19 : vector<1x16x128xbf16> to vector<16x128xbf16>
      %21 = arith.extf %20 : vector<16x128xbf16> to vector<16x128xf32>
      %22 = arith.index_cast %13 : i32 to index
      %c0_28 = arith.constant 0 : index
      %c0_29 = arith.constant 0 : index
      %23 = vector.load %arg3[%22, %c0_28, %c0_29] : memref<2x16x128xf32, #tpu.memory_space<vmem>>, vector<1x16x128xf32>
      %24 = vector.shape_cast %23 : vector<1x16x128xf32> to vector<16x128xf32>
      %25 = vector.broadcast %0 : vector<16x1xf32> to vector<16x128xf32>
      %26 = arith.mulf %21, %25 : vector<16x128xf32>
      %27 = arith.addf %17, %26 : vector<16x128xf32>
      %28 = arith.mulf %27, %27 : vector<16x128xf32>
      %29 = arith.mulf %27, %28 : vector<16x128xf32>
      %cst = arith.constant 4.471500e-02 : f32
      %30 = vector.broadcast %cst : f32 to vector<16x128xf32>
      %31 = arith.mulf %30, %29 : vector<16x128xf32>
      %32 = arith.addf %27, %31 : vector<16x128xf32>
      %cst_30 = arith.constant 0.797884583 : f32
      %33 = vector.broadcast %cst_30 : f32 to vector<16x128xf32>
      %34 = arith.mulf %33, %32 : vector<16x128xf32>
      %35 = math.tanh %34 : vector<16x128xf32>
      %cst_31 = arith.constant 1.000000e+00 : f32
      %36 = vector.broadcast %cst_31 : f32 to vector<16x128xf32>
      %37 = arith.addf %36, %35 : vector<16x128xf32>
      %cst_32 = arith.constant 5.000000e-01 : f32
      %38 = vector.broadcast %cst_32 : f32 to vector<16x128xf32>
      %39 = arith.mulf %38, %37 : vector<16x128xf32>
      %40 = arith.mulf %27, %39 : vector<16x128xf32>
      %41 = arith.truncf %40 : vector<16x128xf32> to vector<16x128xbf16>
      %cst_33 = arith.constant dense<0.000000e+00> : vector<16x128xf32>
      %42 = tpu.matmul %1, %41, %cst_33 {dimension_numbers = #tpu.dot_dimension_numbers<[1], [0], [0], [1], [0, 0, 1, 1], [], []>} : vector<16x16xbf16>, vector<16x128xbf16>, vector<16x128xf32> -> vector<16x128xf32>
      %43 = vector.broadcast %2 : vector<16x1xf32> to vector<16x128xf32>
      %44 = arith.addf %42, %43 : vector<16x128xf32>
      %45 = arith.addf %24, %44 : vector<16x128xf32>
      %cst_34 = arith.constant dense<0.000000e+00> : vector<128xf32>
      %46 = vector.multi_reduction <add>, %45, %cst_34 [0] : vector<16x128xf32> to vector<128xf32>
      %47 = vector.shape_cast %46 : vector<128xf32> to vector<1x128xf32>
      %cst_35 = arith.constant 1.600000e+01 : f32
      %48 = vector.broadcast %cst_35 : f32 to vector<1x128xf32>
      %49 = arith.divf %47, %48 : vector<1x128xf32>
      %50 = vector.broadcast %49 : vector<1x128xf32> to vector<16x128xf32>
      %51 = arith.subf %45, %50 : vector<16x128xf32>
      %52 = arith.mulf %51, %51 : vector<16x128xf32>
      %cst_36 = arith.constant dense<0.000000e+00> : vector<128xf32>
      %53 = vector.multi_reduction <add>, %52, %cst_36 [0] : vector<16x128xf32> to vector<128xf32>
      %54 = vector.shape_cast %53 : vector<128xf32> to vector<1x128xf32>
      %cst_37 = arith.constant 1.600000e+01 : f32
      %55 = vector.broadcast %cst_37 : f32 to vector<1x128xf32>
      %56 = arith.divf %54, %55 : vector<1x128xf32>
      %57 = vector.broadcast %49 : vector<1x128xf32> to vector<16x128xf32>
      %58 = arith.subf %45, %57 : vector<16x128xf32>
      %cst_38 = arith.constant 9.99999974E-6 : f32
      %59 = vector.broadcast %cst_38 : f32 to vector<1x128xf32>
      %60 = arith.addf %56, %59 : vector<1x128xf32>
      %61 = math.rsqrt %60 : vector<1x128xf32>
      %62 = vector.broadcast %61 : vector<1x128xf32> to vector<16x128xf32>
      %63 = arith.mulf %58, %62 : vector<16x128xf32>
      %64 = vector.broadcast %3 : vector<16x1xf32> to vector<16x128xf32>
      %65 = arith.mulf %63, %64 : vector<16x128xf32>
      %66 = vector.broadcast %4 : vector<16x1xf32> to vector<16x128xf32>
      %67 = arith.addf %65, %66 : vector<16x128xf32>
      %68 = arith.truncf %67 : vector<16x128xf32> to vector<16x128xbf16>
      %cst_39 = arith.constant dense<0.000000e+00> : vector<32x128xf32>
      %69 = tpu.matmul %5, %68, %cst_39 {dimension_numbers = #tpu.dot_dimension_numbers<[1], [0], [0], [1], [0, 0, 1, 1], [], []>} : vector<32x16xbf16>, vector<16x128xbf16>, vector<32x128xf32> -> vector<32x128xf32>
      %70 = vector.broadcast %6 : vector<32x1xf32> to vector<32x128xf32>
      %71 = arith.addf %69, %70 : vector<32x128xf32>
      %72 = arith.mulf %71, %71 : vector<32x128xf32>
      %73 = arith.mulf %71, %72 : vector<32x128xf32>
      %cst_40 = arith.constant 4.471500e-02 : f32
      %74 = vector.broadcast %cst_40 : f32 to vector<32x128xf32>
      %75 = arith.mulf %74, %73 : vector<32x128xf32>
      %76 = arith.addf %71, %75 : vector<32x128xf32>
      %cst_41 = arith.constant 0.797884583 : f32
      %77 = vector.broadcast %cst_41 : f32 to vector<32x128xf32>
      %78 = arith.mulf %77, %76 : vector<32x128xf32>
      %79 = math.tanh %78 : vector<32x128xf32>
      %cst_42 = arith.constant 1.000000e+00 : f32
      %80 = vector.broadcast %cst_42 : f32 to vector<32x128xf32>
      %81 = arith.addf %80, %79 : vector<32x128xf32>
      %cst_43 = arith.constant 5.000000e-01 : f32
      %82 = vector.broadcast %cst_43 : f32 to vector<32x128xf32>
      %83 = arith.mulf %82, %81 : vector<32x128xf32>
      %84 = arith.mulf %71, %83 : vector<32x128xf32>
      %85 = arith.truncf %84 : vector<32x128xf32> to vector<32x128xbf16>
      %cst_44 = arith.constant dense<0.000000e+00> : vector<16x128xf32>
      %86 = tpu.matmul %7, %85, %cst_44 {dimension_numbers = #tpu.dot_dimension_numbers<[1], [0], [0], [1], [0, 0, 1, 1], [], []>} : vector<16x32xbf16>, vector<32x128xbf16>, vector<16x128xf32> -> vector<16x128xf32>
      %87 = vector.broadcast %8 : vector<16x1xf32> to vector<16x128xf32>
      %88 = arith.addf %86, %87 : vector<16x128xf32>
      %89 = arith.addf %45, %88 : vector<16x128xf32>
      %90 = arith.index_cast %13 : i32 to index
      %c0_45 = arith.constant 0 : index
      %c0_46 = arith.constant 0 : index
      %91 = vector.load %arg15[%90, %c0_45, %c0_46] : memref<2x16x128xf32, #tpu.memory_space<vmem>>, vector<1x16x128xf32>
      %92 = vector.shape_cast %91 : vector<1x16x128xf32> to vector<16x128xf32>
      %93 = vector.shape_cast %89 : vector<16x128xf32> to vector<1x16x128xf32>
      tpu.vector_store %arg15[%90, %c0_45, %c0_46], %93 {strides = array<i32>} : memref<2x16x128xf32, #tpu.memory_space<vmem>>, vector<1x16x128xf32>,
      %cst_47 = arith.constant dense<0.000000e+00> : vector<128xf32>
      %94 = vector.multi_reduction <add>, %89, %cst_47 [0] : vector<16x128xf32> to vector<128xf32>
      %95 = vector.shape_cast %94 : vector<128xf32> to vector<1x128xf32>
      %cst_48 = arith.constant 1.600000e+01 : f32
      %96 = vector.broadcast %cst_48 : f32 to vector<1x128xf32>
      %97 = arith.divf %95, %96 : vector<1x128xf32>
      %98 = vector.broadcast %97 : vector<1x128xf32> to vector<16x128xf32>
      %99 = arith.subf %89, %98 : vector<16x128xf32>
      %100 = arith.mulf %99, %99 : vector<16x128xf32>
      %cst_49 = arith.constant dense<0.000000e+00> : vector<128xf32>
      %101 = vector.multi_reduction <add>, %100, %cst_49 [0] : vector<16x128xf32> to vector<128xf32>
      %102 = vector.shape_cast %101 : vector<128xf32> to vector<1x128xf32>
      %cst_50 = arith.constant 1.600000e+01 : f32
      %103 = vector.broadcast %cst_50 : f32 to vector<1x128xf32>
      %104 = arith.divf %102, %103 : vector<1x128xf32>
      %105 = vector.broadcast %97 : vector<1x128xf32> to vector<16x128xf32>
      %106 = arith.subf %89, %105 : vector<16x128xf32>
      %cst_51 = arith.constant 9.99999974E-6 : f32
      %107 = vector.broadcast %cst_51 : f32 to vector<1x128xf32>
      %108 = arith.addf %104, %107 : vector<1x128xf32>
      %109 = math.rsqrt %108 : vector<1x128xf32>
      %110 = vector.broadcast %109 : vector<1x128xf32> to vector<16x128xf32>
      %111 = arith.mulf %106, %110 : vector<16x128xf32>
      %112 = vector.broadcast %9 : vector<16x1xf32> to vector<16x128xf32>
      %113 = arith.mulf %111, %112 : vector<16x128xf32>
      %114 = vector.broadcast %10 : vector<16x1xf32> to vector<16x128xf32>
      %115 = arith.addf %113, %114 : vector<16x128xf32>
      %116 = arith.truncf %115 : vector<16x128xf32> to vector<16x128xbf16>
      %117 = arith.index_cast %13 : i32 to index
      %c0_52 = arith.constant 0 : index
      %c0_53 = arith.constant 0 : index
      %118 = vector.load %arg16[%117, %c0_52, %c0_53] : memref<2x16x128xbf16, #tpu.memory_space<vmem>>, vector<1x16x128xbf16>
      %119 = vector.shape_cast %118 : vector<1x16x128xbf16> to vector<16x128xbf16>
      %120 = vector.shape_cast %116 : vector<16x128xbf16> to vector<1x16x128xbf16>
      tpu.vector_store %arg16[%117, %c0_52, %c0_53], %120 {strides = array<i32>} : memref<2x16x128xbf16, #tpu.memory_space<vmem>>, vector<1x16x128xbf16>,
    }
    %c2_i32_21 = arith.constant 2 : i32
    return
  }
  func.func @transform_0(%arg0: i32) -> (i32, i32, i32) {
    %c0_i32 = arith.constant 0 : i32
    %c0_i32_0 = arith.constant 0 : i32
    %c0_i32_1 = arith.constant 0 : i32
    return %c0_i32, %c0_i32_0, %arg0 : i32, i32, i32
  }
  func.func @transform_1(%arg0: i32) -> (i32, i32, i32) {
    %c0_i32 = arith.constant 0 : i32
    %c0_i32_0 = arith.constant 0 : i32
    %c0_i32_1 = arith.constant 0 : i32
    return %c0_i32, %c0_i32_0, %arg0 : i32, i32, i32
  }
  func.func @transform_2(%arg0: i32) -> (i32, i32, i32) {
    %c0_i32 = arith.constant 0 : i32
    %c0_i32_0 = arith.constant 0 : i32
    %c0_i32_1 = arith.constant 0 : i32
    return %c0_i32, %c0_i32_0, %arg0 : i32, i32, i32
  }
  func.func @transform_3(%arg0: i32) -> (i32, i32) {
    %c0_i32 = arith.constant 0 : i32
    %c0_i32_0 = arith.constant 0 : i32
    %c0_i32_1 = arith.constant 0 : i32
    return %c0_i32, %c0_i32_0 : i32, i32
  }
  func.func @transform_4(%arg0: i32) -> (i32, i32) {
    %c0_i32 = arith.constant 0 : i32
    %c0_i32_0 = arith.constant 0 : i32
    %c0_i32_1 = arith.constant 0 : i32
    return %c0_i32, %c0_i32_0 : i32, i32
  }
  func.func @transform_5(%arg0: i32) -> (i32, i32) {
    %c0_i32 = arith.constant 0 : i32
    %c0_i32_0 = arith.constant 0 : i32
    %c0_i32_1 = arith.constant 0 : i32
    return %c0_i32, %c0_i32_0 : i32, i32
  }
  func.func @transform_6(%arg0: i32) -> (i32, i32) {
    %c0_i32 = arith.constant 0 : i32
    %c0_i32_0 = arith.constant 0 : i32
    %c0_i32_1 = arith.constant 0 : i32
    return %c0_i32, %c0_i32_0 : i32, i32
  }
  func.func @transform_7(%arg0: i32) -> (i32, i32) {
    %c0_i32 = arith.constant 0 : i32
    %c0_i32_0 = arith.constant 0 : i32
    %c0_i32_1 = arith.constant 0 : i32
    return %c0_i32, %c0_i32_0 : i32, i32
  }
  func.func @transform_8(%arg0: i32) -> (i32, i32) {
    %c0_i32 = arith.constant 0 : i32
    %c0_i32_0 = arith.constant 0 : i32
    %c0_i32_1 = arith.constant 0 : i32
    return %c0_i32, %c0_i32_0 : i32, i32
  }
  func.func @transform_9(%arg0: i32) -> (i32, i32) {
    %c0_i32 = arith.constant 0 : i32
    %c0_i32_0 = arith.constant 0 : i32
    %c0_i32_1 = arith.constant 0 : i32
    return %c0_i32, %c0_i32_0 : i32, i32
  }
  func.func @transform_10(%arg0: i32) -> (i32, i32) {
    %c0_i32 = arith.constant 0 : i32
    %c0_i32_0 = arith.constant 0 : i32
    %c0_i32_1 = arith.constant 0 : i32
    return %c0_i32, %c0_i32_0 : i32, i32
  }
  func.func @transform_11(%arg0: i32) -> (i32, i32) {
    %c0_i32 = arith.constant 0 : i32
    %c0_i32_0 = arith.constant 0 : i32
    %c0_i32_1 = arith.constant 0 : i32
    return %c0_i32, %c0_i32_0 : i32, i32
  }
  func.func @transform_12(%arg0: i32) -> (i32, i32) {
    %c0_i32 = arith.constant 0 : i32
    %c0_i32_0 = arith.constant 0 : i32
    %c0_i32_1 = arith.constant 0 : i32
    return %c0_i32, %c0_i32_0 : i32, i32
  }
  func.func @transform_13(%arg0: i32) -> (i32, i32) {
    %c0_i32 = arith.constant 0 : i32
    %c0_i32_0 = arith.constant 0 : i32
    %c0_i32_1 = arith.constant 0 : i32
    return %c0_i32, %c0_i32_0 : i32, i32
  }
  func.func @transform_14(%arg0: i32) -> (i32, i32, i32) {
    %c0_i32 = arith.constant 0 : i32
    %c0_i32_0 = arith.constant 0 : i32
    %c0_i32_1 = arith.constant 0 : i32
    return %c0_i32, %c0_i32_0, %arg0 : i32, i32, i32
  }
  func.func @transform_15(%arg0: i32) -> (i32, i32, i32) {
    %c0_i32 = arith.constant 0 : i32
    %c0_i32_0 = arith.constant 0 : i32
    %c0_i32_1 = arith.constant 0 : i32
    return %c0_i32, %c0_i32_0, %arg0 : i32, i32, i32
  }
}

module attributes {stable_mosaic.version = 11 : i64} {
  func.func @s4post_ff_out_kernel(%arg0: i32, %arg1: memref<2x16x128xbf16, #tpu.memory_space<vmem>>, %arg2: memref<2x16x128xbf16, #tpu.memory_space<vmem>>, %arg3: memref<2x16x128xf32, #tpu.memory_space<vmem>>, %arg4: memref<16x1xf32, #tpu.memory_space<vmem>>, %arg5: memref<16x16xbf16, #tpu.memory_space<vmem>>, %arg6: memref<16x1xf32, #tpu.memory_space<vmem>>, %arg7: memref<16x1xf32, #tpu.memory_space<vmem>>, %arg8: memref<16x1xf32, #tpu.memory_space<vmem>>, %arg9: memref<32x16xbf16, #tpu.memory_space<vmem>>, %arg10: memref<32x1xf32, #tpu.memory_space<vmem>>, %arg11: memref<16x32xbf16, #tpu.memory_space<vmem>>, %arg12: memref<16x1xf32, #tpu.memory_space<vmem>>, %arg13: memref<16x1xf32, #tpu.memory_space<vmem>>, %arg14: memref<1x1xf32, #tpu.memory_space<vmem>>, %arg15: memref<2x128xf32, #tpu.memory_space<vmem>>) attributes {dimension_semantics = [#tpu.dimension_semantics<parallel>], iteration_bounds = array<i64: 1>, scalar_prefetch = 0 : i64, scratch_operands = 0 : i64, tpu.core_type = #tpu.core_type<tc>, window_params = [{transform_indices = @transform_0, window_bounds = array<i64: 2, 16, 128>}, {transform_indices = @transform_1, window_bounds = array<i64: 2, 16, 128>}, {transform_indices = @transform_2, window_bounds = array<i64: 2, 16, 128>}, {pipeline_mode = #tpu.pipeline_mode<synchronous>, transform_indices = @transform_3, window_bounds = array<i64: 16, 1>}, {pipeline_mode = #tpu.pipeline_mode<synchronous>, transform_indices = @transform_4, window_bounds = array<i64: 16, 16>}, {pipeline_mode = #tpu.pipeline_mode<synchronous>, transform_indices = @transform_5, window_bounds = array<i64: 16, 1>}, {pipeline_mode = #tpu.pipeline_mode<synchronous>, transform_indices = @transform_6, window_bounds = array<i64: 16, 1>}, {pipeline_mode = #tpu.pipeline_mode<synchronous>, transform_indices = @transform_7, window_bounds = array<i64: 16, 1>}, {pipeline_mode = #tpu.pipeline_mode<synchronous>, transform_indices = @transform_8, window_bounds = array<i64: 32, 16>}, {pipeline_mode = #tpu.pipeline_mode<synchronous>, transform_indices = @transform_9, window_bounds = array<i64: 32, 1>}, {pipeline_mode = #tpu.pipeline_mode<synchronous>, transform_indices = @transform_10, window_bounds = array<i64: 16, 32>}, {pipeline_mode = #tpu.pipeline_mode<synchronous>, transform_indices = @transform_11, window_bounds = array<i64: 16, 1>}, {pipeline_mode = #tpu.pipeline_mode<synchronous>, transform_indices = @transform_12, window_bounds = array<i64: 16, 1>}, {pipeline_mode = #tpu.pipeline_mode<synchronous>, transform_indices = @transform_13, window_bounds = array<i64: 1, 1>}, {transform_indices = @transform_14, window_bounds = array<i64: 2, 128>}]} {
    %c0 = arith.constant 0 : index
    %c0_0 = arith.constant 0 : index
    %0 = vector.load %arg4[%c0, %c0_0] : memref<16x1xf32, #tpu.memory_space<vmem>>, vector<16x1xf32>
    %c0_1 = arith.constant 0 : index
    %c0_2 = arith.constant 0 : index
    %1 = vector.load %arg5[%c0_1, %c0_2] : memref<16x16xbf16, #tpu.memory_space<vmem>>, vector<16x16xbf16>
    %c0_3 = arith.constant 0 : index
    %c0_4 = arith.constant 0 : index
    %2 = vector.load %arg6[%c0_3, %c0_4] : memref<16x1xf32, #tpu.memory_space<vmem>>, vector<16x1xf32>
    %c0_5 = arith.constant 0 : index
    %c0_6 = arith.constant 0 : index
    %3 = vector.load %arg7[%c0_5, %c0_6] : memref<16x1xf32, #tpu.memory_space<vmem>>, vector<16x1xf32>
    %c0_7 = arith.constant 0 : index
    %c0_8 = arith.constant 0 : index
    %4 = vector.load %arg8[%c0_7, %c0_8] : memref<16x1xf32, #tpu.memory_space<vmem>>, vector<16x1xf32>
    %c0_9 = arith.constant 0 : index
    %c0_10 = arith.constant 0 : index
    %5 = vector.load %arg9[%c0_9, %c0_10] : memref<32x16xbf16, #tpu.memory_space<vmem>>, vector<32x16xbf16>
    %c0_11 = arith.constant 0 : index
    %c0_12 = arith.constant 0 : index
    %6 = vector.load %arg10[%c0_11, %c0_12] : memref<32x1xf32, #tpu.memory_space<vmem>>, vector<32x1xf32>
    %c0_13 = arith.constant 0 : index
    %c0_14 = arith.constant 0 : index
    %7 = vector.load %arg11[%c0_13, %c0_14] : memref<16x32xbf16, #tpu.memory_space<vmem>>, vector<16x32xbf16>
    %c0_15 = arith.constant 0 : index
    %c0_16 = arith.constant 0 : index
    %8 = vector.load %arg12[%c0_15, %c0_16] : memref<16x1xf32, #tpu.memory_space<vmem>>, vector<16x1xf32>
    %c0_17 = arith.constant 0 : index
    %c0_18 = arith.constant 0 : index
    %9 = vector.load %arg13[%c0_17, %c0_18] : memref<16x1xf32, #tpu.memory_space<vmem>>, vector<16x1xf32>
    %c0_19 = arith.constant 0 : index
    %c0_20 = arith.constant 0 : index
    %10 = vector.load %arg14[%c0_19, %c0_20] : memref<1x1xf32, #tpu.memory_space<vmem>>, vector<1x1xf32>
    %c0_21 = arith.constant 0 : index
    %c0_22 = arith.constant 0 : index
    %c0_23 = arith.constant 0 : index
    %11 = vector.load %arg1[%c0_21, %c0_22, %c0_23] : memref<2x16x128xbf16, #tpu.memory_space<vmem>>, vector<1x16x128xbf16>
    %12 = vector.shape_cast %11 : vector<1x16x128xbf16> to vector<16x128xbf16>
    %13 = arith.extf %12 : vector<16x128xbf16> to vector<16x128xf32>
    %c0_24 = arith.constant 0 : index
    %c0_25 = arith.constant 0 : index
    %c0_26 = arith.constant 0 : index
    %14 = vector.load %arg2[%c0_24, %c0_25, %c0_26] : memref<2x16x128xbf16, #tpu.memory_space<vmem>>, vector<1x16x128xbf16>
    %15 = vector.shape_cast %14 : vector<1x16x128xbf16> to vector<16x128xbf16>
    %16 = arith.extf %15 : vector<16x128xbf16> to vector<16x128xf32>
    %c0_27 = arith.constant 0 : index
    %c0_28 = arith.constant 0 : index
    %c0_29 = arith.constant 0 : index
    %17 = vector.load %arg3[%c0_27, %c0_28, %c0_29] : memref<2x16x128xf32, #tpu.memory_space<vmem>>, vector<1x16x128xf32>
    %18 = vector.shape_cast %17 : vector<1x16x128xf32> to vector<16x128xf32>
    %19 = vector.broadcast %0 : vector<16x1xf32> to vector<16x128xf32>
    %20 = arith.mulf %16, %19 : vector<16x128xf32>
    %21 = arith.addf %13, %20 : vector<16x128xf32>
    %22 = arith.mulf %21, %21 : vector<16x128xf32>
    %23 = arith.mulf %21, %22 : vector<16x128xf32>
    %cst = arith.constant 4.471500e-02 : f32
    %24 = vector.broadcast %cst : f32 to vector<16x128xf32>
    %25 = arith.mulf %24, %23 : vector<16x128xf32>
    %26 = arith.addf %21, %25 : vector<16x128xf32>
    %cst_30 = arith.constant 0.797884583 : f32
    %27 = vector.broadcast %cst_30 : f32 to vector<16x128xf32>
    %28 = arith.mulf %27, %26 : vector<16x128xf32>
    %29 = math.tanh %28 : vector<16x128xf32>
    %cst_31 = arith.constant 1.000000e+00 : f32
    %30 = vector.broadcast %cst_31 : f32 to vector<16x128xf32>
    %31 = arith.addf %30, %29 : vector<16x128xf32>
    %cst_32 = arith.constant 5.000000e-01 : f32
    %32 = vector.broadcast %cst_32 : f32 to vector<16x128xf32>
    %33 = arith.mulf %32, %31 : vector<16x128xf32>
    %34 = arith.mulf %21, %33 : vector<16x128xf32>
    %35 = arith.truncf %34 : vector<16x128xf32> to vector<16x128xbf16>
    %cst_33 = arith.constant dense<0.000000e+00> : vector<16x128xf32>
    %36 = tpu.matmul %1, %35, %cst_33 {dimension_numbers = #tpu.dot_dimension_numbers<[1], [0], [0], [1], [0, 0, 1, 1], [], []>} : vector<16x16xbf16>, vector<16x128xbf16>, vector<16x128xf32> -> vector<16x128xf32>
    %37 = vector.broadcast %2 : vector<16x1xf32> to vector<16x128xf32>
    %38 = arith.addf %36, %37 : vector<16x128xf32>
    %39 = arith.addf %18, %38 : vector<16x128xf32>
    %cst_34 = arith.constant dense<0.000000e+00> : vector<128xf32>
    %40 = vector.multi_reduction <add>, %39, %cst_34 [0] : vector<16x128xf32> to vector<128xf32>
    %41 = vector.shape_cast %40 : vector<128xf32> to vector<1x128xf32>
    %cst_35 = arith.constant 1.600000e+01 : f32
    %42 = vector.broadcast %cst_35 : f32 to vector<1x128xf32>
    %43 = arith.divf %41, %42 : vector<1x128xf32>
    %44 = vector.broadcast %43 : vector<1x128xf32> to vector<16x128xf32>
    %45 = arith.subf %39, %44 : vector<16x128xf32>
    %46 = arith.mulf %45, %45 : vector<16x128xf32>
    %cst_36 = arith.constant dense<0.000000e+00> : vector<128xf32>
    %47 = vector.multi_reduction <add>, %46, %cst_36 [0] : vector<16x128xf32> to vector<128xf32>
    %48 = vector.shape_cast %47 : vector<128xf32> to vector<1x128xf32>
    %cst_37 = arith.constant 1.600000e+01 : f32
    %49 = vector.broadcast %cst_37 : f32 to vector<1x128xf32>
    %50 = arith.divf %48, %49 : vector<1x128xf32>
    %51 = vector.broadcast %43 : vector<1x128xf32> to vector<16x128xf32>
    %52 = arith.subf %39, %51 : vector<16x128xf32>
    %cst_38 = arith.constant 9.99999974E-6 : f32
    %53 = vector.broadcast %cst_38 : f32 to vector<1x128xf32>
    %54 = arith.addf %50, %53 : vector<1x128xf32>
    %55 = math.rsqrt %54 : vector<1x128xf32>
    %56 = vector.broadcast %55 : vector<1x128xf32> to vector<16x128xf32>
    %57 = arith.mulf %52, %56 : vector<16x128xf32>
    %58 = vector.broadcast %3 : vector<16x1xf32> to vector<16x128xf32>
    %59 = arith.mulf %57, %58 : vector<16x128xf32>
    %60 = vector.broadcast %4 : vector<16x1xf32> to vector<16x128xf32>
    %61 = arith.addf %59, %60 : vector<16x128xf32>
    %62 = arith.truncf %61 : vector<16x128xf32> to vector<16x128xbf16>
    %cst_39 = arith.constant dense<0.000000e+00> : vector<32x128xf32>
    %63 = tpu.matmul %5, %62, %cst_39 {dimension_numbers = #tpu.dot_dimension_numbers<[1], [0], [0], [1], [0, 0, 1, 1], [], []>} : vector<32x16xbf16>, vector<16x128xbf16>, vector<32x128xf32> -> vector<32x128xf32>
    %64 = vector.broadcast %6 : vector<32x1xf32> to vector<32x128xf32>
    %65 = arith.addf %63, %64 : vector<32x128xf32>
    %66 = arith.mulf %65, %65 : vector<32x128xf32>
    %67 = arith.mulf %65, %66 : vector<32x128xf32>
    %cst_40 = arith.constant 4.471500e-02 : f32
    %68 = vector.broadcast %cst_40 : f32 to vector<32x128xf32>
    %69 = arith.mulf %68, %67 : vector<32x128xf32>
    %70 = arith.addf %65, %69 : vector<32x128xf32>
    %cst_41 = arith.constant 0.797884583 : f32
    %71 = vector.broadcast %cst_41 : f32 to vector<32x128xf32>
    %72 = arith.mulf %71, %70 : vector<32x128xf32>
    %73 = math.tanh %72 : vector<32x128xf32>
    %cst_42 = arith.constant 1.000000e+00 : f32
    %74 = vector.broadcast %cst_42 : f32 to vector<32x128xf32>
    %75 = arith.addf %74, %73 : vector<32x128xf32>
    %cst_43 = arith.constant 5.000000e-01 : f32
    %76 = vector.broadcast %cst_43 : f32 to vector<32x128xf32>
    %77 = arith.mulf %76, %75 : vector<32x128xf32>
    %78 = arith.mulf %65, %77 : vector<32x128xf32>
    %79 = arith.truncf %78 : vector<32x128xf32> to vector<32x128xbf16>
    %cst_44 = arith.constant dense<0.000000e+00> : vector<16x128xf32>
    %80 = tpu.matmul %7, %79, %cst_44 {dimension_numbers = #tpu.dot_dimension_numbers<[1], [0], [0], [1], [0, 0, 1, 1], [], []>} : vector<16x32xbf16>, vector<32x128xbf16>, vector<16x128xf32> -> vector<16x128xf32>
    %81 = vector.broadcast %8 : vector<16x1xf32> to vector<16x128xf32>
    %82 = arith.addf %80, %81 : vector<16x128xf32>
    %83 = arith.addf %39, %82 : vector<16x128xf32>
    %84 = vector.broadcast %9 : vector<16x1xf32> to vector<16x128xf32>
    %85 = arith.mulf %83, %84 : vector<16x128xf32>
    %cst_45 = arith.constant dense<0.000000e+00> : vector<128xf32>
    %86 = vector.multi_reduction <add>, %85, %cst_45 [0] : vector<16x128xf32> to vector<128xf32>
    %87 = vector.shape_cast %86 : vector<128xf32> to vector<1x128xf32>
    %88 = vector.broadcast %10 : vector<1x1xf32> to vector<1x128xf32>
    %89 = arith.addf %87, %88 : vector<1x128xf32>
    %c1 = arith.constant 1 : index
    %c0_46 = arith.constant 0 : index
    %c0_47 = arith.constant 0 : index
    %90 = vector.load %arg1[%c1, %c0_46, %c0_47] : memref<2x16x128xbf16, #tpu.memory_space<vmem>>, vector<1x16x128xbf16>
    %91 = vector.shape_cast %90 : vector<1x16x128xbf16> to vector<16x128xbf16>
    %92 = arith.extf %91 : vector<16x128xbf16> to vector<16x128xf32>
    %c1_48 = arith.constant 1 : index
    %c0_49 = arith.constant 0 : index
    %c0_50 = arith.constant 0 : index
    %93 = vector.load %arg2[%c1_48, %c0_49, %c0_50] : memref<2x16x128xbf16, #tpu.memory_space<vmem>>, vector<1x16x128xbf16>
    %94 = vector.shape_cast %93 : vector<1x16x128xbf16> to vector<16x128xbf16>
    %95 = arith.extf %94 : vector<16x128xbf16> to vector<16x128xf32>
    %c1_51 = arith.constant 1 : index
    %c0_52 = arith.constant 0 : index
    %c0_53 = arith.constant 0 : index
    %96 = vector.load %arg3[%c1_51, %c0_52, %c0_53] : memref<2x16x128xf32, #tpu.memory_space<vmem>>, vector<1x16x128xf32>
    %97 = vector.shape_cast %96 : vector<1x16x128xf32> to vector<16x128xf32>
    %98 = vector.broadcast %0 : vector<16x1xf32> to vector<16x128xf32>
    %99 = arith.mulf %95, %98 : vector<16x128xf32>
    %100 = arith.addf %92, %99 : vector<16x128xf32>
    %101 = arith.mulf %100, %100 : vector<16x128xf32>
    %102 = arith.mulf %100, %101 : vector<16x128xf32>
    %cst_54 = arith.constant 4.471500e-02 : f32
    %103 = vector.broadcast %cst_54 : f32 to vector<16x128xf32>
    %104 = arith.mulf %103, %102 : vector<16x128xf32>
    %105 = arith.addf %100, %104 : vector<16x128xf32>
    %cst_55 = arith.constant 0.797884583 : f32
    %106 = vector.broadcast %cst_55 : f32 to vector<16x128xf32>
    %107 = arith.mulf %106, %105 : vector<16x128xf32>
    %108 = math.tanh %107 : vector<16x128xf32>
    %cst_56 = arith.constant 1.000000e+00 : f32
    %109 = vector.broadcast %cst_56 : f32 to vector<16x128xf32>
    %110 = arith.addf %109, %108 : vector<16x128xf32>
    %cst_57 = arith.constant 5.000000e-01 : f32
    %111 = vector.broadcast %cst_57 : f32 to vector<16x128xf32>
    %112 = arith.mulf %111, %110 : vector<16x128xf32>
    %113 = arith.mulf %100, %112 : vector<16x128xf32>
    %114 = arith.truncf %113 : vector<16x128xf32> to vector<16x128xbf16>
    %cst_58 = arith.constant dense<0.000000e+00> : vector<16x128xf32>
    %115 = tpu.matmul %1, %114, %cst_58 {dimension_numbers = #tpu.dot_dimension_numbers<[1], [0], [0], [1], [0, 0, 1, 1], [], []>} : vector<16x16xbf16>, vector<16x128xbf16>, vector<16x128xf32> -> vector<16x128xf32>
    %116 = vector.broadcast %2 : vector<16x1xf32> to vector<16x128xf32>
    %117 = arith.addf %115, %116 : vector<16x128xf32>
    %118 = arith.addf %97, %117 : vector<16x128xf32>
    %cst_59 = arith.constant dense<0.000000e+00> : vector<128xf32>
    %119 = vector.multi_reduction <add>, %118, %cst_59 [0] : vector<16x128xf32> to vector<128xf32>
    %120 = vector.shape_cast %119 : vector<128xf32> to vector<1x128xf32>
    %cst_60 = arith.constant 1.600000e+01 : f32
    %121 = vector.broadcast %cst_60 : f32 to vector<1x128xf32>
    %122 = arith.divf %120, %121 : vector<1x128xf32>
    %123 = vector.broadcast %122 : vector<1x128xf32> to vector<16x128xf32>
    %124 = arith.subf %118, %123 : vector<16x128xf32>
    %125 = arith.mulf %124, %124 : vector<16x128xf32>
    %cst_61 = arith.constant dense<0.000000e+00> : vector<128xf32>
    %126 = vector.multi_reduction <add>, %125, %cst_61 [0] : vector<16x128xf32> to vector<128xf32>
    %127 = vector.shape_cast %126 : vector<128xf32> to vector<1x128xf32>
    %cst_62 = arith.constant 1.600000e+01 : f32
    %128 = vector.broadcast %cst_62 : f32 to vector<1x128xf32>
    %129 = arith.divf %127, %128 : vector<1x128xf32>
    %130 = vector.broadcast %122 : vector<1x128xf32> to vector<16x128xf32>
    %131 = arith.subf %118, %130 : vector<16x128xf32>
    %cst_63 = arith.constant 9.99999974E-6 : f32
    %132 = vector.broadcast %cst_63 : f32 to vector<1x128xf32>
    %133 = arith.addf %129, %132 : vector<1x128xf32>
    %134 = math.rsqrt %133 : vector<1x128xf32>
    %135 = vector.broadcast %134 : vector<1x128xf32> to vector<16x128xf32>
    %136 = arith.mulf %131, %135 : vector<16x128xf32>
    %137 = vector.broadcast %3 : vector<16x1xf32> to vector<16x128xf32>
    %138 = arith.mulf %136, %137 : vector<16x128xf32>
    %139 = vector.broadcast %4 : vector<16x1xf32> to vector<16x128xf32>
    %140 = arith.addf %138, %139 : vector<16x128xf32>
    %141 = arith.truncf %140 : vector<16x128xf32> to vector<16x128xbf16>
    %cst_64 = arith.constant dense<0.000000e+00> : vector<32x128xf32>
    %142 = tpu.matmul %5, %141, %cst_64 {dimension_numbers = #tpu.dot_dimension_numbers<[1], [0], [0], [1], [0, 0, 1, 1], [], []>} : vector<32x16xbf16>, vector<16x128xbf16>, vector<32x128xf32> -> vector<32x128xf32>
    %143 = vector.broadcast %6 : vector<32x1xf32> to vector<32x128xf32>
    %144 = arith.addf %142, %143 : vector<32x128xf32>
    %145 = arith.mulf %144, %144 : vector<32x128xf32>
    %146 = arith.mulf %144, %145 : vector<32x128xf32>
    %cst_65 = arith.constant 4.471500e-02 : f32
    %147 = vector.broadcast %cst_65 : f32 to vector<32x128xf32>
    %148 = arith.mulf %147, %146 : vector<32x128xf32>
    %149 = arith.addf %144, %148 : vector<32x128xf32>
    %cst_66 = arith.constant 0.797884583 : f32
    %150 = vector.broadcast %cst_66 : f32 to vector<32x128xf32>
    %151 = arith.mulf %150, %149 : vector<32x128xf32>
    %152 = math.tanh %151 : vector<32x128xf32>
    %cst_67 = arith.constant 1.000000e+00 : f32
    %153 = vector.broadcast %cst_67 : f32 to vector<32x128xf32>
    %154 = arith.addf %153, %152 : vector<32x128xf32>
    %cst_68 = arith.constant 5.000000e-01 : f32
    %155 = vector.broadcast %cst_68 : f32 to vector<32x128xf32>
    %156 = arith.mulf %155, %154 : vector<32x128xf32>
    %157 = arith.mulf %144, %156 : vector<32x128xf32>
    %158 = arith.truncf %157 : vector<32x128xf32> to vector<32x128xbf16>
    %cst_69 = arith.constant dense<0.000000e+00> : vector<16x128xf32>
    %159 = tpu.matmul %7, %158, %cst_69 {dimension_numbers = #tpu.dot_dimension_numbers<[1], [0], [0], [1], [0, 0, 1, 1], [], []>} : vector<16x32xbf16>, vector<32x128xbf16>, vector<16x128xf32> -> vector<16x128xf32>
    %160 = vector.broadcast %8 : vector<16x1xf32> to vector<16x128xf32>
    %161 = arith.addf %159, %160 : vector<16x128xf32>
    %162 = arith.addf %118, %161 : vector<16x128xf32>
    %163 = vector.broadcast %9 : vector<16x1xf32> to vector<16x128xf32>
    %164 = arith.mulf %162, %163 : vector<16x128xf32>
    %cst_70 = arith.constant dense<0.000000e+00> : vector<128xf32>
    %165 = vector.multi_reduction <add>, %164, %cst_70 [0] : vector<16x128xf32> to vector<128xf32>
    %166 = vector.shape_cast %165 : vector<128xf32> to vector<1x128xf32>
    %167 = vector.broadcast %10 : vector<1x1xf32> to vector<1x128xf32>
    %168 = arith.addf %166, %167 : vector<1x128xf32>
    %169 = tpu.concatenate %89, %168 in 0 : vector<1x128xf32>, vector<1x128xf32> -> vector<2x128xf32>
    %c0_71 = arith.constant 0 : index
    %c0_72 = arith.constant 0 : index
    %170 = vector.load %arg15[%c0_71, %c0_72] : memref<2x128xf32, #tpu.memory_space<vmem>>, vector<2x128xf32>
    tpu.vector_store %arg15[%c0_71, %c0_72], %169 {strides = array<i32>} : memref<2x128xf32, #tpu.memory_space<vmem>>, vector<2x128xf32>,
    return
  }
  func.func @transform_0(%arg0: i32) -> (i32, i32, i32) {
    %c0_i32 = arith.constant 0 : i32
    %c0_i32_0 = arith.constant 0 : i32
    %c0_i32_1 = arith.constant 0 : i32
    return %c0_i32, %c0_i32_0, %arg0 : i32, i32, i32
  }
  func.func @transform_1(%arg0: i32) -> (i32, i32, i32) {
    %c0_i32 = arith.constant 0 : i32
    %c0_i32_0 = arith.constant 0 : i32
    %c0_i32_1 = arith.constant 0 : i32
    return %c0_i32, %c0_i32_0, %arg0 : i32, i32, i32
  }
  func.func @transform_2(%arg0: i32) -> (i32, i32, i32) {
    %c0_i32 = arith.constant 0 : i32
    %c0_i32_0 = arith.constant 0 : i32
    %c0_i32_1 = arith.constant 0 : i32
    return %c0_i32, %c0_i32_0, %arg0 : i32, i32, i32
  }
  func.func @transform_3(%arg0: i32) -> (i32, i32) {
    %c0_i32 = arith.constant 0 : i32
    %c0_i32_0 = arith.constant 0 : i32
    %c0_i32_1 = arith.constant 0 : i32
    return %c0_i32, %c0_i32_0 : i32, i32
  }
  func.func @transform_4(%arg0: i32) -> (i32, i32) {
    %c0_i32 = arith.constant 0 : i32
    %c0_i32_0 = arith.constant 0 : i32
    %c0_i32_1 = arith.constant 0 : i32
    return %c0_i32, %c0_i32_0 : i32, i32
  }
  func.func @transform_5(%arg0: i32) -> (i32, i32) {
    %c0_i32 = arith.constant 0 : i32
    %c0_i32_0 = arith.constant 0 : i32
    %c0_i32_1 = arith.constant 0 : i32
    return %c0_i32, %c0_i32_0 : i32, i32
  }
  func.func @transform_6(%arg0: i32) -> (i32, i32) {
    %c0_i32 = arith.constant 0 : i32
    %c0_i32_0 = arith.constant 0 : i32
    %c0_i32_1 = arith.constant 0 : i32
    return %c0_i32, %c0_i32_0 : i32, i32
  }
  func.func @transform_7(%arg0: i32) -> (i32, i32) {
    %c0_i32 = arith.constant 0 : i32
    %c0_i32_0 = arith.constant 0 : i32
    %c0_i32_1 = arith.constant 0 : i32
    return %c0_i32, %c0_i32_0 : i32, i32
  }
  func.func @transform_8(%arg0: i32) -> (i32, i32) {
    %c0_i32 = arith.constant 0 : i32
    %c0_i32_0 = arith.constant 0 : i32
    %c0_i32_1 = arith.constant 0 : i32
    return %c0_i32, %c0_i32_0 : i32, i32
  }
  func.func @transform_9(%arg0: i32) -> (i32, i32) {
    %c0_i32 = arith.constant 0 : i32
    %c0_i32_0 = arith.constant 0 : i32
    %c0_i32_1 = arith.constant 0 : i32
    return %c0_i32, %c0_i32_0 : i32, i32
  }
  func.func @transform_10(%arg0: i32) -> (i32, i32) {
    %c0_i32 = arith.constant 0 : i32
    %c0_i32_0 = arith.constant 0 : i32
    %c0_i32_1 = arith.constant 0 : i32
    return %c0_i32, %c0_i32_0 : i32, i32
  }
  func.func @transform_11(%arg0: i32) -> (i32, i32) {
    %c0_i32 = arith.constant 0 : i32
    %c0_i32_0 = arith.constant 0 : i32
    %c0_i32_1 = arith.constant 0 : i32
    return %c0_i32, %c0_i32_0 : i32, i32
  }
  func.func @transform_12(%arg0: i32) -> (i32, i32) {
    %c0_i32 = arith.constant 0 : i32
    %c0_i32_0 = arith.constant 0 : i32
    %c0_i32_1 = arith.constant 0 : i32
    return %c0_i32, %c0_i32_0 : i32, i32
  }
  func.func @transform_13(%arg0: i32) -> (i32, i32) {
    %c0_i32 = arith.constant 0 : i32
    %c0_i32_0 = arith.constant 0 : i32
    %c0_i32_1 = arith.constant 0 : i32
    return %c0_i32, %c0_i32_0 : i32, i32
  }
  func.func @transform_14(%arg0: i32) -> (i32, i32) {
    %c0_i32 = arith.constant 0 : i32
    %c0_i32_0 = arith.constant 0 : i32
    return %c0_i32, %arg0 : i32, i32
  }
}

</mosaic_0001>

<llo_original>
// kernel: tile.9
$region0: #{tile.9}
  %s0 = inlined_call_operand.vmem [shape: f32[16,8,16], index: 0, kind: input, shape index: {}]
  %s1 = inlined_call_operand.vmem [shape: f32[16,128], index: 1, kind: output, shape index: {}]
  %v2 = vld [vmem:[%s0] ss:$8 sm:$0xf]
  %v3 = vld [vmem:[%s0] ss:$8 sm:$0xf0]
  %vm4 = vcmask 1047556
  %v5 = vsel %vm4, %v3, %v2
  %vm6 = vcmask 130048
  %7 = vst.msk [vmem:[%s1] sm:$0xff] %vm6, %v5
  %s8 = scalar_lea.vmem %s0, 64
  %v9 = vld [vmem:[%s8] ss:$8 sm:$0xf]
  %s10 = scalar_lea.vmem %s0, 64
  %v11 = vld [vmem:[%s10] ss:$8 sm:$0xf0]
  %vm12 = vcmask 1047556
  %v13 = vsel %vm12, %v11, %v9
  %vm14 = vcmask 130048
  %s15 = scalar_lea.vmem %s1, 8
  %16 = vst.msk [vmem:[%s15] sm:$0xff] %vm14, %v13
  %s17 = scalar_lea.vmem %s0, 7
  %v18 = vld [vmem:[%s17] ss:$8 sm:$0xf]
  %s19 = scalar_lea.vmem %s0, 7
  %v20 = vld [vmem:[%s19] ss:$8 sm:$0xf0]
  %vm21 = vcmask 1047556
  %v22 = vsel %vm21, %v20, %v18
  %23 = vrot.lane.b32.xlu0 %v22, 112
  %v24 = vpop.permute.xlu0 %23
  %vm25 = vcmask 1048448
  %26 = vst.msk [vmem:[%s1] sm:$0xff] %vm25, %v24
  %s27 = scalar_lea.vmem %s0, 71
  %v28 = vld [vmem:[%s27] ss:$8 sm:$0xf]
  %s29 = scalar_lea.vmem %s0, 71
  %v30 = vld [vmem:[%s29] ss:$8 sm:$0xf0]
  %vm31 = vcmask 1047556
  %v32 = vsel %vm31, %v30, %v28
  %33 = vrot.lane.b32.xlu0 %v32, 112
  %v34 = vpop.permute.xlu0 %33
  %vm35 = vcmask 1048448
  %s36 = scalar_lea.vmem %s1, 8
  %37 = vst.msk [vmem:[%s36] sm:$0xff] %vm35, %v34
  %s38 = scalar_lea.vmem %s0, 6
  %v39 = vld [vmem:[%s38] ss:$8 sm:$0xf]
  %s40 = scalar_lea.vmem %s0, 6
  %v41 = vld [vmem:[%s40] ss:$8 sm:$0xf0]
  %vm42 = vcmask 1047556
  %v43 = vsel %vm42, %v41, %v39
  %44 = vrot.lane.b32.xlu0 %v43, 96
  %v45 = vpop.permute.xlu0 %44
  %vm46 = vcmask 917248
  %47 = vst.msk [vmem:[%s1] sm:$0xff] %vm46, %v45
  %s48 = scalar_lea.vmem %s0, 70
  %v49 = vld [vmem:[%s48] ss:$8 sm:$0xf]
  %s50 = scalar_lea.vmem %s0, 70
  %v51 = vld [vmem:[%s50] ss:$8 sm:$0xf0]
  %vm52 = vcmask 1047556
  %v53 = vsel %vm52, %v51, %v49
  %54 = vrot.lane.b32.xlu0 %v53, 96
  %v55 = vpop.permute.xlu0 %54
  %vm56 = vcmask 917248
  %s57 = scalar_lea.vmem %s1, 8
  %58 = vst.msk [vmem:[%s57] sm:$0xff] %vm56, %v55
  %s59 = scalar_lea.vmem %s0, 5
  %v60 = vld [vmem:[%s59] ss:$8 sm:$0xf]
  %s61 = scalar_lea.vmem %s0, 5
  %v62 = vld [vmem:[%s61] ss:$8 sm:$0xf0]
  %vm63 = vcmask 1047556
  %v64 = vsel %vm63, %v62, %v60
  %65 = vrot.lane.b32.xlu0 %v64, 80
  %v66 = vpop.permute.xlu0 %65
  %vm67 = vcmask 786048
  %68 = vst.msk [vmem:[%s1] sm:$0xff] %vm67, %v66
  %s69 = scalar_lea.vmem %s0, 69
  %v70 = vld [vmem:[%s69] ss:$8 sm:$0xf]
  %s71 = scalar_lea.vmem %s0, 69
  %v72 = vld [vmem:[%s71] ss:$8 sm:$0xf0]
  %vm73 = vcmask 1047556
  %v74 = vsel %vm73, %v72, %v70
  %75 = vrot.lane.b32.xlu0 %v74, 80
  %v76 = vpop.permute.xlu0 %75
  %vm77 = vcmask 786048
  %s78 = scalar_lea.vmem %s1, 8
  %79 = vst.msk [vmem:[%s78] sm:$0xff] %vm77, %v76
  %s80 = scalar_lea.vmem %s0, 4
  %v81 = vld [vmem:[%s80] ss:$8 sm:$0xf]
  %s82 = scalar_lea.vmem %s0, 4
  %v83 = vld [vmem:[%s82] ss:$8 sm:$0xf0]
  %vm84 = vcmask 1047556
  %v85 = vsel %vm84, %v83, %v81
  %86 = vrot.lane.b32.xlu0 %v85, 64
  %v87 = vpop.permute.xlu0 %86
  %vm88 = vcmask 654848
  %89 = vst.msk [vmem:[%s1] sm:$0xff] %vm88, %v87
  %s90 = scalar_lea.vmem %s0, 68
  %v91 = vld [vmem:[%s90] ss:$8 sm:$0xf]
  %s92 = scalar_lea.vmem %s0, 68
  %v93 = vld [vmem:[%s92] ss:$8 sm:$0xf0]
  %vm94 = vcmask 1047556
  %v95 = vsel %vm94, %v93, %v91
  %96 = vrot.lane.b32.xlu0 %v95, 64
  %v97 = vpop.permute.xlu0 %96
  %vm98 = vcmask 654848
  %s99 = scalar_lea.vmem %s1, 8
  %100 = vst.msk [vmem:[%s99] sm:$0xff] %vm98, %v97
  %s101 = scalar_lea.vmem %s0, 3
  %v102 = vld [vmem:[%s101] ss:$8 sm:$0xf]
  %s103 = scalar_lea.vmem %s0, 3
  %v104 = vld [vmem:[%s103] ss:$8 sm:$0xf0]
  %vm105 = vcmask 1047556
  %v106 = vsel %vm105, %v104, %v102
  %107 = vrot.lane.b32.xlu0 %v106, 48
  %v108 = vpop.permute.xlu0 %107
  %vm109 = vcmask 523648
  %110 = vst.msk [vmem:[%s1] sm:$0xff] %vm109, %v108
  %s111 = scalar_lea.vmem %s0, 67
  %v112 = vld [vmem:[%s111] ss:$8 sm:$0xf]
  %s113 = scalar_lea.vmem %s0, 67
  %v114 = vld [vmem:[%s113] ss:$8 sm:$0xf0]
  %vm115 = vcmask 1047556
  %v116 = vsel %vm115, %v114, %v112
  %117 = vrot.lane.b32.xlu0 %v116, 48
  %v118 = vpop.permute.xlu0 %117
  %vm119 = vcmask 523648
  %s120 = scalar_lea.vmem %s1, 8
  %121 = vst.msk [vmem:[%s120] sm:$0xff] %vm119, %v118
  %s122 = scalar_lea.vmem %s0, 2
  %v123 = vld [vmem:[%s122] ss:$8 sm:$0xf]
  %s124 = scalar_lea.vmem %s0, 2
  %v125 = vld [vmem:[%s124] ss:$8 sm:$0xf0]
  %vm126 = vcmask 1047556
  %v127 = vsel %vm126, %v125, %v123
  %128 = vrot.lane.b32.xlu0 %v127, 32
  %v129 = vpop.permute.xlu0 %128
  %vm130 = vcmask 392448
  %131 = vst.msk [vmem:[%s1] sm:$0xff] %vm130, %v129
  %s132 = scalar_lea.vmem %s0, 66
  %v133 = vld [vmem:[%s132] ss:$8 sm:$0xf]
  %s134 = scalar_lea.vmem %s0, 66
  %v135 = vld [vmem:[%s134] ss:$8 sm:$0xf0]
  %vm136 = vcmask 1047556
  %v137 = vsel %vm136, %v135, %v133
  %138 = vrot.lane.b32.xlu0 %v137, 32
  %v139 = vpop.permute.xlu0 %138
  %vm140 = vcmask 392448
  %s141 = scalar_lea.vmem %s1, 8
  %142 = vst.msk [vmem:[%s141] sm:$0xff] %vm140, %v139
  %s143 = scalar_lea.vmem %s0, 1
  %v144 = vld [vmem:[%s143] ss:$8 sm:$0xf]
  %s145 = scalar_lea.vmem %s0, 1
  %v146 = vld [vmem:[%s145] ss:$8 sm:$0xf0]
  %vm147 = vcmask 1047556
  %v148 = vsel %vm147, %v146, %v144
  %149 = vrot.lane.b32.xlu0 %v148, 16
  %v150 = vpop.permute.xlu0 %149
  %vm151 = vcmask 261248
  %152 = vst.msk [vmem:[%s1] sm:$0xff] %vm151, %v150
  %s153 = scalar_lea.vmem %s0, 65
  %v154 = vld [vmem:[%s153] ss:$8 sm:$0xf]
  %s155 = scalar_lea.vmem %s0, 65
  %v156 = vld [vmem:[%s155] ss:$8 sm:$0xf0]
  %vm157 = vcmask 1047556
  %v158 = vsel %vm157, %v156, %v154
  %159 = vrot.lane.b32.xlu0 %v158, 16
  %v160 = vpop.permute.xlu0 %159
  %vm161 = vcmask 261248
  %s162 = scalar_lea.vmem %s1, 8
  %163 = vst.msk [vmem:[%s162] sm:$0xff] %vm161, %v160

// kernel: s4decoder_forward.5
$region0: #{s4decoder_forward.5}
  #allocation0 [shape = 'u32[]', space=smem, size = 0x4, offset = 0x4, fixed_abs, tag = 'smem constant byte address 0x4 - core index']
  #allocation1 [shape = 'u32[144,128]{1,0:T(1,128)}', space=vmem, size = 0x12000, scoped, tag = 'internal scratch']
  %s0 = inlined_call_operand.vmem [shape: f32[2,128], index: 0, kind: input, shape index: {}]
  %s1 = inlined_call_operand.vmem [shape: f32[16,128], index: 1, kind: input, shape index: {}]
  %s2 = inlined_call_operand.vmem [shape: f32[16,1], index: 2, kind: input, shape index: {}]
  %s3 = inlined_call_operand.vmem [shape: f32[16,1], index: 3, kind: input, shape index: {}]
  %s4 = inlined_call_operand.vmem [shape: f32[16,1], index: 4, kind: input, shape index: {}]
  %s5 = inlined_call_operand.vmem [shape: f32[2,16,128], index: 5, kind: output, shape index: {0}]
  %s6 = inlined_call_operand.vmem [shape: bf16[2,16,128], index: 6, kind: output, shape index: {1}]
  %7 = xla_tuple %s5, %s6
  %s8 = sld [smem:[#allocation0]]
  $region38: #{s4decoder_forward.5} parent=0
    _
  %s10 = ssub.s32 1, %s8
  %s11 = scalar_select 0, %s10, %s8
  // Predicated region
  $region2: #{s4decoder_forward.5} parent=0 // pred_check
    _
  $region3: #{s4decoder_forward.5} parent=0 // pred_check_branch
    %13 = sbr.rel (0) target = $region5
  $region4: #{s4decoder_forward.5} parent=0 // pred_region
    _
  $region5: #{s4decoder_forward.5} parent=0 // pred_fallthru
    _
  // Predicated region
  $region6: #{s4decoder_forward.5} parent=0 // pred_check
    _
  $region7: #{s4decoder_forward.5} parent=0 // pred_check_branch
    %15 = sbr.rel (0) target = $region9
  $region8: #{s4decoder_forward.5} parent=0 // pred_region
    _
  $region9: #{s4decoder_forward.5} parent=0 // pred_fallthru
    _
  // Predicated region
  $region10: #{s4decoder_forward.5} parent=0 // pred_check
    _
  $region11: #{s4decoder_forward.5} parent=0 // pred_check_branch
    %17 = sbr.rel (0) target = $region13
  $region12: #{s4decoder_forward.5} parent=0 // pred_region
    _
  $region13: #{s4decoder_forward.5} parent=0 // pred_fallthru
    _
  // Predicated region
  $region14: #{s4decoder_forward.5} parent=0 // pred_check
    _
  $region15: #{s4decoder_forward.5} parent=0 // pred_check_branch
    %19 = sbr.rel (0) target = $region17
  $region16: #{s4decoder_forward.5} parent=0 // pred_region
    _
  $region17: #{s4decoder_forward.5} parent=0 // pred_fallthru
    _
  // Predicated region
  $region18: #{s4decoder_forward.5} parent=0 // pred_check
    _
  $region19: #{s4decoder_forward.5} parent=0 // pred_check_branch
    %21 = sbr.rel (0) target = $region21
  $region20: #{s4decoder_forward.5} parent=0 // pred_region
    _
  $region21: #{s4decoder_forward.5} parent=0 // pred_fallthru
    _
  %v22 = vld [vmem:[%s0] sm:$0x3]
  %v25 = vunpack.c.l.s4 1966171168
  %v26 = vunpack.c.0.s8 %v25
  %v27 = vlaneseq
  %v28 = vshrl.u32 %v27, 7
  %v29 = vsub.s32 %v26, %v28
  %v30 = vrot.slane %v22, %v29
  %v31 = vcombine.high %v30, %v30
  %v33 = vunpack.c.l.s4 1966171168
  %v34 = vunpack.c.0.s8 %v33
  %v35 = vlaneseq
  %v36 = vshrl.u32 %v35, 7
  %v37 = vsub.s32 %v34, %v36
  %v38 = vrot.slane %v30, %v37
  %v40 = vunpack.c.l.s4 1966171168
  %v41 = vunpack.c.0.s8 %v40
  %v42 = vlaneseq
  %v43 = vshrl.u32 %v42, 7
  %v44 = vsub.s32 %v41, %v43
  %v45 = vrot.slane %v31, %v44
  %v46 = vld [vmem:[%s1] sm:$0xff]
  %v47 = vld [vmem:[%s1 + $0x8] sm:$0xff]
  %v48 = vlaneseq
  %v49 = vshrl.u32 %v48, 7
  %v50 = vsub.s32 0, %v49
  %v51 = vrot.slane %v38, %v50
  %v52 = vlaneseq
  %v53 = vshrl.u32 %v52, 7
  %v54 = vsub.s32 0, %v53
  %v55 = vrot.slane %v45, %v54
  %v58 = vmul.f32 %v51, %v46
  %v59 = vmul.f32 %v51, %v47
  %v60 = vmul.f32 %v55, %v46
  %v61 = vmul.f32 %v55, %v47
  %v62 = vld [vmem:[%s2] sm:$0xff]
  %v63 = vld [vmem:[%s2 + $0x8] sm:$0xff]
  %65 = vset.pattern.permute.xlu0 0
  %66 = vperm.xlu0 %65, %v62
  %v67 = vpop.permute.xlu0 %66
  %70 = vset.pattern.permute.xlu0 0
  %71 = vperm.xlu0 %70, %v63
  %v72 = vpop.permute.xlu0 %71
  %v74 = vadd.f32 %v58, %v67
  %v75 = vadd.f32 %v59, %v72
  %v76 = vadd.f32 %v60, %v67
  %v77 = vadd.f32 %v61, %v72
  %v78 = vadd.f32 %v74, %v75
  %v79 = vrot.slane %v78, 4
  %v80 = vadd.f32 %v78, %v79
  %v81 = vrot.slane %v80, 2
  %v82 = vadd.f32 %v80, %v81
  %v83 = vrot.slane %v82, 1
  %v84 = vadd.f32 %v82, %v83
  %v85 = vadd.f32 %v76, %v77
  %v86 = vrot.slane %v85, 4
  %v87 = vadd.f32 %v85, %v86
  %v88 = vrot.slane %v87, 2
  %v89 = vadd.f32 %v87, %v88
  %v90 = vrot.slane %v89, 1
  %v91 = vadd.f32 %v89, %v90
  %v92 = vrcp.pop 16.0
  %v93 = vmul.f32 %v84, %v92
  %v94 = vmul.f32 %v91, %v92
  %v95 = vsub.f32 %v74, %v93
  %v96 = vsub.f32 %v75, %v93
  %v97 = vsub.f32 %v76, %v94
  %v98 = vsub.f32 %v77, %v94
  %v99 = vmul.f32 %v95, %v95
  %v100 = vmul.f32 %v96, %v96
  %v101 = vmul.f32 %v97, %v97
  %v102 = vmul.f32 %v98, %v98
  %v103 = vadd.f32 %v99, %v100
  %v104 = vrot.slane %v103, 4
  %v105 = vadd.f32 %v103, %v104
  %v106 = vrot.slane %v105, 2
  %v107 = vadd.f32 %v105, %v106
  %v108 = vrot.slane %v107, 1
  %v109 = vadd.f32 %v107, %v108
  %v110 = vadd.f32 %v101, %v102
  %v111 = vrot.slane %v110, 4
  %v112 = vadd.f32 %v110, %v111
  %v113 = vrot.slane %v112, 2
  %v114 = vadd.f32 %v112, %v113
  %v115 = vrot.slane %v114, 1
  %v116 = vadd.f32 %v114, %v115
  %v117 = vmul.f32 %v109, %v92
  %v118 = vmul.f32 %v116, %v92
  %v119 = vadd.f32 %v117, 1e-05
  %v120 = vadd.f32 %v118, 1e-05
  %v121 = vrsqrt.pop %v119
  %v122 = vrsqrt.pop %v120
  %v123 = vmul.f32 %v95, %v121
  %v124 = vmul.f32 %v96, %v121
  %v125 = vmul.f32 %v97, %v122
  %v126 = vmul.f32 %v98, %v122
  %v127 = vld [vmem:[%s3] sm:$0xff]
  %v128 = vld [vmem:[%s3 + $0x8] sm:$0xff]
  %130 = vset.pattern.permute.xlu0 0
  %131 = vperm.xlu0 %130, %v127
  %v132 = vpop.permute.xlu0 %131
  %135 = vset.pattern.permute.xlu0 0
  %136 = vperm.xlu0 %135, %v128
  %v137 = vpop.permute.xlu0 %136
  %v139 = vmul.f32 %v123, %v132
  %v140 = vmul.f32 %v124, %v137
  %v141 = vmul.f32 %v125, %v132
  %v142 = vmul.f32 %v126, %v137
  %v143 = vld [vmem:[%s4] sm:$0xff]
  %v144 = vld [vmem:[%s4 + $0x8] sm:$0xff]
  %146 = vset.pattern.permute.xlu0 0
  %147 = vperm.xlu0 %146, %v143
  %v148 = vpop.permute.xlu0 %147
  %151 = vset.pattern.permute.xlu0 0
  %152 = vperm.xlu0 %151, %v144
  %v153 = vpop.permute.xlu0 %152
  %v155 = vadd.f32 %v139, %v148
  %v156 = vadd.f32 %v140, %v153
  %v157 = vadd.f32 %v141, %v148
  %v158 = vadd.f32 %v142, %v153
  %159 = vst [vmem:[%s5] sm:$0xff] %v74
  %160 = vst [vmem:[%s5 + $0x8] sm:$0xff] %v75
  %161 = vst [vmem:[%s5 + $0x10] sm:$0xff] %v76
  %162 = vst [vmem:[%s5 + $0x18] sm:$0xff] %v77
  %v163 = vpack.c.bf16 %v156, %v155
  %v164 = vpack.c.bf16 %v158, %v157
  %v167 = vunpack.c.l.b16 %v163
  %v168 = vunpack.c.h.b16 %v163
  %v169 = vunpack.c.l.b16 %v164
  %v170 = vunpack.c.h.b16 %v164
  %v171 = vpack.c.b16 %v167, %v167
  %v172 = vpack.c.b16 %v168, %v168
  %v173 = vpack.c.b16 %v169, %v169
  %v174 = vpack.c.b16 %v170, %v170
  %179 = vst [vmem:[%s6] sm:$0xf] %v171
  %180 = vst [vmem:[%s6 + $0x4] sm:$0xf] %v172
  %181 = vst [vmem:[%s6 + $0x8] sm:$0xf] %v173
  %182 = vst [vmem:[%s6 + $0xc] sm:$0xf] %v174
  // Predicated region
  $region22: #{s4decoder_forward.5} parent=0 // pred_check
    _
  $region23: #{s4decoder_forward.5} parent=0 // pred_check_branch
    %184 = sbr.rel (0) target = $region25
  $region24: #{s4decoder_forward.5} parent=0 // pred_region
    _
  $region25: #{s4decoder_forward.5} parent=0 // pred_fallthru
    _
  // Predicated region
  $region26: #{s4decoder_forward.5} parent=0 // pred_check
    _
  $region27: #{s4decoder_forward.5} parent=0 // pred_check_branch
    %186 = sbr.rel (0) target = $region29
  $region28: #{s4decoder_forward.5} parent=0 // pred_region
    _
  $region29: #{s4decoder_forward.5} parent=0 // pred_fallthru
    _
  // Predicated region
  $region30: #{s4decoder_forward.5} parent=0 // pred_check
    _
  $region31: #{s4decoder_forward.5} parent=0 // pred_check_branch
    %188 = sbr.rel (0) target = $region33
  $region32: #{s4decoder_forward.5} parent=0 // pred_region
    _
  $region33: #{s4decoder_forward.5} parent=0 // pred_fallthru
    _
  // Predicated region
  $region34: #{s4decoder_forward.5} parent=0 // pred_check
    _
  $region35: #{s4decoder_forward.5} parent=0 // pred_check_branch
    %190 = sbr.rel (0) target = $region37
  $region36: #{s4decoder_forward.5} parent=0 // pred_region
    _
  $region37: #{s4decoder_forward.5} parent=0 // pred_fallthru
    _

// kernel: s4decoder_forward.7
$region0: #{s4decoder_forward.7}
  #allocation0 [shape = 'u32[]', space=smem, size = 0x4, offset = 0x4, fixed_abs, tag = 'smem constant byte address 0x4 - core index']
  #allocation1 [shape = 'u32[144,128]{1,0:T(1,128)}', space=vmem, size = 0x12000, scoped, tag = 'internal scratch']
  %s0 = inlined_call_operand.vmem [shape: bf16[2,16,128], index: 0, kind: input, shape index: {}]
  %s1 = inlined_call_operand.vmem [shape: bf16[2,16,128], index: 1, kind: input, shape index: {}]
  %s2 = inlined_call_operand.vmem [shape: f32[2,16,128], index: 2, kind: input, shape index: {}]
  %s3 = inlined_call_operand.vmem [shape: f32[16,1], index: 3, kind: input, shape index: {}]
  %s4 = inlined_call_operand.vmem [shape: bf16[16,16], index: 4, kind: input, shape index: {}]
  %s5 = inlined_call_operand.vmem [shape: f32[16,1], index: 5, kind: input, shape index: {}]
  %s6 = inlined_call_operand.vmem [shape: f32[16,1], index: 6, kind: input, shape index: {}]
  %s7 = inlined_call_operand.vmem [shape: f32[16,1], index: 7, kind: input, shape index: {}]
  %s8 = inlined_call_operand.vmem [shape: bf16[32,16], index: 8, kind: input, shape index: {}]
  %s9 = inlined_call_operand.vmem [shape: f32[32,1], index: 9, kind: input, shape index: {}]
  %s10 = inlined_call_operand.vmem [shape: bf16[16,32], index: 10, kind: input, shape index: {}]
  %s11 = inlined_call_operand.vmem [shape: f32[16,1], index: 11, kind: input, shape index: {}]
  %s12 = inlined_call_operand.vmem [shape: f32[16,1], index: 12, kind: input, shape index: {}]
  %s13 = inlined_call_operand.vmem [shape: f32[16,1], index: 13, kind: input, shape index: {}]
  %s14 = inlined_call_operand.vmem [shape: f32[2,16,128], index: 14, kind: output, shape index: {0}]
  %s15 = inlined_call_operand.vmem [shape: bf16[2,16,128], index: 15, kind: output, shape index: {1}]
  %16 = xla_tuple %s14, %s15
  %s17 = sld [smem:[#allocation0]]
  $region81: #{s4decoder_forward.7} parent=0
    _
  %s19 = ssub.s32 1, %s17
  %s20 = scalar_select 0, %s19, %s17
  // Predicated region
  $region2: #{s4decoder_forward.7} parent=0 // pred_check
    _
  $region3: #{s4decoder_forward.7} parent=0 // pred_check_branch
    %22 = sbr.rel (0) target = $region5
  $region4: #{s4decoder_forward.7} parent=0 // pred_region
    _
  $region5: #{s4decoder_forward.7} parent=0 // pred_fallthru
    _
  // Predicated region
  $region6: #{s4decoder_forward.7} parent=0 // pred_check
    _
  $region7: #{s4decoder_forward.7} parent=0 // pred_check_branch
    %24 = sbr.rel (0) target = $region9
  $region8: #{s4decoder_forward.7} parent=0 // pred_region
    _
  $region9: #{s4decoder_forward.7} parent=0 // pred_fallthru
    _
  // Predicated region
  $region10: #{s4decoder_forward.7} parent=0 // pred_check
    _
  $region11: #{s4decoder_forward.7} parent=0 // pred_check_branch
    %26 = sbr.rel (0) target = $region13
  $region12: #{s4decoder_forward.7} parent=0 // pred_region
    _
  $region13: #{s4decoder_forward.7} parent=0 // pred_fallthru
    _
  // Predicated region
  $region14: #{s4decoder_forward.7} parent=0 // pred_check
    _
  $region15: #{s4decoder_forward.7} parent=0 // pred_check_branch
    %28 = sbr.rel (0) target = $region17
  $region16: #{s4decoder_forward.7} parent=0 // pred_region
    _
  $region17: #{s4decoder_forward.7} parent=0 // pred_fallthru
    _
  // Predicated region
  $region18: #{s4decoder_forward.7} parent=0 // pred_check
    _
  $region19: #{s4decoder_forward.7} parent=0 // pred_check_branch
    %30 = sbr.rel (0) target = $region21
  $region20: #{s4decoder_forward.7} parent=0 // pred_region
    _
  $region21: #{s4decoder_forward.7} parent=0 // pred_fallthru
    _
  // Predicated region
  $region22: #{s4decoder_forward.7} parent=0 // pred_check
    _
  $region23: #{s4decoder_forward.7} parent=0 // pred_check_branch
    %32 = sbr.rel (0) target = $region25
  $region24: #{s4decoder_forward.7} parent=0 // pred_region
    _
  $region25: #{s4decoder_forward.7} parent=0 // pred_fallthru
    _
  // Predicated region
  $region26: #{s4decoder_forward.7} parent=0 // pred_check
    _
  $region27: #{s4decoder_forward.7} parent=0 // pred_check_branch
    %34 = sbr.rel (0) target = $region29
  $region28: #{s4decoder_forward.7} parent=0 // pred_region
    _
  $region29: #{s4decoder_forward.7} parent=0 // pred_fallthru
    _
  // Predicated region
  $region30: #{s4decoder_forward.7} parent=0 // pred_check
    _
  $region31: #{s4decoder_forward.7} parent=0 // pred_check_branch
    %36 = sbr.rel (0) target = $region33
  $region32: #{s4decoder_forward.7} parent=0 // pred_region
    _
  $region33: #{s4decoder_forward.7} parent=0 // pred_fallthru
    _
  // Predicated region
  $region34: #{s4decoder_forward.7} parent=0 // pred_check
    _
  $region35: #{s4decoder_forward.7} parent=0 // pred_check_branch
    %38 = sbr.rel (0) target = $region37
  $region36: #{s4decoder_forward.7} parent=0 // pred_region
    _
  $region37: #{s4decoder_forward.7} parent=0 // pred_fallthru
    _
  // Predicated region
  $region38: #{s4decoder_forward.7} parent=0 // pred_check
    _
  $region39: #{s4decoder_forward.7} parent=0 // pred_check_branch
    %40 = sbr.rel (0) target = $region41
  $region40: #{s4decoder_forward.7} parent=0 // pred_region
    _
  $region41: #{s4decoder_forward.7} parent=0 // pred_fallthru
    _
  // Predicated region
  $region42: #{s4decoder_forward.7} parent=0 // pred_check
    _
  $region43: #{s4decoder_forward.7} parent=0 // pred_check_branch
    %42 = sbr.rel (0) target = $region45
  $region44: #{s4decoder_forward.7} parent=0 // pred_region
    _
  $region45: #{s4decoder_forward.7} parent=0 // pred_fallthru
    _
  // Predicated region
  $region46: #{s4decoder_forward.7} parent=0 // pred_check
    _
  $region47: #{s4decoder_forward.7} parent=0 // pred_check_branch
    %44 = sbr.rel (0) target = $region49
  $region48: #{s4decoder_forward.7} parent=0 // pred_region
    _
  $region49: #{s4decoder_forward.7} parent=0 // pred_fallthru
    _
  // Predicated region
  $region50: #{s4decoder_forward.7} parent=0 // pred_check
    _
  $region51: #{s4decoder_forward.7} parent=0 // pred_check_branch
    %46 = sbr.rel (0) target = $region53
  $region52: #{s4decoder_forward.7} parent=0 // pred_region
    _
  $region53: #{s4decoder_forward.7} parent=0 // pred_fallthru
    _
  // Predicated region
  $region54: #{s4decoder_forward.7} parent=0 // pred_check
    _
  $region55: #{s4decoder_forward.7} parent=0 // pred_check_branch
    %48 = sbr.rel (0) target = $region57
  $region56: #{s4decoder_forward.7} parent=0 // pred_region
    _
  $region57: #{s4decoder_forward.7} parent=0 // pred_fallthru
    _
  %v50 = vld [vmem:[%s3] sm:$0xff]
  %v51 = vld [vmem:[%s3 + $0x8] sm:$0xff]
  %v52 = vld [vmem:[%s4] sm:$0xf]
  %v53 = vld [vmem:[%s4 + $0x4] sm:$0xf]
  %v54 = vld [vmem:[%s5] sm:$0xff]
  %v55 = vld [vmem:[%s5 + $0x8] sm:$0xff]
  %v56 = vld [vmem:[%s6] sm:$0xff]
  %v57 = vld [vmem:[%s6 + $0x8] sm:$0xff]
  %v58 = vld [vmem:[%s7] sm:$0xff]
  %v59 = vld [vmem:[%s7 + $0x8] sm:$0xff]
  %v60 = vld [vmem:[%s8] sm:$0xf]
  %v61 = vld [vmem:[%s8 + $0x4] sm:$0xf]
  %v62 = vld [vmem:[%s8 + $0x8] sm:$0xf]
  %v63 = vld [vmem:[%s8 + $0xc] sm:$0xf]
  %v64 = vld [vmem:[%s9] sm:$0xff]
  %v65 = vld [vmem:[%s9 + $0x8] sm:$0xff]
  %v66 = vld [vmem:[%s9 + $0x10] sm:$0xff]
  %v67 = vld [vmem:[%s9 + $0x18] sm:$0xff]
  %v68 = vld [vmem:[%s10] sm:$0xf]
  %v69 = vld [vmem:[%s10 + $0x4] sm:$0xf]
  %v70 = vld [vmem:[%s11] sm:$0xff]
  %v71 = vld [vmem:[%s11 + $0x8] sm:$0xff]
  %v72 = vld [vmem:[%s12] sm:$0xff]
  %v73 = vld [vmem:[%s12 + $0x8] sm:$0xff]
  %v74 = vld [vmem:[%s13] sm:$0xff]
  %v75 = vld [vmem:[%s13 + $0x8] sm:$0xff]
  loop: start=0, step=1, limit=2
  $region58: #{s4decoder_forward.7} parent=0 // loop_pre_header
    _
  $region59: #{s4decoder_forward.7} parent=0 // loop_header
    %s77 = sphi 0, %s81
    %p78 = scmp.ge.s32.totalorder %s77, 2
  $region60: #{s4decoder_forward.7} parent=0 // loop_header_branch
    %80 = sbr.rel (%p78) target = $region64
  $region61: #{s4decoder_forward.7} parent=0 // loop_body
    %s82 = smul.u32 %s77, 2
    %s83 = smul.addr %s82, 4
    %s84 = scalar_lea.vmem %s0, %s83
    %v85 = vld [vmem:[%s84] sm:$0xf]
    %v86 = vld [vmem:[%s84 + $0x4] sm:$0xf]
    %v87 = vunpack.c.l.bf16 %v85
    %v88 = vunpack.c.l.bf16 %v86
    %s89 = smul.addr %s82, 4
    %s90 = scalar_lea.vmem %s1, %s89
    %v91 = vld [vmem:[%s90] sm:$0xf]
    %v92 = vld [vmem:[%s90 + $0x4] sm:$0xf]
    %v93 = vunpack.c.l.bf16 %v91
    %v94 = vunpack.c.l.bf16 %v92
    %s95 = smul.u32 %s77, 16
    %s96 = scalar_lea.vmem %s2, %s95
    %v97 = vld [vmem:[%s96] sm:$0xff]
    %v98 = vld [vmem:[%s96 + $0x8] sm:$0xff]
    %100 = vset.pattern.permute.xlu0 0
    %101 = vperm.xlu0 %100, %v50
    %v102 = vpop.permute.xlu0 %101
    %105 = vset.pattern.permute.xlu0 0
    %106 = vperm.xlu0 %105, %v51
    %v107 = vpop.permute.xlu0 %106
    %v109 = vmul.f32 %v93, %v102
    %v110 = vmul.f32 %v94, %v107
    %v111 = vadd.f32 %v87, %v109
    %v112 = vadd.f32 %v88, %v110
    %v113 = vmul.f32 %v111, %v111
    %v114 = vmul.f32 %v112, %v112
    %v115 = vmul.f32 %v111, %v113
    %v116 = vmul.f32 %v112, %v114
    %v117 = vmul.f32 %v115, 0.044715
    %v118 = vmul.f32 %v116, 0.044715
    %v119 = vadd.f32 %v111, %v117
    %v120 = vadd.f32 %v112, %v118
    %v121 = vmul.f32 %v119, 0.7978846
    %v122 = vmul.f32 %v120, 0.7978846
    %v123 = vtanh.pop %v121
    %v124 = vtanh.pop %v122
    %v125 = vadd.f32 %v123, 1.0
    %v126 = vadd.f32 %v124, 1.0
    %v127 = vmul.f32 %v125, 0.5
    %v128 = vmul.f32 %v126, 0.5
    %v129 = vmul.f32 %v111, %v127
    %v130 = vmul.f32 %v112, %v128
    %v131 = vpack.c.bf16 %v130, %v129
    %133 = vset.pattern.permute.xlu0 0
    %134 = vperm.xlu0 %133, %v54
    %v135 = vpop.permute.xlu0 %134
    %138 = vset.pattern.permute.xlu0 0
    %139 = vperm.xlu0 %138, %v55
    %v140 = vpop.permute.xlu0 %139
    %v144 = vunpack.c.l.b16 %v52
    %v145 = vunpack.c.l.b16 %v53
    %v146 = vpack.c.b16 %v145, %v144
    %vm147 = vcmask 130048
    %v149 = vsel %vm147, %v146, 0
    %151 = vmatprep.subr.bf16.mxu0 0
    %152 = vmatpush1.bf16.msra.mxu0 %v131
    %153 = vmatprep.subr.bf16.mxu0 0
    %154 = vmatpush1.bf16.msra.mxu0 0
    %155 = vmatprep.subr.bf16.mxu0 0
    %156 = vmatpush1.bf16.msra.mxu0 0
    %157 = vmatprep.subr.bf16.mxu0 0
    %158 = vmatpush1.bf16.msra.mxu0 0
    %159 = vmatprep.subr.bf16.mxu0 0
    %160 = vmatpush1.bf16.msra.mxu0 0
    %161 = vmatprep.subr.bf16.mxu0 0
    %162 = vmatpush1.bf16.msra.mxu0 0
    %163 = vmatprep.subr.bf16.mxu0 0
    %164 = vmatpush1.bf16.msra.mxu0 0
    %165 = vmatprep.subr.bf16.mxu0 0
    %166 = vmatpush1.bf16.msra.mxu0 0
    %167 = vmatprep.subr.bf16.mxu0 0
    %168 = vmatpush1.bf16.msra.mxu0 0
    %169 = vmatprep.subr.bf16.mxu0 0
    %170 = vmatpush1.bf16.msra.mxu0 0
    %171 = vmatprep.subr.bf16.mxu0 0
    %172 = vmatpush1.bf16.msra.mxu0 0
    %173 = vmatprep.subr.bf16.mxu0 0
    %174 = vmatpush1.bf16.msra.mxu0 0
    %175 = vmatprep.subr.bf16.mxu0 0
    %176 = vmatpush1.bf16.msra.mxu0 0
    %177 = vmatprep.subr.bf16.mxu0 0
    %178 = vmatpush1.bf16.msra.mxu0 0
    %179 = vmatprep.subr.bf16.mxu0 0
    %180 = vmatpush1.bf16.msra.mxu0 0
    %181 = vmatprep.subr.bf16.mxu0 0
    %182 = vmatpush1.bf16.msra.mxu0 0
    %183 = vmatprep.mubr.bf16.mxu0 0
    %184 = vmatmul.mubr.bf16.gmra.mrb[0].mxu0 %v149
    %v185 = vpop.f32.mrb[0].mxu0
    %v186 = vadd.f32 %v135, %v185
    %v187 = vpop.f32.mrb[0].mxu0
    %v188 = vpop.f32.mrb[0].mxu0
    %v189 = vadd.f32 %v140, %v188
    %v190 = vpop.f32.mrb[0].mxu0
    %191 = vdwg.mxu0
    %v192 = vadd.f32 %v97, %v186
    %v193 = vadd.f32 %v98, %v189
    %v194 = vadd.f32 %v192, %v193
    %v195 = vrot.slane %v194, 4
    %v196 = vadd.f32 %v194, %v195
    %v197 = vrot.slane %v196, 2
    %v198 = vadd.f32 %v196, %v197
    %v199 = vrot.slane %v198, 1
    %v200 = vadd.f32 %v198, %v199
    %v201 = vrcp.pop 16.0
    %v202 = vmul.f32 %v200, %v201
    %v203 = vsub.f32 %v192, %v202
    %v204 = vsub.f32 %v193, %v202
    %v205 = vmul.f32 %v203, %v203
    %v206 = vmul.f32 %v204, %v204
    %v207 = vadd.f32 %v205, %v206
    %v208 = vrot.slane %v207, 4
    %v209 = vadd.f32 %v207, %v208
    %v210 = vrot.slane %v209, 2
    %v211 = vadd.f32 %v209, %v210
    %v212 = vrot.slane %v211, 1
    %v213 = vadd.f32 %v211, %v212
    %v214 = vmul.f32 %v213, %v201
    %v215 = vadd.f32 %v214, 1e-05
    %v216 = vrsqrt.pop %v215
    %v217 = vmul.f32 %v203, %v216
    %v218 = vmul.f32 %v204, %v216
    %220 = vset.pattern.permute.xlu0 0
    %221 = vperm.xlu0 %220, %v56
    %v222 = vpop.permute.xlu0 %221
    %225 = vset.pattern.permute.xlu0 0
    %226 = vperm.xlu0 %225, %v57
    %v227 = vpop.permute.xlu0 %226
    %v229 = vmul.f32 %v217, %v222
    %v230 = vmul.f32 %v218, %v227
    %232 = vset.pattern.permute.xlu0 0
    %233 = vperm.xlu0 %232, %v58
    %v234 = vpop.permute.xlu0 %233
    %237 = vset.pattern.permute.xlu0 0
    %238 = vperm.xlu0 %237, %v59
    %v239 = vpop.permute.xlu0 %238
    %v241 = vadd.f32 %v229, %v234
    %v242 = vadd.f32 %v230, %v239
    %v243 = vpack.c.bf16 %v242, %v241
    %245 = vset.pattern.permute.xlu0 0
    %246 = vperm.xlu0 %245, %v64
    %v247 = vpop.permute.xlu0 %246
    %250 = vset.pattern.permute.xlu0 0
    %251 = vperm.xlu0 %250, %v65
    %v252 = vpop.permute.xlu0 %251
    %255 = vset.pattern.permute.xlu0 0
    %256 = vperm.xlu0 %255, %v66
    %v257 = vpop.permute.xlu0 %256
    %260 = vset.pattern.permute.xlu0 0
    %261 = vperm.xlu0 %260, %v67
    %v262 = vpop.permute.xlu0 %261
    %v268 = vunpack.c.l.b16 %v60
    %v269 = vunpack.c.l.b16 %v61
    %v270 = vunpack.c.l.b16 %v62
    %v271 = vunpack.c.l.b16 %v63
    %v272 = vpack.c.b16 %v269, %v268
    %v273 = vpack.c.b16 %v271, %v270
    %v275 = vsel %vm147, %v272, 0
    %v278 = vsel %vm147, %v273, 0
    %280 = vmatprep.subr.bf16.mxu0 0
    %281 = vmatpush1.bf16.msra.mxu0 %v243
    %282 = vmatprep.subr.bf16.mxu0 0
    %283 = vmatpush1.bf16.msra.mxu0 0
    %284 = vmatprep.subr.bf16.mxu0 0
    %285 = vmatpush1.bf16.msra.mxu0 0
    %286 = vmatprep.subr.bf16.mxu0 0
    %287 = vmatpush1.bf16.msra.mxu0 0
    %288 = vmatprep.subr.bf16.mxu0 0
    %289 = vmatpush1.bf16.msra.mxu0 0
    %290 = vmatprep.subr.bf16.mxu0 0
    %291 = vmatpush1.bf16.msra.mxu0 0
    %292 = vmatprep.subr.bf16.mxu0 0
    %293 = vmatpush1.bf16.msra.mxu0 0
    %294 = vmatprep.subr.bf16.mxu0 0
    %295 = vmatpush1.bf16.msra.mxu0 0
    %296 = vmatprep.subr.bf16.mxu0 0
    %297 = vmatpush1.bf16.msra.mxu0 0
    %298 = vmatprep.subr.bf16.mxu0 0
    %299 = vmatpush1.bf16.msra.mxu0 0
    %300 = vmatprep.subr.bf16.mxu0 0
    %301 = vmatpush1.bf16.msra.mxu0 0
    %302 = vmatprep.subr.bf16.mxu0 0
    %303 = vmatpush1.bf16.msra.mxu0 0
    %304 = vmatprep.subr.bf16.mxu0 0
    %305 = vmatpush1.bf16.msra.mxu0 0
    %306 = vmatprep.subr.bf16.mxu0 0
    %307 = vmatpush1.bf16.msra.mxu0 0
    %308 = vmatprep.subr.bf16.mxu0 0
    %309 = vmatpush1.bf16.msra.mxu0 0
    %310 = vmatprep.subr.bf16.mxu0 0
    %311 = vmatpush1.bf16.msra.mxu0 0
    %312 = vmatprep.mubr.bf16.mxu0 0
    %313 = vmatmul.mubr.bf16.gmra.mrb[0].mxu0 %v275
    %v314 = vpop.f32.mrb[0].mxu0
    %v315 = vadd.f32 %v247, %v314
    %v316 = vpop.f32.mrb[0].mxu0
    %v317 = vpop.f32.mrb[0].mxu0
    %v318 = vadd.f32 %v252, %v317
    %v319 = vpop.f32.mrb[0].mxu0
    %320 = vmatprep.mubr.bf16.mxu0 0
    %321 = vmatmul.mubr.bf16.gmra.mrb[0].mxu0 %v278
    %v322 = vpop.f32.mrb[0].mxu0
    %v323 = vadd.f32 %v257, %v322
    %v324 = vpop.f32.mrb[0].mxu0
    %v325 = vpop.f32.mrb[0].mxu0
    %v326 = vadd.f32 %v262, %v325
    %v327 = vpop.f32.mrb[0].mxu0
    %328 = vdwg.mxu0
    %v329 = vmul.f32 %v315, %v315
    %v330 = vmul.f32 %v318, %v318
    %v331 = vmul.f32 %v323, %v323
    %v332 = vmul.f32 %v326, %v326
    %v333 = vmul.f32 %v315, %v329
    %v334 = vmul.f32 %v318, %v330
    %v335 = vmul.f32 %v323, %v331
    %v336 = vmul.f32 %v326, %v332
    %v337 = vmul.f32 %v333, 0.044715
    %v338 = vmul.f32 %v334, 0.044715
    %v339 = vmul.f32 %v335, 0.044715
    %v340 = vmul.f32 %v336, 0.044715
    %v341 = vadd.f32 %v315, %v337
    %v342 = vadd.f32 %v318, %v338
    %v343 = vadd.f32 %v323, %v339
    %v344 = vadd.f32 %v326, %v340
    %v345 = vmul.f32 %v341, 0.7978846
    %v346 = vmul.f32 %v342, 0.7978846
    %v347 = vmul.f32 %v343, 0.7978846
    %v348 = vmul.f32 %v344, 0.7978846
    %v349 = vtanh.pop %v345
    %v350 = vtanh.pop %v346
    %v351 = vtanh.pop %v347
    %v352 = vtanh.pop %v348
    %v353 = vadd.f32 %v349, 1.0
    %v354 = vadd.f32 %v350, 1.0
    %v355 = vadd.f32 %v351, 1.0
    %v356 = vadd.f32 %v352, 1.0
    %v357 = vmul.f32 %v353, 0.5
    %v358 = vmul.f32 %v354, 0.5
    %v359 = vmul.f32 %v355, 0.5
    %v360 = vmul.f32 %v356, 0.5
    %v361 = vmul.f32 %v315, %v357
    %v362 = vmul.f32 %v318, %v358
    %v363 = vmul.f32 %v323, %v359
    %v364 = vmul.f32 %v326, %v360
    %v365 = vpack.c.bf16 %v362, %v361
    %v366 = vpack.c.bf16 %v364, %v363
    %368 = vset.pattern.permute.xlu0 0
    %369 = vperm.xlu0 %368, %v70
    %v370 = vpop.permute.xlu0 %369
    %373 = vset.pattern.permute.xlu0 0
    %374 = vperm.xlu0 %373, %v71
    %v375 = vpop.permute.xlu0 %374
    %v379 = vunpack.c.l.b16 %v68
    %v380 = vunpack.c.l.b16 %v69
    %v381 = vpack.c.b16 %v380, %v379
    %vm382 = vcmask 261120
    %v384 = vsel %vm382, %v381, 0
    %386 = vmatprep.subr.bf16.mxu0 0
    %387 = vmatpush1.bf16.msra.mxu0 %v365
    %388 = vmatprep.subr.bf16.mxu0 0
    %389 = vmatpush1.bf16.msra.mxu0 %v366
    %390 = vmatprep.subr.bf16.mxu0 0
    %391 = vmatpush1.bf16.msra.mxu0 0
    %392 = vmatprep.subr.bf16.mxu0 0
    %393 = vmatpush1.bf16.msra.mxu0 0
    %394 = vmatprep.subr.bf16.mxu0 0
    %395 = vmatpush1.bf16.msra.mxu0 0
    %396 = vmatprep.subr.bf16.mxu0 0
    %397 = vmatpush1.bf16.msra.mxu0 0
    %398 = vmatprep.subr.bf16.mxu0 0
    %399 = vmatpush1.bf16.msra.mxu0 0
    %400 = vmatprep.subr.bf16.mxu0 0
    %401 = vmatpush1.bf16.msra.mxu0 0
    %402 = vmatprep.subr.bf16.mxu0 0
    %403 = vmatpush1.bf16.msra.mxu0 0
    %404 = vmatprep.subr.bf16.mxu0 0
    %405 = vmatpush1.bf16.msra.mxu0 0
    %406 = vmatprep.subr.bf16.mxu0 0
    %407 = vmatpush1.bf16.msra.mxu0 0
    %408 = vmatprep.subr.bf16.mxu0 0
    %409 = vmatpush1.bf16.msra.mxu0 0
    %410 = vmatprep.subr.bf16.mxu0 0
    %411 = vmatpush1.bf16.msra.mxu0 0
    %412 = vmatprep.subr.bf16.mxu0 0
    %413 = vmatpush1.bf16.msra.mxu0 0
    %414 = vmatprep.subr.bf16.mxu0 0
    %415 = vmatpush1.bf16.msra.mxu0 0
    %416 = vmatprep.subr.bf16.mxu0 0
    %417 = vmatpush1.bf16.msra.mxu0 0
    %418 = vmatprep.mubr.bf16.mxu0 0
    %419 = vmatmul.mubr.bf16.gmra.mrb[0].mxu0 %v384
    %v420 = vpop.f32.mrb[0].mxu0
    %v421 = vadd.f32 %v370, %v420
    %v422 = vpop.f32.mrb[0].mxu0
    %v423 = vpop.f32.mrb[0].mxu0
    %v424 = vadd.f32 %v375, %v423
    %v425 = vpop.f32.mrb[0].mxu0
    %426 = vdwg.mxu0
    %v427 = vadd.f32 %v192, %v421
    %v428 = vadd.f32 %v193, %v424
    %s429 = scalar_lea.vmem %s14, %s95
    %430 = vst [vmem:[%s429] sm:$0xff] %v427
    %431 = vst [vmem:[%s429 + $0x8] sm:$0xff] %v428
    %v432 = vadd.f32 %v427, %v428
    %v433 = vrot.slane %v432, 4
    %v434 = vadd.f32 %v432, %v433
    %v435 = vrot.slane %v434, 2
    %v436 = vadd.f32 %v434, %v435
    %v437 = vrot.slane %v436, 1
    %v438 = vadd.f32 %v436, %v437
    %v439 = vmul.f32 %v438, %v201
    %v440 = vsub.f32 %v427, %v439
    %v441 = vsub.f32 %v428, %v439
    %v442 = vmul.f32 %v440, %v440
    %v443 = vmul.f32 %v441, %v441
    %v444 = vadd.f32 %v442, %v443
    %v445 = vrot.slane %v444, 4
    %v446 = vadd.f32 %v444, %v445
    %v447 = vrot.slane %v446, 2
    %v448 = vadd.f32 %v446, %v447
    %v449 = vrot.slane %v448, 1
    %v450 = vadd.f32 %v448, %v449
    %v451 = vmul.f32 %v450, %v201
    %v452 = vadd.f32 %v451, 1e-05
    %v453 = vrsqrt.pop %v452
    %v454 = vmul.f32 %v440, %v453
    %v455 = vmul.f32 %v441, %v453
    %457 = vset.pattern.permute.xlu0 0
    %458 = vperm.xlu0 %457, %v72
    %v459 = vpop.permute.xlu0 %458
    %462 = vset.pattern.permute.xlu0 0
    %463 = vperm.xlu0 %462, %v73
    %v464 = vpop.permute.xlu0 %463
    %v466 = vmul.f32 %v454, %v459
    %v467 = vmul.f32 %v455, %v464
    %469 = vset.pattern.permute.xlu0 0
    %470 = vperm.xlu0 %469, %v74
    %v471 = vpop.permute.xlu0 %470
    %474 = vset.pattern.permute.xlu0 0
    %475 = vperm.xlu0 %474, %v75
    %v476 = vpop.permute.xlu0 %475
    %v478 = vadd.f32 %v466, %v471
    %v479 = vadd.f32 %v467, %v476
    %v480 = vpack.c.bf16 %v479, %v478
    %v482 = vunpack.c.l.b16 %v480
    %v483 = vunpack.c.h.b16 %v480
    %v484 = vpack.c.b16 %v482, %v482
    %v485 = vpack.c.b16 %v483, %v483
    %s488 = smul.addr %s82, 4
    %s489 = scalar_lea.vmem %s15, %s488
    %490 = vst [vmem:[%s489] sm:$0xf] %v484
    %491 = vst [vmem:[%s489 + $0x4] sm:$0xf] %v485
  $region62: #{s4decoder_forward.7} parent=0 // loop_footer
    %s81 = sadd.s32 1, %s77
  $region63: #{s4decoder_forward.7} parent=0 // loop_footer_branch
    %76 = sbr.rel target = $region59
  $region64: #{s4decoder_forward.7} parent=0 // loop_exit
    _
  // Predicated region
  $region65: #{s4decoder_forward.7} parent=0 // pred_check
    _
  $region66: #{s4decoder_forward.7} parent=0 // pred_check_branch
    %493 = sbr.rel (0) target = $region68
  $region67: #{s4decoder_forward.7} parent=0 // pred_region
    _
  $region68: #{s4decoder_forward.7} parent=0 // pred_fallthru
    _
  // Predicated region
  $region69: #{s4decoder_forward.7} parent=0 // pred_check
    _
  $region70: #{s4decoder_forward.7} parent=0 // pred_check_branch
    %495 = sbr.rel (0) target = $region72
  $region71: #{s4decoder_forward.7} parent=0 // pred_region
    _
  $region72: #{s4decoder_forward.7} parent=0 // pred_fallthru
    _
  // Predicated region
  $region73: #{s4decoder_forward.7} parent=0 // pred_check
    _
  $region74: #{s4decoder_forward.7} parent=0 // pred_check_branch
    %497 = sbr.rel (0) target = $region76
  $region75: #{s4decoder_forward.7} parent=0 // pred_region
    _
  $region76: #{s4decoder_forward.7} parent=0 // pred_fallthru
    _
  // Predicated region
  $region77: #{s4decoder_forward.7} parent=0 // pred_check
    _
  $region78: #{s4decoder_forward.7} parent=0 // pred_check_branch
    %499 = sbr.rel (0) target = $region80
  $region79: #{s4decoder_forward.7} parent=0 // pred_region
    _
  $region80: #{s4decoder_forward.7} parent=0 // pred_fallthru
    _

// kernel: s4decoder_forward.8
$region0: #{s4decoder_forward.8}
  #allocation0 [shape = 'u32[]', space=smem, size = 0x4, offset = 0x4, fixed_abs, tag = 'smem constant byte address 0x4 - core index']
  #allocation1 [shape = 'u32[144,128]{1,0:T(1,128)}', space=vmem, size = 0x12000, scoped, tag = 'internal scratch']
  #allocation2 [shape = 'f32[8,2,128]{2,1,0:T(2,128)}', space=vmem, size = 0x2000, scoped, tag = 'scratch operand']
  %s0 = inlined_call_operand.vmem [shape: bf16[16,128,128], index: 0, kind: input, shape index: {}]
  %s1 = inlined_call_operand.vmem [shape: bf16[2,16,128], index: 1, kind: input, shape index: {}]
  %s2 = inlined_call_operand.vmem [shape: bf16[2,16,128], index: 2, kind: output, shape index: {}]
  %s3 = sld [smem:[#allocation0]]
  $region131: #{s4decoder_forward.8} parent=0
    _
  %s5 = ssub.s32 1, %s3
  %s6 = scalar_select 0, %s5, %s3
  $region1: #{s4decoder_forward.8} parent=0
    #allocation3 [shape = 'u8[8192]{0}', space=vmem, size = 0x2000, scoped, tag = 'input window, operand 1']
    #allocation4 [shape = 'u8[8192]{0}', space=vmem, size = 0x2000, scoped, tag = 'output window, operand 0']
    loop: start=0, step=1, limit=4
    $region2: #{s4decoder_forward.8} parent=1 // loop_pre_header
      _
    $region3: #{s4decoder_forward.8} parent=1 // loop_header
      %s8 = sphi 0, %s12
      %p9 = scmp.ge.s32.totalorder %s8, 4
      %s15 = sphi 0, %s34
      %s16 = sphi 0, %s30
      %s17 = sphi 0, %s26
      %s18 = sphi 0, %s15
      %s19 = sphi 0, %s16
      %s20 = sphi 0, %s17
      %s21 = sphi 0, %s18
      %s22 = sphi 0, %s19
      %s23 = sphi 0, %s20
      %s45 = sphi 0, %s47
      %s48 = sphi 0, %s45
      %s49 = sphi 0, %s48
      %s65 = sphi 0, %s49
      %s77 = sphi 0, %s79
      %s80 = sphi 0, %s77
      %s81 = sphi 0, %s80
      %s97 = sphi 0, %s81
      %s105 = sphi 0, %s107
      %s108 = sphi 0, %s105
      %s109 = sphi 0, %s108
      %s125 = sphi 0, %s109
    $region4: #{s4decoder_forward.8} parent=1 // loop_header_branch
      %11 = sbr.rel (%p9) target = $region8
    $region5: #{s4decoder_forward.8} parent=1 // loop_body
      %s13 = ssub.s32 %s8, 1
      %s14 = ssub.s32 %s8, 2
      %s24 = sadd.s32 1, %s17
      %p25 = scmp.ge.s32.totalorder %s24, 1
      %s26 = scalar_select %p25, 0, %s24
      %s27 = sadd.s32 1, %s16
      %s28 = scalar_select %p25, %s27, %s16
      %p29 = scmp.ge.s32.totalorder %s28, 1
      %s30 = scalar_select %p29, 0, %s28
      %s31 = sadd.s32 1, %s15
      %s32 = scalar_select %p29, %s31, %s15
      %p33 = scmp.ge.s32.totalorder %s32, 2
      %s34 = scalar_select %p33, 0, %s32
      %p35 = scmp.lt.s32.totalorder %s17, %s16
      %s36 = scalar_select %p35, %s17, %s16
      %p37 = scmp.lt.s32.totalorder %s26, %s30
      %s38 = scalar_select %p37, %s26, %s30
      %s39 = ssub.s32 %s15, %s34
      %s40 = ssub.s32 %s36, %s38
      %s41 = sor.u32 %s39, %s40
      %s42 = ssub.s32 %s16, %s30
      %s43 = sor.u32 %s41, %s42
      %p44 = scmp.eq.s32.totalorder %s43, 0
      %s46 = sadd.s32 %s45, 1
      %s47 = scalar_select %p44, %s45, %s46
      %p50 = pneg %p44
      %p51 = scmp.eq.s32.totalorder %s8, 1
      %p52 = por %p50, %p51
      %p53 = scmp.ne.s32.totalorder %s45, %s48
      %p54 = scmp.eq.s32.totalorder %s8, 0
      %p55 = por %p53, %p54
      %p56 = scmp.ne.s32.totalorder %s45, %s48
      %p57 = scmp.eq.s32.totalorder %s13, 1
      %p58 = por %p56, %p57
      %p59 = scmp.ne.s32.totalorder %s48, %s49
      %p60 = scmp.eq.s32.totalorder %s13, 0
      %p61 = por %p59, %p60
      %p62 = scmp.ne.s32.totalorder %s48, %s49
      %p63 = scmp.eq.s32.totalorder %s14, 1
      %p64 = por %p62, %p63
      %p66 = scmp.ne.s32.totalorder %s49, %s65
      %p67 = scmp.eq.s32.totalorder %s14, 0
      %p68 = por %p66, %p67
      %p69 = scmp.lt.s32.totalorder %s17, %s16
      %s70 = scalar_select %p69, %s17, %s16
      %p71 = scmp.lt.s32.totalorder %s26, %s30
      %s72 = scalar_select %p71, %s26, %s30
      %s73 = ssub.s32 %s15, %s34
      %s74 = ssub.s32 %s70, %s72
      %s75 = sor.u32 %s73, %s74
      %p76 = scmp.eq.s32.totalorder %s75, 0
      %s78 = sadd.s32 %s77, 1
      %s79 = scalar_select %p76, %s77, %s78
      %p82 = pneg %p76
      %p83 = scmp.eq.s32.totalorder %s8, 1
      %p84 = por %p82, %p83
      %p85 = scmp.ne.s32.totalorder %s77, %s80
      %p86 = scmp.eq.s32.totalorder %s8, 0
      %p87 = por %p85, %p86
      %p88 = scmp.ne.s32.totalorder %s77, %s80
      %p89 = scmp.eq.s32.totalorder %s13, 1
      %p90 = por %p88, %p89
      %p91 = scmp.ne.s32.totalorder %s80, %s81
      %p92 = scmp.eq.s32.totalorder %s13, 0
      %p93 = por %p91, %p92
      %p94 = scmp.ne.s32.totalorder %s80, %s81
      %p95 = scmp.eq.s32.totalorder %s14, 1
      %p96 = por %p94, %p95
      %p98 = scmp.ne.s32.totalorder %s81, %s97
      %p99 = scmp.eq.s32.totalorder %s14, 0
      %p100 = por %p98, %p99
      %s101 = ssub.s32 %s15, %s34
      %s102 = ssub.s32 %s16, %s30
      %s103 = sor.u32 %s101, %s102
      %p104 = scmp.eq.s32.totalorder %s103, 0
      %s106 = sadd.s32 %s105, 1
      %s107 = scalar_select %p104, %s105, %s106
      %p110 = pneg %p104
      %p111 = scmp.eq.s32.totalorder %s8, 1
      %p112 = por %p110, %p111
      %p113 = scmp.ne.s32.totalorder %s105, %s108
      %p114 = scmp.eq.s32.totalorder %s8, 0
      %p115 = por %p113, %p114
      %p116 = scmp.ne.s32.totalorder %s105, %s108
      %p117 = scmp.eq.s32.totalorder %s13, 1
      %p118 = por %p116, %p117
      %p119 = scmp.ne.s32.totalorder %s108, %s109
      %p120 = scmp.eq.s32.totalorder %s13, 0
      %p121 = por %p119, %p120
      %p122 = scmp.ne.s32.totalorder %s108, %s109
      %p123 = scmp.eq.s32.totalorder %s14, 1
      %p124 = por %p122, %p123
      %p126 = scmp.ne.s32.totalorder %s109, %s125
      %p127 = scmp.eq.s32.totalorder %s14, 0
      %p128 = por %p126, %p127
      %p129 = scmp.le.s32.totalorder 1, %s8
      %p130 = scmp.lt.s32.totalorder %s8, 3
      %p131 = pnand %p129, %p130
      %p132 = pneg %p131
      // Predicated region
      $region9: #{s4decoder_forward.8} parent=5 // pred_check
        _
      $region10: #{s4decoder_forward.8} parent=5 // pred_check_branch
        %134 = sbr.rel (%p131) target = $region12
      $region11: #{s4decoder_forward.8} parent=5 // pred_region
        %s135 = ssub.s32 %s8, 1
      $region12: #{s4decoder_forward.8} parent=5 // pred_fallthru
        _
      %p136 = scmp.lt.s32.totalorder %s8, 2
      // Predicated region
      $region13: #{s4decoder_forward.8} parent=5 // pred_check
        %p137 = pneg %p136
      $region14: #{s4decoder_forward.8} parent=5 // pred_check_branch
        %139 = sbr.rel (%p137) target = $region16
      $region15: #{s4decoder_forward.8} parent=5 // pred_region
        // Predicated region
        $region17: #{s4decoder_forward.8} parent=15 // pred_check
          %p140 = pneg %p55
        $region18: #{s4decoder_forward.8} parent=15 // pred_check_branch
          %142 = sbr.rel (%p140) target = $region20
        $region19: #{s4decoder_forward.8} parent=15 // pred_region
          %p143 = scmp.lt.s32.totalorder %s17, %s16
          %s144 = scalar_select %p143, %s17, %s16
          %s145 = smul.u32 8, %s15
          %s146 = smul.u32 16, %s144
          %p147 = scmp.lt.s32.totalorder %s145, 15
          %s148 = scalar_select %p147, %s145, 15
          %p149 = scmp.lt.s32.totalorder %s146, 15
          %s150 = scalar_select %p149, %s146, 15
          %p151 = scmp.lt.s32.totalorder %s16, 0
          %s152 = scalar_select %p151, %s16, 0
          %s153 = sadd.s32 %s152, %s150
          %s154 = smul.addr %s148, 16
          %s155 = sadd.s32 %s153, %s154
          %s156 = smul.addr %s155, 4
          %s157 = scalar_lea.vmem %s0, %s156
          %p158 = scmp.lt.s32.totalorder %s17, %s16
          %s159 = scalar_select %p158, %s17, %s16
          %s160 = smul.u32 8, %s15
          %s161 = smul.u32 16, %s159
        $region20: #{s4decoder_forward.8} parent=15 // pred_fallthru
          _
        // Predicated region
        $region21: #{s4decoder_forward.8} parent=15 // pred_check
          %p162 = pneg %p87
        $region22: #{s4decoder_forward.8} parent=15 // pred_check_branch
          %164 = sbr.rel (%p162) target = $region24
        $region23: #{s4decoder_forward.8} parent=15 // pred_region
          %s165 = sand.u32 %s77, 1
          %s166 = sand.u32 %s77, 1
          %s167 = smul.addr %s166, 8
          %s168 = scalar_lea.vmem [#allocation3], %s167
          %p169 = scmp.lt.s32.totalorder %s17, %s16
          %s170 = scalar_select %p169, %s17, %s16
          %s171 = sadd.s32 %s170, %s15
          %s172 = smul.addr %s171, 4
          %s173 = scalar_lea.vmem %s1, %s172
          // Predicated region
          $region25: #{s4decoder_forward.8} parent=23 // pred_check
            _
          $region26: #{s4decoder_forward.8} parent=23 // pred_check_branch
            %175 = sbr.rel (0) target = $region28
          $region27: #{s4decoder_forward.8} parent=23 // pred_region
            // Predicated region
            $region29: #{s4decoder_forward.8} parent=27 // pred_check
              _
            $region30: #{s4decoder_forward.8} parent=27 // pred_check_branch
              %177 = sbr.rel target = $region32
            $region31: #{s4decoder_forward.8} parent=27 // pred_region
              // Predicated region
              $region44: #{s4decoder_forward.8} parent=31 // pred_check
                _
              $region45: #{s4decoder_forward.8} parent=31 // pred_check_branch
                %194 = sbr.rel (0) target = $region47
              $region46: #{s4decoder_forward.8} parent=31 // pred_region
                loop: start=0, step=1, limit=1
                $region48: #{s4decoder_forward.8} parent=46 // loop_pre_header
                  _
                $region49: #{s4decoder_forward.8} parent=46 // loop_header
                  %s196 = sphi 0, %s200
                  %p197 = scmp.ge.s32.totalorder %s196, 1
                  %s201 = sphi %s173, %s173
                  %s202 = sphi %s168, %s168
                $region50: #{s4decoder_forward.8} parent=46 // loop_header_branch
                  %199 = sbr.rel (%p197) target = $region54
                $region51: #{s4decoder_forward.8} parent=46 // loop_body
                  _
                $region52: #{s4decoder_forward.8} parent=46 // loop_footer
                  %s200 = sadd.s32 1, %s196
                $region53: #{s4decoder_forward.8} parent=46 // loop_footer_branch
                  %195 = sbr.rel target = $region49
                $region54: #{s4decoder_forward.8} parent=46 // loop_exit
                  _
                loop: start=0, step=1, limit=1
                $region55: #{s4decoder_forward.8} parent=46 // loop_pre_header
                  _
                $region56: #{s4decoder_forward.8} parent=46 // loop_header
                  %s205 = sphi 0, %s209
                  %p206 = scmp.ge.s32.totalorder %s205, 1
                  %s210 = sphi %s173, %s173
                  %s211 = sphi %s168, %s168
                $region57: #{s4decoder_forward.8} parent=46 // loop_header_branch
                  %208 = sbr.rel (%p206) target = $region61
                $region58: #{s4decoder_forward.8} parent=46 // loop_body
                  %v212 = vld [vmem:[%s210] sm:$0xf]
                  %213 = vst [vmem:[%s211] sm:$0xf] %v212
                  %v214 = vld [vmem:[%s210 + $0x8] sm:$0xf]
                  %215 = vst [vmem:[%s211 + $0x4] sm:$0xf] %v214
                $region59: #{s4decoder_forward.8} parent=46 // loop_footer
                  %s209 = sadd.s32 1, %s205
                $region60: #{s4decoder_forward.8} parent=46 // loop_footer_branch
                  %204 = sbr.rel target = $region56
                $region61: #{s4decoder_forward.8} parent=46 // loop_exit
                  _
              $region47: #{s4decoder_forward.8} parent=31 // pred_fallthru
                _
            $region32: #{s4decoder_forward.8} parent=27 // pred_fallthru
              _
            // Predicated region
            $region33: #{s4decoder_forward.8} parent=27 // pred_check
              _
            $region34: #{s4decoder_forward.8} parent=27 // pred_check_branch
              %179 = sbr.rel (0) target = $region36
            $region35: #{s4decoder_forward.8} parent=27 // pred_region
              loop: start=0, step=1, limit=1
              $region37: #{s4decoder_forward.8} parent=35 // loop_pre_header
                _
              $region38: #{s4decoder_forward.8} parent=35 // loop_header
                %s182 = sphi 0, %s186
                %p183 = scmp.ge.s32.totalorder %s182, 1
                %s187 = sphi %s173, %s173
                %s188 = sphi %s168, %s168
              $region39: #{s4decoder_forward.8} parent=35 // loop_header_branch
                %185 = sbr.rel (%p183) target = $region43
              $region40: #{s4decoder_forward.8} parent=35 // loop_body
                %v189 = vld [vmem:[%s187] sm:$0xf]
                %190 = vst [vmem:[%s188] sm:$0xf] %v189
                %v191 = vld [vmem:[%s187 + $0x8] sm:$0xf]
                %192 = vst [vmem:[%s188 + $0x4] sm:$0xf] %v191
              $region41: #{s4decoder_forward.8} parent=35 // loop_footer
                %s186 = sadd.s32 1, %s182
              $region42: #{s4decoder_forward.8} parent=35 // loop_footer_branch
                %181 = sbr.rel target = $region38
              $region43: #{s4decoder_forward.8} parent=35 // loop_exit
                _
            $region36: #{s4decoder_forward.8} parent=27 // pred_fallthru
              _
          $region28: #{s4decoder_forward.8} parent=23 // pred_fallthru
            _
          %216 = vnop
        $region24: #{s4decoder_forward.8} parent=15 // pred_fallthru
          _
      $region16: #{s4decoder_forward.8} parent=5 // pred_fallthru
        _
      %p217 = scmp.le.s32.totalorder 1, %s8
      %p218 = scmp.lt.s32.totalorder %s8, 3
      %p219 = pnand %p217, %p218
      %p220 = pneg %p219
      // Predicated region
      $region62: #{s4decoder_forward.8} parent=5 // pred_check
        _
      $region63: #{s4decoder_forward.8} parent=5 // pred_check_branch
        %222 = sbr.rel (%p219) target = $region65
      $region64: #{s4decoder_forward.8} parent=5 // pred_region
        %s223 = ssub.s32 %s8, 1
        %s224 = sand.u32 %s80, 1
        %s225 = sand.u32 %s80, 1
        %s226 = smul.addr %s225, 8
        %s227 = scalar_lea.vmem [#allocation3], %s226
        // Predicated region
        $region66: #{s4decoder_forward.8} parent=64 // pred_check
          %p228 = pneg %p93
        $region67: #{s4decoder_forward.8} parent=64 // pred_check_branch
          %230 = sbr.rel (%p228) target = $region69
        $region68: #{s4decoder_forward.8} parent=64 // pred_region
          _
        $region69: #{s4decoder_forward.8} parent=64 // pred_fallthru
          _
        %p231 = scmp.lt.s32.totalorder %s20, %s19
        %s232 = scalar_select %p231, %s20, %s19
        %s233 = smul.u32 8, %s18
        %s234 = smul.u32 16, %s232
        %p235 = scmp.lt.s32.totalorder %s233, 15
        %s236 = scalar_select %p235, %s233, 15
        %p237 = scmp.lt.s32.totalorder %s234, 15
        %s238 = scalar_select %p237, %s234, 15
        %p239 = scmp.lt.s32.totalorder %s19, 0
        %s240 = scalar_select %p239, %s19, 0
        %s241 = sadd.s32 %s240, %s238
        %s242 = smul.addr %s236, 16
        %s243 = sadd.s32 %s241, %s242
        %s244 = smul.addr %s243, 4
        %s245 = scalar_lea.vmem %s0, %s244
        %p246 = pneg %p61
        %p247 = pneg %p58
        %s248 = sand.u32 %s80, 1
        %s249 = sand.u32 %s80, 1
        %s250 = smul.addr %s249, 8
        %s251 = scalar_lea.vmem [#allocation3], %s250
        %p252 = pneg %p93
        %p253 = pneg %p90
        %p254 = pneg %p121
        %p255 = pneg %p118
        %s256 = sand.u32 %s108, 1
        %s257 = sand.u32 %s108, 1
        %s258 = smul.addr %s257, 8
        %s259 = scalar_lea.vmem [#allocation4], %s258
        %p260 = scmp.lt.s32.totalorder %s20, %s19
        %s261 = scalar_select %p260, %s20, %s19
        %s262 = smul.u32 8, %s18
        %s263 = smul.u32 16, %s261
        %p264 = scmp.lt.s32.totalorder %s262, 15
        %s265 = scalar_select %p264, %s262, 15
        %p266 = scmp.lt.s32.totalorder %s263, 15
        %s267 = scalar_select %p266, %s263, 15
        %p268 = scmp.lt.s32.totalorder %s19, 0
        %s269 = scalar_select %p268, %s19, 0
        %s270 = sadd.s32 %s269, %s267
        %s271 = smul.addr %s265, 16
        %s272 = sadd.s32 %s270, %s271
        %s273 = smul.addr %s272, 4
        %s274 = scalar_lea.vmem %s0, %s273
        %p275 = scmp.lt.s32.totalorder %s20, %s19
        %s276 = scalar_select %p275, %s20, %s19
        %s277 = smul.u32 8, %s18
        %s278 = smul.u32 16, %s276
        %p279 = scmp.lt.s32.totalorder %s20, %s19
        %s280 = scalar_select %p279, %s20, %s19
        %p282 = scmp.eq.s32.totalorder %s20, 0
        // Predicated region
        $region70: #{s4decoder_forward.8} parent=64 // pred_check
          %p283 = pneg %p282
        $region71: #{s4decoder_forward.8} parent=64 // pred_check_branch
          %285 = sbr.rel (%p283) target = $region73
        $region72: #{s4decoder_forward.8} parent=64 // pred_region
          %286 = vst [vmem:[#allocation2] sm:$0x3] 0.0
          %287 = vst [vmem:[#allocation2 + $0x2] sm:$0x3] 0.0
          %288 = vst [vmem:[#allocation2 + $0x4] sm:$0x3] 0.0
          %289 = vst [vmem:[#allocation2 + $0x6] sm:$0x3] 0.0
          %290 = vst [vmem:[#allocation2 + $0x8] sm:$0x3] 0.0
          %291 = vst [vmem:[#allocation2 + $0xa] sm:$0x3] 0.0
          %292 = vst [vmem:[#allocation2 + $0xc] sm:$0x3] 0.0
          %293 = vst [vmem:[#allocation2 + $0xe] sm:$0x3] 0.0
        $region73: #{s4decoder_forward.8} parent=64 // pred_fallthru
          _
        %p294 = scmp.le.s32.totalorder %s20, %s19
        // Predicated region
        $region74: #{s4decoder_forward.8} parent=64 // pred_check
          %p295 = pneg %p294
        $region75: #{s4decoder_forward.8} parent=64 // pred_check_branch
          %297 = sbr.rel (%p295) target = $region77
        $region76: #{s4decoder_forward.8} parent=64 // pred_region
          %v298 = vld [vmem:[#allocation2] sm:$0x3]
          %v299 = vld [vmem:[#allocation2 + $0x2] sm:$0x3]
          %v300 = vld [vmem:[#allocation2 + $0x4] sm:$0x3]
          %v301 = vld [vmem:[#allocation2 + $0x6] sm:$0x3]
          %v302 = vld [vmem:[#allocation2 + $0x8] sm:$0x3]
          %v303 = vld [vmem:[#allocation2 + $0xa] sm:$0x3]
          %v304 = vld [vmem:[#allocation2 + $0xc] sm:$0x3]
          %v305 = vld [vmem:[#allocation2 + $0xe] sm:$0x3]
          %v306 = vld [vmem:[%s227] sm:$0xf]
          %v307 = vld [vmem:[%s227 + $0x4] sm:$0xf]
          %v308 = vld [vmem:[%s274] sm:$0xf]
          %v309 = vld [vmem:[%s274 + $0x4] sm:$0xf]
          %v310 = vld [vmem:[%s274 + $0x8] sm:$0xf]
          %v311 = vld [vmem:[%s274 + $0xc] sm:$0xf]
          %v312 = vld [vmem:[%s274 + $0x10] sm:$0xf]
          %v313 = vld [vmem:[%s274 + $0x14] sm:$0xf]
          %v314 = vld [vmem:[%s274 + $0x18] sm:$0xf]
          %v315 = vld [vmem:[%s274 + $0x1c] sm:$0xf]
          %v316 = vld [vmem:[%s274 + $0x20] sm:$0xf]
          %v317 = vld [vmem:[%s274 + $0x24] sm:$0xf]
          %v318 = vld [vmem:[%s274 + $0x28] sm:$0xf]
          %v319 = vld [vmem:[%s274 + $0x2c] sm:$0xf]
          %v320 = vld [vmem:[%s274 + $0x30] sm:$0xf]
          %v321 = vld [vmem:[%s274 + $0x34] sm:$0xf]
          %v322 = vld [vmem:[%s274 + $0x38] sm:$0xf]
          %v323 = vld [vmem:[%s274 + $0x3c] sm:$0xf]
          %v324 = vld [vmem:[%s274 + $0x40] sm:$0xf]
          %v325 = vld [vmem:[%s274 + $0x44] sm:$0xf]
          %v326 = vld [vmem:[%s274 + $0x48] sm:$0xf]
          %v327 = vld [vmem:[%s274 + $0x4c] sm:$0xf]
          %v328 = vld [vmem:[%s274 + $0x50] sm:$0xf]
          %v329 = vld [vmem:[%s274 + $0x54] sm:$0xf]
          %v330 = vld [vmem:[%s274 + $0x58] sm:$0xf]
          %v331 = vld [vmem:[%s274 + $0x5c] sm:$0xf]
          %v332 = vld [vmem:[%s274 + $0x60] sm:$0xf]
          %v333 = vld [vmem:[%s274 + $0x64] sm:$0xf]
          %v334 = vld [vmem:[%s274 + $0x68] sm:$0xf]
          %v335 = vld [vmem:[%s274 + $0x6c] sm:$0xf]
          %v336 = vld [vmem:[%s274 + $0x70] sm:$0xf]
          %v337 = vld [vmem:[%s274 + $0x74] sm:$0xf]
          %v338 = vld [vmem:[%s274 + $0x78] sm:$0xf]
          %v339 = vld [vmem:[%s274 + $0x7c] sm:$0xf]
          %v340 = vld [vmem:[%s274 + $0x80] sm:$0xf]
          %v341 = vld [vmem:[%s274 + $0x84] sm:$0xf]
          %v342 = vld [vmem:[%s274 + $0x88] sm:$0xf]
          %v343 = vld [vmem:[%s274 + $0x8c] sm:$0xf]
          %v344 = vld [vmem:[%s274 + $0x90] sm:$0xf]
          %v345 = vld [vmem:[%s274 + $0x94] sm:$0xf]
          %v346 = vld [vmem:[%s274 + $0x98] sm:$0xf]
          %v347 = vld [vmem:[%s274 + $0x9c] sm:$0xf]
          %v348 = vld [vmem:[%s274 + $0xa0] sm:$0xf]
          %v349 = vld [vmem:[%s274 + $0xa4] sm:$0xf]
          %v350 = vld [vmem:[%s274 + $0xa8] sm:$0xf]
          %v351 = vld [vmem:[%s274 + $0xac] sm:$0xf]
          %v352 = vld [vmem:[%s274 + $0xb0] sm:$0xf]
          %v353 = vld [vmem:[%s274 + $0xb4] sm:$0xf]
          %v354 = vld [vmem:[%s274 + $0xb8] sm:$0xf]
          %v355 = vld [vmem:[%s274 + $0xbc] sm:$0xf]
          %v356 = vld [vmem:[%s274 + $0xc0] sm:$0xf]
          %v357 = vld [vmem:[%s274 + $0xc4] sm:$0xf]
          %v358 = vld [vmem:[%s274 + $0xc8] sm:$0xf]
          %v359 = vld [vmem:[%s274 + $0xcc] sm:$0xf]
          %v360 = vld [vmem:[%s274 + $0xd0] sm:$0xf]
          %v361 = vld [vmem:[%s274 + $0xd4] sm:$0xf]
          %v362 = vld [vmem:[%s274 + $0xd8] sm:$0xf]
          %v363 = vld [vmem:[%s274 + $0xdc] sm:$0xf]
          %v364 = vld [vmem:[%s274 + $0xe0] sm:$0xf]
          %v365 = vld [vmem:[%s274 + $0xe4] sm:$0xf]
          %v366 = vld [vmem:[%s274 + $0xe8] sm:$0xf]
          %v367 = vld [vmem:[%s274 + $0xec] sm:$0xf]
          %v368 = vld [vmem:[%s274 + $0xf0] sm:$0xf]
          %v369 = vld [vmem:[%s274 + $0xf4] sm:$0xf]
          %v370 = vld [vmem:[%s274 + $0xf8] sm:$0xf]
          %v371 = vld [vmem:[%s274 + $0xfc] sm:$0xf]
          %v372 = vld [vmem:[%s274 + $0x100] sm:$0xf]
          %v373 = vld [vmem:[%s274 + $0x104] sm:$0xf]
          %v374 = vld [vmem:[%s274 + $0x108] sm:$0xf]
          %v375 = vld [vmem:[%s274 + $0x10c] sm:$0xf]
          %v376 = vld [vmem:[%s274 + $0x110] sm:$0xf]
          %v377 = vld [vmem:[%s274 + $0x114] sm:$0xf]
          %v378 = vld [vmem:[%s274 + $0x118] sm:$0xf]
          %v379 = vld [vmem:[%s274 + $0x11c] sm:$0xf]
          %v380 = vld [vmem:[%s274 + $0x120] sm:$0xf]
          %v381 = vld [vmem:[%s274 + $0x124] sm:$0xf]
          %v382 = vld [vmem:[%s274 + $0x128] sm:$0xf]
          %v383 = vld [vmem:[%s274 + $0x12c] sm:$0xf]
          %v384 = vld [vmem:[%s274 + $0x130] sm:$0xf]
          %v385 = vld [vmem:[%s274 + $0x134] sm:$0xf]
          %v386 = vld [vmem:[%s274 + $0x138] sm:$0xf]
          %v387 = vld [vmem:[%s274 + $0x13c] sm:$0xf]
          %v388 = vld [vmem:[%s274 + $0x140] sm:$0xf]
          %v389 = vld [vmem:[%s274 + $0x144] sm:$0xf]
          %v390 = vld [vmem:[%s274 + $0x148] sm:$0xf]
          %v391 = vld [vmem:[%s274 + $0x14c] sm:$0xf]
          %v392 = vld [vmem:[%s274 + $0x150] sm:$0xf]
          %v393 = vld [vmem:[%s274 + $0x154] sm:$0xf]
          %v394 = vld [vmem:[%s274 + $0x158] sm:$0xf]
          %v395 = vld [vmem:[%s274 + $0x15c] sm:$0xf]
          %v396 = vld [vmem:[%s274 + $0x160] sm:$0xf]
          %v397 = vld [vmem:[%s274 + $0x164] sm:$0xf]
          %v398 = vld [vmem:[%s274 + $0x168] sm:$0xf]
          %v399 = vld [vmem:[%s274 + $0x16c] sm:$0xf]
          %v400 = vld [vmem:[%s274 + $0x170] sm:$0xf]
          %v401 = vld [vmem:[%s274 + $0x174] sm:$0xf]
          %v402 = vld [vmem:[%s274 + $0x178] sm:$0xf]
          %v403 = vld [vmem:[%s274 + $0x17c] sm:$0xf]
          %v404 = vld [vmem:[%s274 + $0x180] sm:$0xf]
          %v405 = vld [vmem:[%s274 + $0x184] sm:$0xf]
          %v406 = vld [vmem:[%s274 + $0x188] sm:$0xf]
          %v407 = vld [vmem:[%s274 + $0x18c] sm:$0xf]
          %v408 = vld [vmem:[%s274 + $0x190] sm:$0xf]
          %v409 = vld [vmem:[%s274 + $0x194] sm:$0xf]
          %v410 = vld [vmem:[%s274 + $0x198] sm:$0xf]
          %v411 = vld [vmem:[%s274 + $0x19c] sm:$0xf]
          %v412 = vld [vmem:[%s274 + $0x1a0] sm:$0xf]
          %v413 = vld [vmem:[%s274 + $0x1a4] sm:$0xf]
          %v414 = vld [vmem:[%s274 + $0x1a8] sm:$0xf]
          %v415 = vld [vmem:[%s274 + $0x1ac] sm:$0xf]
          %v416 = vld [vmem:[%s274 + $0x1b0] sm:$0xf]
          %v417 = vld [vmem:[%s274 + $0x1b4] sm:$0xf]
          %v418 = vld [vmem:[%s274 + $0x1b8] sm:$0xf]
          %v419 = vld [vmem:[%s274 + $0x1bc] sm:$0xf]
          %v420 = vld [vmem:[%s274 + $0x1c0] sm:$0xf]
          %v421 = vld [vmem:[%s274 + $0x1c4] sm:$0xf]
          %v422 = vld [vmem:[%s274 + $0x1c8] sm:$0xf]
          %v423 = vld [vmem:[%s274 + $0x1cc] sm:$0xf]
          %v424 = vld [vmem:[%s274 + $0x1d0] sm:$0xf]
          %v425 = vld [vmem:[%s274 + $0x1d4] sm:$0xf]
          %v426 = vld [vmem:[%s274 + $0x1d8] sm:$0xf]
          %v427 = vld [vmem:[%s274 + $0x1dc] sm:$0xf]
          %v428 = vld [vmem:[%s274 + $0x1e0] sm:$0xf]
          %v429 = vld [vmem:[%s274 + $0x1e4] sm:$0xf]
          %v430 = vld [vmem:[%s274 + $0x1e8] sm:$0xf]
          %v431 = vld [vmem:[%s274 + $0x1ec] sm:$0xf]
          %v432 = vld [vmem:[%s274 + $0x1f0] sm:$0xf]
          %v433 = vld [vmem:[%s274 + $0x1f4] sm:$0xf]
          %v434 = vld [vmem:[%s274 + $0x1f8] sm:$0xf]
          %v435 = vld [vmem:[%s274 + $0x1fc] sm:$0xf]
          %v438 = vpack.i.b16 %v307, %v306
          %v439 = vshrl.u32 %v306, 16
          %v440 = vshrl.u32 %v307, 16
          %v441 = vpack.i.b16 %v440, %v439
          %v444 = vunpack.c.l.s4 1983009808
          %v445 = vunpack.c.0.s8 %v444
          %v446 = vlaneseq
          %v447 = vshrl.u32 %v446, 7
          %v448 = vsub.s32 %v445, %v447
          %v449 = vrot.slane %v438, %v448
          %v450 = vcombine.high %v449, 0
          %v452 = vunpack.c.l.s4 1934713408
          %v453 = vunpack.c.0.s8 %v452
          %v454 = vlaneseq
          %v455 = vshrl.u32 %v454, 7
          %v456 = vsub.s32 %v453, %v455
          %v457 = vrot.slane %v449, %v456
          %v459 = vunpack.c.l.s4 1934713408
          %v460 = vunpack.c.0.s8 %v459
          %v461 = vlaneseq
          %v462 = vshrl.u32 %v461, 7
          %v463 = vsub.s32 %v460, %v462
          %v464 = vrot.slane %v450, %v463
          %v465 = vcombine.high %v457, 0
          %v466 = vcombine.high %v464, 0
          %v469 = vunpack.c.l.s4 1983009808
          %v470 = vunpack.c.0.s8 %v469
          %v471 = vlaneseq
          %v472 = vshrl.u32 %v471, 7
          %v473 = vsub.s32 %v470, %v472
          %v474 = vrot.slane %v441, %v473
          %v475 = vcombine.high %v474, 0
          %v477 = vunpack.c.l.s4 1934713408
          %v478 = vunpack.c.0.s8 %v477
          %v479 = vlaneseq
          %v480 = vshrl.u32 %v479, 7
          %v481 = vsub.s32 %v478, %v480
          %v482 = vrot.slane %v474, %v481
          %v484 = vunpack.c.l.s4 1934713408
          %v485 = vunpack.c.0.s8 %v484
          %v486 = vlaneseq
          %v487 = vshrl.u32 %v486, 7
          %v488 = vsub.s32 %v485, %v487
          %v489 = vrot.slane %v475, %v488
          %v490 = vcombine.high %v482, 0
          %v491 = vcombine.high %v489, 0
          %v508 = vunpack.c.l.b16 %v308
          %v509 = vunpack.c.l.b16 %v309
          %v510 = vunpack.c.l.b16 %v310
          %v511 = vunpack.c.l.b16 %v311
          %v512 = vunpack.c.l.b16 %v312
          %v513 = vunpack.c.l.b16 %v313
          %v514 = vunpack.c.l.b16 %v314
          %v515 = vunpack.c.l.b16 %v315
          %v516 = vunpack.c.l.b16 %v316
          %v517 = vunpack.c.l.b16 %v317
          %v518 = vunpack.c.l.b16 %v318
          %v519 = vunpack.c.l.b16 %v319
          %v520 = vunpack.c.l.b16 %v320
          %v521 = vunpack.c.l.b16 %v321
          %v522 = vunpack.c.l.b16 %v322
          %v523 = vunpack.c.l.b16 %v323
          %v524 = vpack.c.b16 %v509, %v508
          %v525 = vpack.c.b16 %v511, %v510
          %v526 = vpack.c.b16 %v513, %v512
          %v527 = vpack.c.b16 %v515, %v514
          %v528 = vpack.c.b16 %v517, %v516
          %v529 = vpack.c.b16 %v519, %v518
          %v530 = vpack.c.b16 %v521, %v520
          %v531 = vpack.c.b16 %v523, %v522
          %540 = vmatprep.subr.bf16.mxu0 0
          %541 = vmatpush1.bf16.msra.mxu0 %v524
          %542 = vmatprep.subr.bf16.mxu0 0
          %543 = vmatpush1.bf16.msra.mxu0 %v525
          %544 = vmatprep.subr.bf16.mxu0 0
          %545 = vmatpush1.bf16.msra.mxu0 %v526
          %546 = vmatprep.subr.bf16.mxu0 0
          %547 = vmatpush1.bf16.msra.mxu0 %v527
          %548 = vmatprep.subr.bf16.mxu0 0
          %549 = vmatpush1.bf16.msra.mxu0 %v528
          %550 = vmatprep.subr.bf16.mxu0 0
          %551 = vmatpush1.bf16.msra.mxu0 %v529
          %552 = vmatprep.subr.bf16.mxu0 0
          %553 = vmatpush1.bf16.msra.mxu0 %v530
          %554 = vmatprep.subr.bf16.mxu0 0
          %555 = vmatpush1.bf16.msra.mxu0 %v531
          %556 = vmatprep.subr.bf16.mxu0 0
          %557 = vmatpush1.bf16.msra.mxu0 0
          %558 = vmatprep.subr.bf16.mxu0 0
          %559 = vmatpush1.bf16.msra.mxu0 0
          %560 = vmatprep.subr.bf16.mxu0 0
          %561 = vmatpush1.bf16.msra.mxu0 0
          %562 = vmatprep.subr.bf16.mxu0 0
          %563 = vmatpush1.bf16.msra.mxu0 0
          %564 = vmatprep.subr.bf16.mxu0 0
          %565 = vmatpush1.bf16.msra.mxu0 0
          %566 = vmatprep.subr.bf16.mxu0 0
          %567 = vmatpush1.bf16.msra.mxu0 0
          %568 = vmatprep.subr.bf16.mxu0 0
          %569 = vmatpush1.bf16.msra.mxu0 0
          %570 = vmatprep.subr.bf16.mxu0 0
          %571 = vmatpush1.bf16.msra.mxu0 0
          %572 = vmatprep.mubr.bf16.mxu0 0
          %573 = vmatmul.mubr.bf16.gmra.mrb[0].mxu0 %v457
          %v574 = vpop.f32.mrb[0].mxu0
          %v575 = vadd.f32 0.0, %v574
          %v576 = vpop.f32.mrb[0].mxu0
          %v577 = vpop.f32.mrb[0].mxu0
          %v578 = vpop.f32.mrb[0].mxu0
          %579 = vdwg.mxu0
          %v596 = vunpack.c.l.b16 %v324
          %v597 = vunpack.c.l.b16 %v325
          %v598 = vunpack.c.l.b16 %v326
          %v599 = vunpack.c.l.b16 %v327
          %v600 = vunpack.c.l.b16 %v328
          %v601 = vunpack.c.l.b16 %v329
          %v602 = vunpack.c.l.b16 %v330
          %v603 = vunpack.c.l.b16 %v331
          %v604 = vunpack.c.l.b16 %v332
          %v605 = vunpack.c.l.b16 %v333
          %v606 = vunpack.c.l.b16 %v334
          %v607 = vunpack.c.l.b16 %v335
          %v608 = vunpack.c.l.b16 %v336
          %v609 = vunpack.c.l.b16 %v337
          %v610 = vunpack.c.l.b16 %v338
          %v611 = vunpack.c.l.b16 %v339
          %v612 = vpack.c.b16 %v597, %v596
          %v613 = vpack.c.b16 %v599, %v598
          %v614 = vpack.c.b16 %v601, %v600
          %v615 = vpack.c.b16 %v603, %v602
          %v616 = vpack.c.b16 %v605, %v604
          %v617 = vpack.c.b16 %v607, %v606
          %v618 = vpack.c.b16 %v609, %v608
          %v619 = vpack.c.b16 %v611, %v610
          %628 = vmatprep.subr.bf16.mxu0 0
          %629 = vmatpush1.bf16.msra.mxu0 %v612
          %630 = vmatprep.subr.bf16.mxu0 0
          %631 = vmatpush1.bf16.msra.mxu0 %v613
          %632 = vmatprep.subr.bf16.mxu0 0
          %633 = vmatpush1.bf16.msra.mxu0 %v614
          %634 = vmatprep.subr.bf16.mxu0 0
          %635 = vmatpush1.bf16.msra.mxu0 %v615
          %636 = vmatprep.subr.bf16.mxu0 0
          %637 = vmatpush1.bf16.msra.mxu0 %v616
          %638 = vmatprep.subr.bf16.mxu0 0
          %639 = vmatpush1.bf16.msra.mxu0 %v617
          %640 = vmatprep.subr.bf16.mxu0 0
          %641 = vmatpush1.bf16.msra.mxu0 %v618
          %642 = vmatprep.subr.bf16.mxu0 0
          %643 = vmatpush1.bf16.msra.mxu0 %v619
          %644 = vmatprep.subr.bf16.mxu0 0
          %645 = vmatpush1.bf16.msra.mxu0 0
          %646 = vmatprep.subr.bf16.mxu0 0
          %647 = vmatpush1.bf16.msra.mxu0 0
          %648 = vmatprep.subr.bf16.mxu0 0
          %649 = vmatpush1.bf16.msra.mxu0 0
          %650 = vmatprep.subr.bf16.mxu0 0
          %651 = vmatpush1.bf16.msra.mxu0 0
          %652 = vmatprep.subr.bf16.mxu0 0
          %653 = vmatpush1.bf16.msra.mxu0 0
          %654 = vmatprep.subr.bf16.mxu0 0
          %655 = vmatpush1.bf16.msra.mxu0 0
          %656 = vmatprep.subr.bf16.mxu0 0
          %657 = vmatpush1.bf16.msra.mxu0 0
          %658 = vmatprep.subr.bf16.mxu0 0
          %659 = vmatpush1.bf16.msra.mxu0 0
          %660 = vmatprep.mubr.bf16.mxu0 0
          %661 = vmatmul.mubr.bf16.gmra.mrb[0].mxu0 %v482
          %v662 = vpop.f32.mrb[0].mxu0
          %v663 = vadd.f32 0.0, %v662
          %v664 = vpop.f32.mrb[0].mxu0
          %v665 = vpop.f32.mrb[0].mxu0
          %v666 = vpop.f32.mrb[0].mxu0
          %667 = vdwg.mxu0
          %v684 = vunpack.c.l.b16 %v340
          %v685 = vunpack.c.l.b16 %v341
          %v686 = vunpack.c.l.b16 %v342
          %v687 = vunpack.c.l.b16 %v343
          %v688 = vunpack.c.l.b16 %v344
          %v689 = vunpack.c.l.b16 %v345
          %v690 = vunpack.c.l.b16 %v346
          %v691 = vunpack.c.l.b16 %v347
          %v692 = vunpack.c.l.b16 %v348
          %v693 = vunpack.c.l.b16 %v349
          %v694 = vunpack.c.l.b16 %v350
          %v695 = vunpack.c.l.b16 %v351
          %v696 = vunpack.c.l.b16 %v352
          %v697 = vunpack.c.l.b16 %v353
          %v698 = vunpack.c.l.b16 %v354
          %v699 = vunpack.c.l.b16 %v355
          %v700 = vpack.c.b16 %v685, %v684
          %v701 = vpack.c.b16 %v687, %v686
          %v702 = vpack.c.b16 %v689, %v688
          %v703 = vpack.c.b16 %v691, %v690
          %v704 = vpack.c.b16 %v693, %v692
          %v705 = vpack.c.b16 %v695, %v694
          %v706 = vpack.c.b16 %v697, %v696
          %v707 = vpack.c.b16 %v699, %v698
          %716 = vmatprep.subr.bf16.mxu0 0
          %717 = vmatpush1.bf16.msra.mxu0 %v700
          %718 = vmatprep.subr.bf16.mxu0 0
          %719 = vmatpush1.bf16.msra.mxu0 %v701
          %720 = vmatprep.subr.bf16.mxu0 0
          %721 = vmatpush1.bf16.msra.mxu0 %v702
          %722 = vmatprep.subr.bf16.mxu0 0
          %723 = vmatpush1.bf16.msra.mxu0 %v703
          %724 = vmatprep.subr.bf16.mxu0 0
          %725 = vmatpush1.bf16.msra.mxu0 %v704
          %726 = vmatprep.subr.bf16.mxu0 0
          %727 = vmatpush1.bf16.msra.mxu0 %v705
          %728 = vmatprep.subr.bf16.mxu0 0
          %729 = vmatpush1.bf16.msra.mxu0 %v706
          %730 = vmatprep.subr.bf16.mxu0 0
          %731 = vmatpush1.bf16.msra.mxu0 %v707
          %732 = vmatprep.subr.bf16.mxu0 0
          %733 = vmatpush1.bf16.msra.mxu0 0
          %734 = vmatprep.subr.bf16.mxu0 0
          %735 = vmatpush1.bf16.msra.mxu0 0
          %736 = vmatprep.subr.bf16.mxu0 0
          %737 = vmatpush1.bf16.msra.mxu0 0
          %738 = vmatprep.subr.bf16.mxu0 0
          %739 = vmatpush1.bf16.msra.mxu0 0
          %740 = vmatprep.subr.bf16.mxu0 0
          %741 = vmatpush1.bf16.msra.mxu0 0
          %742 = vmatprep.subr.bf16.mxu0 0
          %743 = vmatpush1.bf16.msra.mxu0 0
          %744 = vmatprep.subr.bf16.mxu0 0
          %745 = vmatpush1.bf16.msra.mxu0 0
          %746 = vmatprep.subr.bf16.mxu0 0
          %747 = vmatpush1.bf16.msra.mxu0 0
          %748 = vmatprep.mubr.bf16.mxu0 0
          %749 = vmatmul.mubr.bf16.gmra.mrb[0].mxu0 %v465
          %v750 = vpop.f32.mrb[0].mxu0
          %v751 = vadd.f32 0.0, %v750
          %v752 = vpop.f32.mrb[0].mxu0
          %v753 = vpop.f32.mrb[0].mxu0
          %v754 = vpop.f32.mrb[0].mxu0
          %755 = vdwg.mxu0
          %v772 = vunpack.c.l.b16 %v356
          %v773 = vunpack.c.l.b16 %v357
          %v774 = vunpack.c.l.b16 %v358
          %v775 = vunpack.c.l.b16 %v359
          %v776 = vunpack.c.l.b16 %v360
          %v777 = vunpack.c.l.b16 %v361
          %v778 = vunpack.c.l.b16 %v362
          %v779 = vunpack.c.l.b16 %v363
          %v780 = vunpack.c.l.b16 %v364
          %v781 = vunpack.c.l.b16 %v365
          %v782 = vunpack.c.l.b16 %v366
          %v783 = vunpack.c.l.b16 %v367
          %v784 = vunpack.c.l.b16 %v368
          %v785 = vunpack.c.l.b16 %v369
          %v786 = vunpack.c.l.b16 %v370
          %v787 = vunpack.c.l.b16 %v371
          %v788 = vpack.c.b16 %v773, %v772
          %v789 = vpack.c.b16 %v775, %v774
          %v790 = vpack.c.b16 %v777, %v776
          %v791 = vpack.c.b16 %v779, %v778
          %v792 = vpack.c.b16 %v781, %v780
          %v793 = vpack.c.b16 %v783, %v782
          %v794 = vpack.c.b16 %v785, %v784
          %v795 = vpack.c.b16 %v787, %v786
          %804 = vmatprep.subr.bf16.mxu0 0
          %805 = vmatpush1.bf16.msra.mxu0 %v788
          %806 = vmatprep.subr.bf16.mxu0 0
          %807 = vmatpush1.bf16.msra.mxu0 %v789
          %808 = vmatprep.subr.bf16.mxu0 0
          %809 = vmatpush1.bf16.msra.mxu0 %v790
          %810 = vmatprep.subr.bf16.mxu0 0
          %811 = vmatpush1.bf16.msra.mxu0 %v791
          %812 = vmatprep.subr.bf16.mxu0 0
          %813 = vmatpush1.bf16.msra.mxu0 %v792
          %814 = vmatprep.subr.bf16.mxu0 0
          %815 = vmatpush1.bf16.msra.mxu0 %v793
          %816 = vmatprep.subr.bf16.mxu0 0
          %817 = vmatpush1.bf16.msra.mxu0 %v794
          %818 = vmatprep.subr.bf16.mxu0 0
          %819 = vmatpush1.bf16.msra.mxu0 %v795
          %820 = vmatprep.subr.bf16.mxu0 0
          %821 = vmatpush1.bf16.msra.mxu0 0
          %822 = vmatprep.subr.bf16.mxu0 0
          %823 = vmatpush1.bf16.msra.mxu0 0
          %824 = vmatprep.subr.bf16.mxu0 0
          %825 = vmatpush1.bf16.msra.mxu0 0
          %826 = vmatprep.subr.bf16.mxu0 0
          %827 = vmatpush1.bf16.msra.mxu0 0
          %828 = vmatprep.subr.bf16.mxu0 0
          %829 = vmatpush1.bf16.msra.mxu0 0
          %830 = vmatprep.subr.bf16.mxu0 0
          %831 = vmatpush1.bf16.msra.mxu0 0
          %832 = vmatprep.subr.bf16.mxu0 0
          %833 = vmatpush1.bf16.msra.mxu0 0
          %834 = vmatprep.subr.bf16.mxu0 0
          %835 = vmatpush1.bf16.msra.mxu0 0
          %836 = vmatprep.mubr.bf16.mxu0 0
          %837 = vmatmul.mubr.bf16.gmra.mrb[0].mxu0 %v490
          %v838 = vpop.f32.mrb[0].mxu0
          %v839 = vadd.f32 0.0, %v838
          %v840 = vpop.f32.mrb[0].mxu0
          %v841 = vpop.f32.mrb[0].mxu0
          %v842 = vpop.f32.mrb[0].mxu0
          %843 = vdwg.mxu0
          %v860 = vunpack.c.l.b16 %v372
          %v861 = vunpack.c.l.b16 %v373
          %v862 = vunpack.c.l.b16 %v374
          %v863 = vunpack.c.l.b16 %v375
          %v864 = vunpack.c.l.b16 %v376
          %v865 = vunpack.c.l.b16 %v377
          %v866 = vunpack.c.l.b16 %v378
          %v867 = vunpack.c.l.b16 %v379
          %v868 = vunpack.c.l.b16 %v380
          %v869 = vunpack.c.l.b16 %v381
          %v870 = vunpack.c.l.b16 %v382
          %v871 = vunpack.c.l.b16 %v383
          %v872 = vunpack.c.l.b16 %v384
          %v873 = vunpack.c.l.b16 %v385
          %v874 = vunpack.c.l.b16 %v386
          %v875 = vunpack.c.l.b16 %v387
          %v876 = vpack.c.b16 %v861, %v860
          %v877 = vpack.c.b16 %v863, %v862
          %v878 = vpack.c.b16 %v865, %v864
          %v879 = vpack.c.b16 %v867, %v866
          %v880 = vpack.c.b16 %v869, %v868
          %v881 = vpack.c.b16 %v871, %v870
          %v882 = vpack.c.b16 %v873, %v872
          %v883 = vpack.c.b16 %v875, %v874
          %892 = vmatprep.subr.bf16.mxu0 0
          %893 = vmatpush1.bf16.msra.mxu0 %v876
          %894 = vmatprep.subr.bf16.mxu0 0
          %895 = vmatpush1.bf16.msra.mxu0 %v877
          %896 = vmatprep.subr.bf16.mxu0 0
          %897 = vmatpush1.bf16.msra.mxu0 %v878
          %898 = vmatprep.subr.bf16.mxu0 0
          %899 = vmatpush1.bf16.msra.mxu0 %v879
          %900 = vmatprep.subr.bf16.mxu0 0
          %901 = vmatpush1.bf16.msra.mxu0 %v880
          %902 = vmatprep.subr.bf16.mxu0 0
          %903 = vmatpush1.bf16.msra.mxu0 %v881
          %904 = vmatprep.subr.bf16.mxu0 0
          %905 = vmatpush1.bf16.msra.mxu0 %v882
          %906 = vmatprep.subr.bf16.mxu0 0
          %907 = vmatpush1.bf16.msra.mxu0 %v883
          %908 = vmatprep.subr.bf16.mxu0 0
          %909 = vmatpush1.bf16.msra.mxu0 0
          %910 = vmatprep.subr.bf16.mxu0 0
          %911 = vmatpush1.bf16.msra.mxu0 0
          %912 = vmatprep.subr.bf16.mxu0 0
          %913 = vmatpush1.bf16.msra.mxu0 0
          %914 = vmatprep.subr.bf16.mxu0 0
          %915 = vmatpush1.bf16.msra.mxu0 0
          %916 = vmatprep.subr.bf16.mxu0 0
          %917 = vmatpush1.bf16.msra.mxu0 0
          %918 = vmatprep.subr.bf16.mxu0 0
          %919 = vmatpush1.bf16.msra.mxu0 0
          %920 = vmatprep.subr.bf16.mxu0 0
          %921 = vmatpush1.bf16.msra.mxu0 0
          %922 = vmatprep.subr.bf16.mxu0 0
          %923 = vmatpush1.bf16.msra.mxu0 0
          %924 = vmatprep.mubr.bf16.mxu0 0
          %925 = vmatmul.mubr.bf16.gmra.mrb[0].mxu0 %v464
          %v926 = vpop.f32.mrb[0].mxu0
          %v927 = vadd.f32 0.0, %v926
          %v928 = vpop.f32.mrb[0].mxu0
          %v929 = vpop.f32.mrb[0].mxu0
          %v930 = vpop.f32.mrb[0].mxu0
          %931 = vdwg.mxu0
          %v948 = vunpack.c.l.b16 %v388
          %v949 = vunpack.c.l.b16 %v389
          %v950 = vunpack.c.l.b16 %v390
          %v951 = vunpack.c.l.b16 %v391
          %v952 = vunpack.c.l.b16 %v392
          %v953 = vunpack.c.l.b16 %v393
          %v954 = vunpack.c.l.b16 %v394
          %v955 = vunpack.c.l.b16 %v395
          %v956 = vunpack.c.l.b16 %v396
          %v957 = vunpack.c.l.b16 %v397
          %v958 = vunpack.c.l.b16 %v398
          %v959 = vunpack.c.l.b16 %v399
          %v960 = vunpack.c.l.b16 %v400
          %v961 = vunpack.c.l.b16 %v401
          %v962 = vunpack.c.l.b16 %v402
          %v963 = vunpack.c.l.b16 %v403
          %v964 = vpack.c.b16 %v949, %v948
          %v965 = vpack.c.b16 %v951, %v950
          %v966 = vpack.c.b16 %v953, %v952
          %v967 = vpack.c.b16 %v955, %v954
          %v968 = vpack.c.b16 %v957, %v956
          %v969 = vpack.c.b16 %v959, %v958
          %v970 = vpack.c.b16 %v961, %v960
          %v971 = vpack.c.b16 %v963, %v962
          %980 = vmatprep.subr.bf16.mxu0 0
          %981 = vmatpush1.bf16.msra.mxu0 %v964
          %982 = vmatprep.subr.bf16.mxu0 0
          %983 = vmatpush1.bf16.msra.mxu0 %v965
          %984 = vmatprep.subr.bf16.mxu0 0
          %985 = vmatpush1.bf16.msra.mxu0 %v966
          %986 = vmatprep.subr.bf16.mxu0 0
          %987 = vmatpush1.bf16.msra.mxu0 %v967
          %988 = vmatprep.subr.bf16.mxu0 0
          %989 = vmatpush1.bf16.msra.mxu0 %v968
          %990 = vmatprep.subr.bf16.mxu0 0
          %991 = vmatpush1.bf16.msra.mxu0 %v969
          %992 = vmatprep.subr.bf16.mxu0 0
          %993 = vmatpush1.bf16.msra.mxu0 %v970
          %994 = vmatprep.subr.bf16.mxu0 0
          %995 = vmatpush1.bf16.msra.mxu0 %v971
          %996 = vmatprep.subr.bf16.mxu0 0
          %997 = vmatpush1.bf16.msra.mxu0 0
          %998 = vmatprep.subr.bf16.mxu0 0
          %999 = vmatpush1.bf16.msra.mxu0 0
          %1000 = vmatprep.subr.bf16.mxu0 0
          %1001 = vmatpush1.bf16.msra.mxu0 0
          %1002 = vmatprep.subr.bf16.mxu0 0
          %1003 = vmatpush1.bf16.msra.mxu0 0
          %1004 = vmatprep.subr.bf16.mxu0 0
          %1005 = vmatpush1.bf16.msra.mxu0 0
          %1006 = vmatprep.subr.bf16.mxu0 0
          %1007 = vmatpush1.bf16.msra.mxu0 0
          %1008 = vmatprep.subr.bf16.mxu0 0
          %1009 = vmatpush1.bf16.msra.mxu0 0
          %1010 = vmatprep.subr.bf16.mxu0 0
          %1011 = vmatpush1.bf16.msra.mxu0 0
          %1012 = vmatprep.mubr.bf16.mxu0 0
          %1013 = vmatmul.mubr.bf16.gmra.mrb[0].mxu0 %v489
          %v1014 = vpop.f32.mrb[0].mxu0
          %v1015 = vadd.f32 0.0, %v1014
          %v1016 = vpop.f32.mrb[0].mxu0
          %v1017 = vpop.f32.mrb[0].mxu0
          %v1018 = vpop.f32.mrb[0].mxu0
          %1019 = vdwg.mxu0
          %v1036 = vunpack.c.l.b16 %v404
          %v1037 = vunpack.c.l.b16 %v405
          %v1038 = vunpack.c.l.b16 %v406
          %v1039 = vunpack.c.l.b16 %v407
          %v1040 = vunpack.c.l.b16 %v408
          %v1041 = vunpack.c.l.b16 %v409
          %v1042 = vunpack.c.l.b16 %v410
          %v1043 = vunpack.c.l.b16 %v411
          %v1044 = vunpack.c.l.b16 %v412
          %v1045 = vunpack.c.l.b16 %v413
          %v1046 = vunpack.c.l.b16 %v414
          %v1047 = vunpack.c.l.b16 %v415
          %v1048 = vunpack.c.l.b16 %v416
          %v1049 = vunpack.c.l.b16 %v417
          %v1050 = vunpack.c.l.b16 %v418
          %v1051 = vunpack.c.l.b16 %v419
          %v1052 = vpack.c.b16 %v1037, %v1036
          %v1053 = vpack.c.b16 %v1039, %v1038
          %v1054 = vpack.c.b16 %v1041, %v1040
          %v1055 = vpack.c.b16 %v1043, %v1042
          %v1056 = vpack.c.b16 %v1045, %v1044
          %v1057 = vpack.c.b16 %v1047, %v1046
          %v1058 = vpack.c.b16 %v1049, %v1048
          %v1059 = vpack.c.b16 %v1051, %v1050
          %1068 = vmatprep.subr.bf16.mxu0 0
          %1069 = vmatpush1.bf16.msra.mxu0 %v1052
          %1070 = vmatprep.subr.bf16.mxu0 0
          %1071 = vmatpush1.bf16.msra.mxu0 %v1053
          %1072 = vmatprep.subr.bf16.mxu0 0
          %1073 = vmatpush1.bf16.msra.mxu0 %v1054
          %1074 = vmatprep.subr.bf16.mxu0 0
          %1075 = vmatpush1.bf16.msra.mxu0 %v1055
          %1076 = vmatprep.subr.bf16.mxu0 0
          %1077 = vmatpush1.bf16.msra.mxu0 %v1056
          %1078 = vmatprep.subr.bf16.mxu0 0
          %1079 = vmatpush1.bf16.msra.mxu0 %v1057
          %1080 = vmatprep.subr.bf16.mxu0 0
          %1081 = vmatpush1.bf16.msra.mxu0 %v1058
          %1082 = vmatprep.subr.bf16.mxu0 0
          %1083 = vmatpush1.bf16.msra.mxu0 %v1059
          %1084 = vmatprep.subr.bf16.mxu0 0
          %1085 = vmatpush1.bf16.msra.mxu0 0
          %1086 = vmatprep.subr.bf16.mxu0 0
          %1087 = vmatpush1.bf16.msra.mxu0 0
          %1088 = vmatprep.subr.bf16.mxu0 0
          %1089 = vmatpush1.bf16.msra.mxu0 0
          %1090 = vmatprep.subr.bf16.mxu0 0
          %1091 = vmatpush1.bf16.msra.mxu0 0
          %1092 = vmatprep.subr.bf16.mxu0 0
          %1093 = vmatpush1.bf16.msra.mxu0 0
          %1094 = vmatprep.subr.bf16.mxu0 0
          %1095 = vmatpush1.bf16.msra.mxu0 0
          %1096 = vmatprep.subr.bf16.mxu0 0
          %1097 = vmatpush1.bf16.msra.mxu0 0
          %1098 = vmatprep.subr.bf16.mxu0 0
          %1099 = vmatpush1.bf16.msra.mxu0 0
          %1100 = vmatprep.mubr.bf16.mxu0 0
          %1101 = vmatmul.mubr.bf16.gmra.mrb[0].mxu0 %v466
          %v1102 = vpop.f32.mrb[0].mxu0
          %v1103 = vadd.f32 0.0, %v1102
          %v1104 = vpop.f32.mrb[0].mxu0
          %v1105 = vpop.f32.mrb[0].mxu0
          %v1106 = vpop.f32.mrb[0].mxu0
          %1107 = vdwg.mxu0
          %v1124 = vunpack.c.l.b16 %v420
          %v1125 = vunpack.c.l.b16 %v421
          %v1126 = vunpack.c.l.b16 %v422
          %v1127 = vunpack.c.l.b16 %v423
          %v1128 = vunpack.c.l.b16 %v424
          %v1129 = vunpack.c.l.b16 %v425
          %v1130 = vunpack.c.l.b16 %v426
          %v1131 = vunpack.c.l.b16 %v427
          %v1132 = vunpack.c.l.b16 %v428
          %v1133 = vunpack.c.l.b16 %v429
          %v1134 = vunpack.c.l.b16 %v430
          %v1135 = vunpack.c.l.b16 %v431
          %v1136 = vunpack.c.l.b16 %v432
          %v1137 = vunpack.c.l.b16 %v433
          %v1138 = vunpack.c.l.b16 %v434
          %v1139 = vunpack.c.l.b16 %v435
          %v1140 = vpack.c.b16 %v1125, %v1124
          %v1141 = vpack.c.b16 %v1127, %v1126
          %v1142 = vpack.c.b16 %v1129, %v1128
          %v1143 = vpack.c.b16 %v1131, %v1130
          %v1144 = vpack.c.b16 %v1133, %v1132
          %v1145 = vpack.c.b16 %v1135, %v1134
          %v1146 = vpack.c.b16 %v1137, %v1136
          %v1147 = vpack.c.b16 %v1139, %v1138
          %1156 = vmatprep.subr.bf16.mxu0 0
          %1157 = vmatpush1.bf16.msra.mxu0 %v1140
          %1158 = vmatprep.subr.bf16.mxu0 0
          %1159 = vmatpush1.bf16.msra.mxu0 %v1141
          %1160 = vmatprep.subr.bf16.mxu0 0
          %1161 = vmatpush1.bf16.msra.mxu0 %v1142
          %1162 = vmatprep.subr.bf16.mxu0 0
          %1163 = vmatpush1.bf16.msra.mxu0 %v1143
          %1164 = vmatprep.subr.bf16.mxu0 0
          %1165 = vmatpush1.bf16.msra.mxu0 %v1144
          %1166 = vmatprep.subr.bf16.mxu0 0
          %1167 = vmatpush1.bf16.msra.mxu0 %v1145
          %1168 = vmatprep.subr.bf16.mxu0 0
          %1169 = vmatpush1.bf16.msra.mxu0 %v1146
          %1170 = vmatprep.subr.bf16.mxu0 0
          %1171 = vmatpush1.bf16.msra.mxu0 %v1147
          %1172 = vmatprep.subr.bf16.mxu0 0
          %1173 = vmatpush1.bf16.msra.mxu0 0
          %1174 = vmatprep.subr.bf16.mxu0 0
          %1175 = vmatpush1.bf16.msra.mxu0 0
          %1176 = vmatprep.subr.bf16.mxu0 0
          %1177 = vmatpush1.bf16.msra.mxu0 0
          %1178 = vmatprep.subr.bf16.mxu0 0
          %1179 = vmatpush1.bf16.msra.mxu0 0
          %1180 = vmatprep.subr.bf16.mxu0 0
          %1181 = vmatpush1.bf16.msra.mxu0 0
          %1182 = vmatprep.subr.bf16.mxu0 0
          %1183 = vmatpush1.bf16.msra.mxu0 0
          %1184 = vmatprep.subr.bf16.mxu0 0
          %1185 = vmatpush1.bf16.msra.mxu0 0
          %1186 = vmatprep.subr.bf16.mxu0 0
          %1187 = vmatpush1.bf16.msra.mxu0 0
          %1188 = vmatprep.mubr.bf16.mxu0 0
          %1189 = vmatmul.mubr.bf16.gmra.mrb[0].mxu0 %v491
          %v1190 = vpop.f32.mrb[0].mxu0
          %v1191 = vadd.f32 0.0, %v1190
          %v1192 = vpop.f32.mrb[0].mxu0
          %v1193 = vpop.f32.mrb[0].mxu0
          %v1194 = vpop.f32.mrb[0].mxu0
          %1195 = vdwg.mxu0
          %v1196 = vadd.f32 %v298, %v575
          %v1197 = vadd.f32 %v299, %v663
          %v1198 = vadd.f32 %v300, %v751
          %v1199 = vadd.f32 %v301, %v839
          %v1200 = vadd.f32 %v302, %v927
          %v1201 = vadd.f32 %v303, %v1015
          %v1202 = vadd.f32 %v304, %v1103
          %v1203 = vadd.f32 %v305, %v1191
          %1204 = vst [vmem:[#allocation2] sm:$0x3] %v1196
          %1205 = vst [vmem:[#allocation2 + $0x2] sm:$0x3] %v1197
          %1206 = vst [vmem:[#allocation2 + $0x4] sm:$0x3] %v1198
          %1207 = vst [vmem:[#allocation2 + $0x6] sm:$0x3] %v1199
          %1208 = vst [vmem:[#allocation2 + $0x8] sm:$0x3] %v1200
          %1209 = vst [vmem:[#allocation2 + $0xa] sm:$0x3] %v1201
          %1210 = vst [vmem:[#allocation2 + $0xc] sm:$0x3] %v1202
          %1211 = vst [vmem:[#allocation2 + $0xe] sm:$0x3] %v1203
        $region77: #{s4decoder_forward.8} parent=64 // pred_fallthru
          _
        // Predicated region
        $region78: #{s4decoder_forward.8} parent=64 // pred_check
          %p1212 = pneg %p282
        $region79: #{s4decoder_forward.8} parent=64 // pred_check_branch
          %1214 = sbr.rel (%p1212) target = $region81
        $region80: #{s4decoder_forward.8} parent=64 // pred_region
          %v1215 = vld [vmem:[#allocation2] sm:$0x3]
          %v1216 = vld [vmem:[#allocation2 + $0x2] sm:$0x3]
          %v1217 = vld [vmem:[#allocation2 + $0x4] sm:$0x3]
          %v1218 = vld [vmem:[#allocation2 + $0x6] sm:$0x3]
          %v1219 = vld [vmem:[#allocation2 + $0x8] sm:$0x3]
          %v1220 = vld [vmem:[#allocation2 + $0xa] sm:$0x3]
          %v1221 = vld [vmem:[#allocation2 + $0xc] sm:$0x3]
          %v1222 = vld [vmem:[#allocation2 + $0xe] sm:$0x3]
          %v1223 = vpack.c.bf16 %v1215, %v1215
          %v1226 = vunpack.c.l.s4 1966171168
          %v1227 = vunpack.c.0.s8 %v1226
          %v1228 = vlaneseq
          %v1229 = vshrl.u32 %v1228, 7
          %v1230 = vsub.s32 %v1227, %v1229
          %v1231 = vrot.slane %v1223, %v1230
          %v1233 = vunpack.c.l.s4 1966171168
          %v1234 = vunpack.c.0.s8 %v1233
          %v1235 = vlaneseq
          %v1236 = vshrl.u32 %v1235, 7
          %v1237 = vsub.s32 %v1234, %v1236
          %v1238 = vrot.slane %v1231, %v1237
          %v1239 = vunpack.i.l.s16 %v1238
          %v1240 = vunpack.i.h.s16 %v1238
          %v1241 = vpack.i.b16 %v1239, %v1239
          %v1242 = vpack.i.b16 %v1240, %v1240
          %v1244 = vunpack.c.l.s4 286326784
          %v1245 = vunpack.c.0.s8 %v1244
          %v1246 = vlaneseq
          %v1247 = vshrl.u32 %v1246, 7
          %v1248 = vsub.s32 %v1245, %v1247
          %v1249 = vrot.slane %v1241, %v1248
          %v1251 = vunpack.c.l.s4 286326784
          %v1252 = vunpack.c.0.s8 %v1251
          %v1253 = vlaneseq
          %v1254 = vshrl.u32 %v1253, 7
          %v1255 = vsub.s32 %v1252, %v1254
          %v1256 = vrot.slane %v1242, %v1255
          %vm1259 = vcmask 1040384
          %vm1260 = vsmask.f32 256
          %vm1261 = vmand %vm1259, %vm1260
          %v1262 = vld [vmem:[%s259] sm:$0x1]
          %v1263 = vsel %vm1261, %v1249, %v1262
          %1264 = vst [vmem:[%s259] sm:$0x1] %v1263
          %v1265 = vld [vmem:[%s259 + $0x4] sm:$0x1]
          %v1266 = vsel %vm1261, %v1256, %v1265
          %1267 = vst [vmem:[%s259 + $0x4] sm:$0x1] %v1266
          %v1268 = vpack.c.bf16 %v1216, %v1216
          %v1271 = vunpack.c.l.s4 1966171168
          %v1272 = vunpack.c.0.s8 %v1271
          %v1273 = vlaneseq
          %v1274 = vshrl.u32 %v1273, 7
          %v1275 = vsub.s32 %v1272, %v1274
          %v1276 = vrot.slane %v1268, %v1275
          %v1278 = vunpack.c.l.s4 1966171168
          %v1279 = vunpack.c.0.s8 %v1278
          %v1280 = vlaneseq
          %v1281 = vshrl.u32 %v1280, 7
          %v1282 = vsub.s32 %v1279, %v1281
          %v1283 = vrot.slane %v1276, %v1282
          %v1284 = vunpack.i.l.s16 %v1283
          %v1285 = vunpack.i.h.s16 %v1283
          %v1286 = vpack.i.b16 %v1284, %v1284
          %v1287 = vpack.i.b16 %v1285, %v1285
          %v1289 = vunpack.c.l.s4 286326784
          %v1290 = vunpack.c.0.s8 %v1289
          %v1291 = vlaneseq
          %v1292 = vshrl.u32 %v1291, 7
          %v1293 = vsub.s32 %v1290, %v1292
          %v1294 = vrot.slane %v1286, %v1293
          %v1296 = vunpack.c.l.s4 286326784
          %v1297 = vunpack.c.0.s8 %v1296
          %v1298 = vlaneseq
          %v1299 = vshrl.u32 %v1298, 7
          %v1300 = vsub.s32 %v1297, %v1299
          %v1301 = vrot.slane %v1287, %v1300
          %vm1304 = vsmask.f32 7938
          %vm1305 = vmand %vm1259, %vm1304
          %v1306 = vld [vmem:[%s259] sm:$0x1]
          %v1307 = vsel %vm1305, %v1294, %v1306
          %1308 = vst [vmem:[%s259] sm:$0x1] %v1307
          %v1309 = vld [vmem:[%s259 + $0x4] sm:$0x1]
          %v1310 = vsel %vm1305, %v1301, %v1309
          %1311 = vst [vmem:[%s259 + $0x4] sm:$0x1] %v1310
          %v1312 = vpack.c.bf16 %v1217, %v1217
          %v1315 = vunpack.c.l.s4 1966171168
          %v1316 = vunpack.c.0.s8 %v1315
          %v1317 = vlaneseq
          %v1318 = vshrl.u32 %v1317, 7
          %v1319 = vsub.s32 %v1316, %v1318
          %v1320 = vrot.slane %v1312, %v1319
          %v1322 = vunpack.c.l.s4 1966171168
          %v1323 = vunpack.c.0.s8 %v1322
          %v1324 = vlaneseq
          %v1325 = vshrl.u32 %v1324, 7
          %v1326 = vsub.s32 %v1323, %v1325
          %v1327 = vrot.slane %v1320, %v1326
          %v1328 = vunpack.i.l.s16 %v1327
          %v1329 = vunpack.i.h.s16 %v1327
          %v1330 = vpack.i.b16 %v1328, %v1328
          %v1331 = vpack.i.b16 %v1329, %v1329
          %v1333 = vunpack.c.l.s4 286326784
          %v1334 = vunpack.c.0.s8 %v1333
          %v1335 = vlaneseq
          %v1336 = vshrl.u32 %v1335, 7
          %v1337 = vsub.s32 %v1334, %v1336
          %v1338 = vrot.slane %v1330, %v1337
          %v1340 = vunpack.c.l.s4 286326784
          %v1341 = vunpack.c.0.s8 %v1340
          %v1342 = vlaneseq
          %v1343 = vshrl.u32 %v1342, 7
          %v1344 = vsub.s32 %v1341, %v1343
          %v1345 = vrot.slane %v1331, %v1344
          %vm1348 = vcmask 1041409
          %vm1349 = vsmask.f32 1280
          %vm1350 = vmand %vm1348, %vm1349
          %v1351 = vld [vmem:[%s259] sm:$0x2]
          %v1352 = vsel %vm1350, %v1338, %v1351
          %1353 = vst [vmem:[%s259] sm:$0x2] %v1352
          %v1354 = vld [vmem:[%s259 + $0x4] sm:$0x2]
          %v1355 = vsel %vm1350, %v1345, %v1354
          %1356 = vst [vmem:[%s259 + $0x4] sm:$0x2] %v1355
          %v1357 = vpack.c.bf16 %v1218, %v1218
          %v1360 = vunpack.c.l.s4 1966171168
          %v1361 = vunpack.c.0.s8 %v1360
          %v1362 = vlaneseq
          %v1363 = vshrl.u32 %v1362, 7
          %v1364 = vsub.s32 %v1361, %v1363
          %v1365 = vrot.slane %v1357, %v1364
          %v1367 = vunpack.c.l.s4 1966171168
          %v1368 = vunpack.c.0.s8 %v1367
          %v1369 = vlaneseq
          %v1370 = vshrl.u32 %v1369, 7
          %v1371 = vsub.s32 %v1368, %v1370
          %v1372 = vrot.slane %v1365, %v1371
          %v1373 = vunpack.i.l.s16 %v1372
          %v1374 = vunpack.i.h.s16 %v1372
          %v1375 = vpack.i.b16 %v1373, %v1373
          %v1376 = vpack.i.b16 %v1374, %v1374
          %v1378 = vunpack.c.l.s4 286326784
          %v1379 = vunpack.c.0.s8 %v1378
          %v1380 = vlaneseq
          %v1381 = vshrl.u32 %v1380, 7
          %v1382 = vsub.s32 %v1379, %v1381
          %v1383 = vrot.slane %v1375, %v1382
          %v1385 = vunpack.c.l.s4 286326784
          %v1386 = vunpack.c.0.s8 %v1385
          %v1387 = vlaneseq
          %v1388 = vshrl.u32 %v1387, 7
          %v1389 = vsub.s32 %v1386, %v1388
          %v1390 = vrot.slane %v1376, %v1389
          %vm1393 = vsmask.f32 7942
          %vm1394 = vmand %vm1348, %vm1393
          %v1395 = vld [vmem:[%s259] sm:$0x2]
          %v1396 = vsel %vm1394, %v1383, %v1395
          %1397 = vst [vmem:[%s259] sm:$0x2] %v1396
          %v1398 = vld [vmem:[%s259 + $0x4] sm:$0x2]
          %v1399 = vsel %vm1394, %v1390, %v1398
          %1400 = vst [vmem:[%s259 + $0x4] sm:$0x2] %v1399
          %v1401 = vpack.c.bf16 %v1219, %v1219
          %v1404 = vunpack.c.l.s4 1966171168
          %v1405 = vunpack.c.0.s8 %v1404
          %v1406 = vlaneseq
          %v1407 = vshrl.u32 %v1406, 7
          %v1408 = vsub.s32 %v1405, %v1407
          %v1409 = vrot.slane %v1401, %v1408
          %v1411 = vunpack.c.l.s4 1966171168
          %v1412 = vunpack.c.0.s8 %v1411
          %v1413 = vlaneseq
          %v1414 = vshrl.u32 %v1413, 7
          %v1415 = vsub.s32 %v1412, %v1414
          %v1416 = vrot.slane %v1409, %v1415
          %v1417 = vunpack.i.l.s16 %v1416
          %v1418 = vunpack.i.h.s16 %v1416
          %v1419 = vpack.i.b16 %v1417, %v1417
          %v1420 = vpack.i.b16 %v1418, %v1418
          %v1422 = vunpack.c.l.s4 286326784
          %v1423 = vunpack.c.0.s8 %v1422
          %v1424 = vlaneseq
          %v1425 = vshrl.u32 %v1424, 7
          %v1426 = vsub.s32 %v1423, %v1425
          %v1427 = vrot.slane %v1419, %v1426
          %v1429 = vunpack.c.l.s4 286326784
          %v1430 = vunpack.c.0.s8 %v1429
          %v1431 = vlaneseq
          %v1432 = vshrl.u32 %v1431, 7
          %v1433 = vsub.s32 %v1430, %v1432
          %v1434 = vrot.slane %v1420, %v1433
          %vm1437 = vcmask 1042434
          %vm1438 = vsmask.f32 2304
          %vm1439 = vmand %vm1437, %vm1438
          %v1440 = vld [vmem:[%s259] sm:$0x4]
          %v1441 = vsel %vm1439, %v1427, %v1440
          %1442 = vst [vmem:[%s259] sm:$0x4] %v1441
          %v1443 = vld [vmem:[%s259 + $0x4] sm:$0x4]
          %v1444 = vsel %vm1439, %v1434, %v1443
          %1445 = vst [vmem:[%s259 + $0x4] sm:$0x4] %v1444
          %v1446 = vpack.c.bf16 %v1220, %v1220
          %v1449 = vunpack.c.l.s4 1966171168
          %v1450 = vunpack.c.0.s8 %v1449
          %v1451 = vlaneseq
          %v1452 = vshrl.u32 %v1451, 7
          %v1453 = vsub.s32 %v1450, %v1452
          %v1454 = vrot.slane %v1446, %v1453
          %v1456 = vunpack.c.l.s4 1966171168
          %v1457 = vunpack.c.0.s8 %v1456
          %v1458 = vlaneseq
          %v1459 = vshrl.u32 %v1458, 7
          %v1460 = vsub.s32 %v1457, %v1459
          %v1461 = vrot.slane %v1454, %v1460
          %v1462 = vunpack.i.l.s16 %v1461
          %v1463 = vunpack.i.h.s16 %v1461
          %v1464 = vpack.i.b16 %v1462, %v1462
          %v1465 = vpack.i.b16 %v1463, %v1463
          %v1467 = vunpack.c.l.s4 286326784
          %v1468 = vunpack.c.0.s8 %v1467
          %v1469 = vlaneseq
          %v1470 = vshrl.u32 %v1469, 7
          %v1471 = vsub.s32 %v1468, %v1470
          %v1472 = vrot.slane %v1464, %v1471
          %v1474 = vunpack.c.l.s4 286326784
          %v1475 = vunpack.c.0.s8 %v1474
          %v1476 = vlaneseq
          %v1477 = vshrl.u32 %v1476, 7
          %v1478 = vsub.s32 %v1475, %v1477
          %v1479 = vrot.slane %v1465, %v1478
          %vm1482 = vsmask.f32 7946
          %vm1483 = vmand %vm1437, %vm1482
          %v1484 = vld [vmem:[%s259] sm:$0x4]
          %v1485 = vsel %vm1483, %v1472, %v1484
          %1486 = vst [vmem:[%s259] sm:$0x4] %v1485
          %v1487 = vld [vmem:[%s259 + $0x4] sm:$0x4]
          %v1488 = vsel %vm1483, %v1479, %v1487
          %1489 = vst [vmem:[%s259 + $0x4] sm:$0x4] %v1488
          %v1490 = vpack.c.bf16 %v1221, %v1221
          %v1493 = vunpack.c.l.s4 1966171168
          %v1494 = vunpack.c.0.s8 %v1493
          %v1495 = vlaneseq
          %v1496 = vshrl.u32 %v1495, 7
          %v1497 = vsub.s32 %v1494, %v1496
          %v1498 = vrot.slane %v1490, %v1497
          %v1500 = vunpack.c.l.s4 1966171168
          %v1501 = vunpack.c.0.s8 %v1500
          %v1502 = vlaneseq
          %v1503 = vshrl.u32 %v1502, 7
          %v1504 = vsub.s32 %v1501, %v1503
          %v1505 = vrot.slane %v1498, %v1504
          %v1506 = vunpack.i.l.s16 %v1505
          %v1507 = vunpack.i.h.s16 %v1505
          %v1508 = vpack.i.b16 %v1506, %v1506
          %v1509 = vpack.i.b16 %v1507, %v1507
          %v1511 = vunpack.c.l.s4 286326784
          %v1512 = vunpack.c.0.s8 %v1511
          %v1513 = vlaneseq
          %v1514 = vshrl.u32 %v1513, 7
          %v1515 = vsub.s32 %v1512, %v1514
          %v1516 = vrot.slane %v1508, %v1515
          %v1518 = vunpack.c.l.s4 286326784
          %v1519 = vunpack.c.0.s8 %v1518
          %v1520 = vlaneseq
          %v1521 = vshrl.u32 %v1520, 7
          %v1522 = vsub.s32 %v1519, %v1521
          %v1523 = vrot.slane %v1509, %v1522
          %vm1526 = vcmask 1043459
          %vm1527 = vsmask.f32 3328
          %vm1528 = vmand %vm1526, %vm1527
          %v1529 = vld [vmem:[%s259] sm:$0x8]
          %v1530 = vsel %vm1528, %v1516, %v1529
          %1531 = vst [vmem:[%s259] sm:$0x8] %v1530
          %v1532 = vld [vmem:[%s259 + $0x4] sm:$0x8]
          %v1533 = vsel %vm1528, %v1523, %v1532
          %1534 = vst [vmem:[%s259 + $0x4] sm:$0x8] %v1533
          %v1535 = vpack.c.bf16 %v1222, %v1222
          %v1538 = vunpack.c.l.s4 1966171168
          %v1539 = vunpack.c.0.s8 %v1538
          %v1540 = vlaneseq
          %v1541 = vshrl.u32 %v1540, 7
          %v1542 = vsub.s32 %v1539, %v1541
          %v1543 = vrot.slane %v1535, %v1542
          %v1545 = vunpack.c.l.s4 1966171168
          %v1546 = vunpack.c.0.s8 %v1545
          %v1547 = vlaneseq
          %v1548 = vshrl.u32 %v1547, 7
          %v1549 = vsub.s32 %v1546, %v1548
          %v1550 = vrot.slane %v1543, %v1549
          %v1551 = vunpack.i.l.s16 %v1550
          %v1552 = vunpack.i.h.s16 %v1550
          %v1553 = vpack.i.b16 %v1551, %v1551
          %v1554 = vpack.i.b16 %v1552, %v1552
          %v1556 = vunpack.c.l.s4 286326784
          %v1557 = vunpack.c.0.s8 %v1556
          %v1558 = vlaneseq
          %v1559 = vshrl.u32 %v1558, 7
          %v1560 = vsub.s32 %v1557, %v1559
          %v1561 = vrot.slane %v1553, %v1560
          %v1563 = vunpack.c.l.s4 286326784
          %v1564 = vunpack.c.0.s8 %v1563
          %v1565 = vlaneseq
          %v1566 = vshrl.u32 %v1565, 7
          %v1567 = vsub.s32 %v1564, %v1566
          %v1568 = vrot.slane %v1554, %v1567
          %vm1571 = vsmask.f32 7950
          %vm1572 = vmand %vm1526, %vm1571
          %v1573 = vld [vmem:[%s259] sm:$0x8]
          %v1574 = vsel %vm1572, %v1561, %v1573
          %1575 = vst [vmem:[%s259] sm:$0x8] %v1574
          %v1576 = vld [vmem:[%s259 + $0x4] sm:$0x8]
          %v1577 = vsel %vm1572, %v1568, %v1576
          %1578 = vst [vmem:[%s259 + $0x4] sm:$0x8] %v1577
        $region81: #{s4decoder_forward.8} parent=64 // pred_fallthru
          _
        %s1579 = sand.u32 %s108, 1
        %s1580 = sand.u32 %s108, 1
        %s1581 = smul.addr %s1580, 8
        %s1582 = scalar_lea.vmem [#allocation4], %s1581
        // Predicated region
        $region82: #{s4decoder_forward.8} parent=64 // pred_check
          %p1583 = pneg %p118
        $region83: #{s4decoder_forward.8} parent=64 // pred_check_branch
          %1585 = sbr.rel (%p1583) target = $region85
        $region84: #{s4decoder_forward.8} parent=64 // pred_region
          %s1586 = sadd.s32 %s19, %s18
          %s1587 = smul.addr %s1586, 4
          %s1588 = scalar_lea.vmem %s2, %s1587
          // Predicated region
          $region86: #{s4decoder_forward.8} parent=84 // pred_check
            _
          $region87: #{s4decoder_forward.8} parent=84 // pred_check_branch
            %1590 = sbr.rel (0) target = $region89
          $region88: #{s4decoder_forward.8} parent=84 // pred_region
            // Predicated region
            $region90: #{s4decoder_forward.8} parent=88 // pred_check
              _
            $region91: #{s4decoder_forward.8} parent=88 // pred_check_branch
              %1592 = sbr.rel target = $region93
            $region92: #{s4decoder_forward.8} parent=88 // pred_region
              // Predicated region
              $region105: #{s4decoder_forward.8} parent=92 // pred_check
                _
              $region106: #{s4decoder_forward.8} parent=92 // pred_check_branch
                %1609 = sbr.rel (0) target = $region108
              $region107: #{s4decoder_forward.8} parent=92 // pred_region
                loop: start=0, step=1, limit=1
                $region109: #{s4decoder_forward.8} parent=107 // loop_pre_header
                  _
                $region110: #{s4decoder_forward.8} parent=107 // loop_header
                  %s1611 = sphi 0, %s1615
                  %p1612 = scmp.ge.s32.totalorder %s1611, 1
                  %s1616 = sphi %s1582, %s1582
                  %s1617 = sphi %s1588, %s1588
                $region111: #{s4decoder_forward.8} parent=107 // loop_header_branch
                  %1614 = sbr.rel (%p1612) target = $region115
                $region112: #{s4decoder_forward.8} parent=107 // loop_body
                  _
                $region113: #{s4decoder_forward.8} parent=107 // loop_footer
                  %s1615 = sadd.s32 1, %s1611
                $region114: #{s4decoder_forward.8} parent=107 // loop_footer_branch
                  %1610 = sbr.rel target = $region110
                $region115: #{s4decoder_forward.8} parent=107 // loop_exit
                  _
                loop: start=0, step=1, limit=1
                $region116: #{s4decoder_forward.8} parent=107 // loop_pre_header
                  _
                $region117: #{s4decoder_forward.8} parent=107 // loop_header
                  %s1620 = sphi 0, %s1624
                  %p1621 = scmp.ge.s32.totalorder %s1620, 1
                  %s1625 = sphi %s1582, %s1582
                  %s1626 = sphi %s1588, %s1588
                $region118: #{s4decoder_forward.8} parent=107 // loop_header_branch
                  %1623 = sbr.rel (%p1621) target = $region122
                $region119: #{s4decoder_forward.8} parent=107 // loop_body
                  %v1627 = vld [vmem:[%s1625] sm:$0xf]
                  %1628 = vst [vmem:[%s1626] sm:$0xf] %v1627
                  %v1629 = vld [vmem:[%s1625 + $0x4] sm:$0xf]
                  %1630 = vst [vmem:[%s1626 + $0x8] sm:$0xf] %v1629
                $region120: #{s4decoder_forward.8} parent=107 // loop_footer
                  %s1624 = sadd.s32 1, %s1620
                $region121: #{s4decoder_forward.8} parent=107 // loop_footer_branch
                  %1619 = sbr.rel target = $region117
                $region122: #{s4decoder_forward.8} parent=107 // loop_exit
                  _
              $region108: #{s4decoder_forward.8} parent=92 // pred_fallthru
                _
            $region93: #{s4decoder_forward.8} parent=88 // pred_fallthru
              _
            // Predicated region
            $region94: #{s4decoder_forward.8} parent=88 // pred_check
              _
            $region95: #{s4decoder_forward.8} parent=88 // pred_check_branch
              %1594 = sbr.rel (0) target = $region97
            $region96: #{s4decoder_forward.8} parent=88 // pred_region
              loop: start=0, step=1, limit=1
              $region98: #{s4decoder_forward.8} parent=96 // loop_pre_header
                _
              $region99: #{s4decoder_forward.8} parent=96 // loop_header
                %s1597 = sphi 0, %s1601
                %p1598 = scmp.ge.s32.totalorder %s1597, 1
                %s1602 = sphi %s1582, %s1582
                %s1603 = sphi %s1588, %s1588
              $region100: #{s4decoder_forward.8} parent=96 // loop_header_branch
                %1600 = sbr.rel (%p1598) target = $region104
              $region101: #{s4decoder_forward.8} parent=96 // loop_body
                %v1604 = vld [vmem:[%s1602] sm:$0xf]
                %1605 = vst [vmem:[%s1603] sm:$0xf] %v1604
                %v1606 = vld [vmem:[%s1602 + $0x4] sm:$0xf]
                %1607 = vst [vmem:[%s1603 + $0x8] sm:$0xf] %v1606
              $region102: #{s4decoder_forward.8} parent=96 // loop_footer
                %s1601 = sadd.s32 1, %s1597
              $region103: #{s4decoder_forward.8} parent=96 // loop_footer_branch
                %1596 = sbr.rel target = $region99
              $region104: #{s4decoder_forward.8} parent=96 // loop_exit
                _
            $region97: #{s4decoder_forward.8} parent=88 // pred_fallthru
              _
          $region89: #{s4decoder_forward.8} parent=84 // pred_fallthru
            _
          %1631 = vnop
        $region85: #{s4decoder_forward.8} parent=64 // pred_fallthru
          _
      $region65: #{s4decoder_forward.8} parent=5 // pred_fallthru
        _
      %p1632 = scmp.le.s32.totalorder 2, %s8
      // Predicated region
      $region123: #{s4decoder_forward.8} parent=5 // pred_check
        %p1633 = pneg %p1632
      $region124: #{s4decoder_forward.8} parent=5 // pred_check_branch
        %1635 = sbr.rel (%p1633) target = $region126
      $region125: #{s4decoder_forward.8} parent=5 // pred_region
        %s1636 = ssub.s32 %s8, 2
        // Predicated region
        $region127: #{s4decoder_forward.8} parent=125 // pred_check
          %p1637 = pneg %p124
        $region128: #{s4decoder_forward.8} parent=125 // pred_check_branch
          %1639 = sbr.rel (%p1637) target = $region130
        $region129: #{s4decoder_forward.8} parent=125 // pred_region
          %s1640 = sand.u32 %s109, 1
          %s1641 = sand.u32 %s109, 1
          %s1642 = smul.addr %s1641, 8
          %s1643 = scalar_lea.vmem [#allocation4], %s1642
        $region130: #{s4decoder_forward.8} parent=125 // pred_fallthru
          _
      $region126: #{s4decoder_forward.8} parent=5 // pred_fallthru
        _
    $region6: #{s4decoder_forward.8} parent=1 // loop_footer
      %s12 = sadd.s32 1, %s8
    $region7: #{s4decoder_forward.8} parent=1 // loop_footer_branch
      %7 = sbr.rel target = $region3
    $region8: #{s4decoder_forward.8} parent=1 // loop_exit
      _

// kernel: s4decoder_forward.6
$region0: #{s4decoder_forward.6}
  #allocation0 [shape = 'u32[]', space=smem, size = 0x4, offset = 0x4, fixed_abs, tag = 'smem constant byte address 0x4 - core index']
  #allocation1 [shape = 'u32[144,128]{1,0:T(1,128)}', space=vmem, size = 0x12000, scoped, tag = 'internal scratch']
  #allocation2 [shape = 'f32[8,2,128]{2,1,0:T(2,128)}', space=vmem, size = 0x2000, scoped, tag = 'scratch operand']
  %s0 = inlined_call_operand.hbm [shape: bf16[16,128,128], index: 0, kind: input, shape index: {}]
  %s1 = inlined_call_operand.vmem [shape: bf16[2,16,128], index: 1, kind: input, shape index: {}]
  %s2 = inlined_call_operand.vmem [shape: bf16[2,16,128], index: 2, kind: output, shape index: {}]
  %s3 = sld [smem:[#allocation0]]
  $region135: #{s4decoder_forward.6} parent=0
    _
  %s5 = ssub.s32 1, %s3
  %s6 = scalar_select 0, %s5, %s3
  $region1: #{s4decoder_forward.6} parent=0
    #allocation3 [shape = 'u8[524288]{0}', space=vmem, size = 0x80000, scoped, tag = 'input window, operand 0']
    #allocation4 [shape = 's32[2]{0}', space=sflag, size = 0x8, scoped, tag = 'scoped memory for s4decoder_forward.6']
    #allocation5 [shape = 'u8[8192]{0}', space=vmem, size = 0x2000, scoped, tag = 'input window, operand 1']
    #allocation6 [shape = 'u8[8192]{0}', space=vmem, size = 0x2000, scoped, tag = 'output window, operand 0']
    %7 = vsyncpa [#allocation4], 0
    %s8 = scalar_lea.sflag [#allocation4], 1
    %9 = vsyncpa %s8, 0
    loop: start=0, step=1, limit=4
    $region2: #{s4decoder_forward.6} parent=1 // loop_pre_header
      _
    $region3: #{s4decoder_forward.6} parent=1 // loop_header
      %s11 = sphi 0, %s15
      %p12 = scmp.ge.s32.totalorder %s11, 4
      %s18 = sphi 0, %s37
      %s19 = sphi 0, %s33
      %s20 = sphi 0, %s29
      %s21 = sphi 0, %s18
      %s22 = sphi 0, %s19
      %s23 = sphi 0, %s20
      %s24 = sphi 0, %s21
      %s25 = sphi 0, %s22
      %s26 = sphi 0, %s23
      %s48 = sphi 0, %s50
      %s51 = sphi 0, %s48
      %s52 = sphi 0, %s51
      %s68 = sphi 0, %s52
      %s80 = sphi 0, %s82
      %s83 = sphi 0, %s80
      %s84 = sphi 0, %s83
      %s100 = sphi 0, %s84
      %s108 = sphi 0, %s110
      %s111 = sphi 0, %s108
      %s112 = sphi 0, %s111
      %s128 = sphi 0, %s112
    $region4: #{s4decoder_forward.6} parent=1 // loop_header_branch
      %14 = sbr.rel (%p12) target = $region8
    $region5: #{s4decoder_forward.6} parent=1 // loop_body
      %s16 = ssub.s32 %s11, 1
      %s17 = ssub.s32 %s11, 2
      %s27 = sadd.s32 1, %s20
      %p28 = scmp.ge.s32.totalorder %s27, 1
      %s29 = scalar_select %p28, 0, %s27
      %s30 = sadd.s32 1, %s19
      %s31 = scalar_select %p28, %s30, %s19
      %p32 = scmp.ge.s32.totalorder %s31, 1
      %s33 = scalar_select %p32, 0, %s31
      %s34 = sadd.s32 1, %s18
      %s35 = scalar_select %p32, %s34, %s18
      %p36 = scmp.ge.s32.totalorder %s35, 2
      %s37 = scalar_select %p36, 0, %s35
      %p38 = scmp.lt.s32.totalorder %s20, %s19
      %s39 = scalar_select %p38, %s20, %s19
      %p40 = scmp.lt.s32.totalorder %s29, %s33
      %s41 = scalar_select %p40, %s29, %s33
      %s42 = ssub.s32 %s18, %s37
      %s43 = ssub.s32 %s39, %s41
      %s44 = sor.u32 %s42, %s43
      %s45 = ssub.s32 %s19, %s33
      %s46 = sor.u32 %s44, %s45
      %p47 = scmp.eq.s32.totalorder %s46, 0
      %s49 = sadd.s32 %s48, 1
      %s50 = scalar_select %p47, %s48, %s49
      %p53 = pneg %p47
      %p54 = scmp.eq.s32.totalorder %s11, 1
      %p55 = por %p53, %p54
      %p56 = scmp.ne.s32.totalorder %s48, %s51
      %p57 = scmp.eq.s32.totalorder %s11, 0
      %p58 = por %p56, %p57
      %p59 = scmp.ne.s32.totalorder %s48, %s51
      %p60 = scmp.eq.s32.totalorder %s16, 1
      %p61 = por %p59, %p60
      %p62 = scmp.ne.s32.totalorder %s51, %s52
      %p63 = scmp.eq.s32.totalorder %s16, 0
      %p64 = por %p62, %p63
      %p65 = scmp.ne.s32.totalorder %s51, %s52
      %p66 = scmp.eq.s32.totalorder %s17, 1
      %p67 = por %p65, %p66
      %p69 = scmp.ne.s32.totalorder %s52, %s68
      %p70 = scmp.eq.s32.totalorder %s17, 0
      %p71 = por %p69, %p70
      %p72 = scmp.lt.s32.totalorder %s20, %s19
      %s73 = scalar_select %p72, %s20, %s19
      %p74 = scmp.lt.s32.totalorder %s29, %s33
      %s75 = scalar_select %p74, %s29, %s33
      %s76 = ssub.s32 %s18, %s37
      %s77 = ssub.s32 %s73, %s75
      %s78 = sor.u32 %s76, %s77
      %p79 = scmp.eq.s32.totalorder %s78, 0
      %s81 = sadd.s32 %s80, 1
      %s82 = scalar_select %p79, %s80, %s81
      %p85 = pneg %p79
      %p86 = scmp.eq.s32.totalorder %s11, 1
      %p87 = por %p85, %p86
      %p88 = scmp.ne.s32.totalorder %s80, %s83
      %p89 = scmp.eq.s32.totalorder %s11, 0
      %p90 = por %p88, %p89
      %p91 = scmp.ne.s32.totalorder %s80, %s83
      %p92 = scmp.eq.s32.totalorder %s16, 1
      %p93 = por %p91, %p92
      %p94 = scmp.ne.s32.totalorder %s83, %s84
      %p95 = scmp.eq.s32.totalorder %s16, 0
      %p96 = por %p94, %p95
      %p97 = scmp.ne.s32.totalorder %s83, %s84
      %p98 = scmp.eq.s32.totalorder %s17, 1
      %p99 = por %p97, %p98
      %p101 = scmp.ne.s32.totalorder %s84, %s100
      %p102 = scmp.eq.s32.totalorder %s17, 0
      %p103 = por %p101, %p102
      %s104 = ssub.s32 %s18, %s37
      %s105 = ssub.s32 %s19, %s33
      %s106 = sor.u32 %s104, %s105
      %p107 = scmp.eq.s32.totalorder %s106, 0
      %s109 = sadd.s32 %s108, 1
      %s110 = scalar_select %p107, %s108, %s109
      %p113 = pneg %p107
      %p114 = scmp.eq.s32.totalorder %s11, 1
      %p115 = por %p113, %p114
      %p116 = scmp.ne.s32.totalorder %s108, %s111
      %p117 = scmp.eq.s32.totalorder %s11, 0
      %p118 = por %p116, %p117
      %p119 = scmp.ne.s32.totalorder %s108, %s111
      %p120 = scmp.eq.s32.totalorder %s16, 1
      %p121 = por %p119, %p120
      %p122 = scmp.ne.s32.totalorder %s111, %s112
      %p123 = scmp.eq.s32.totalorder %s16, 0
      %p124 = por %p122, %p123
      %p125 = scmp.ne.s32.totalorder %s111, %s112
      %p126 = scmp.eq.s32.totalorder %s17, 1
      %p127 = por %p125, %p126
      %p129 = scmp.ne.s32.totalorder %s112, %s128
      %p130 = scmp.eq.s32.totalorder %s17, 0
      %p131 = por %p129, %p130
      %p132 = scmp.le.s32.totalorder 1, %s11
      %p133 = scmp.lt.s32.totalorder %s11, 3
      %p134 = pnand %p132, %p133
      %p135 = pneg %p134
      // Predicated region
      $region9: #{s4decoder_forward.6} parent=5 // pred_check
        _
      $region10: #{s4decoder_forward.6} parent=5 // pred_check_branch
        %137 = sbr.rel (%p134) target = $region12
      $region11: #{s4decoder_forward.6} parent=5 // pred_region
        %s138 = ssub.s32 %s11, 1
      $region12: #{s4decoder_forward.6} parent=5 // pred_fallthru
        _
      %p139 = scmp.lt.s32.totalorder %s11, 2
      // Predicated region
      $region13: #{s4decoder_forward.6} parent=5 // pred_check
        %p140 = pneg %p139
      $region14: #{s4decoder_forward.6} parent=5 // pred_check_branch
        %142 = sbr.rel (%p140) target = $region16
      $region15: #{s4decoder_forward.6} parent=5 // pred_region
        // Predicated region
        $region17: #{s4decoder_forward.6} parent=15 // pred_check
          %p143 = pneg %p58
        $region18: #{s4decoder_forward.6} parent=15 // pred_check_branch
          %145 = sbr.rel (%p143) target = $region20
        $region19: #{s4decoder_forward.6} parent=15 // pred_region
          %s146 = sand.u32 %s48, 1
          %s147 = scalar_lea.sflag [#allocation4], %s146
          %s148 = sand.u32 %s48, 1
          %s149 = smul.addr %s148, 512
          %s150 = scalar_lea.vmem [#allocation3], %s149
          %p151 = scmp.lt.s32.totalorder %s20, %s19
          %s152 = scalar_select %p151, %s20, %s19
          %s153 = smul.u32 8, %s18
          %s154 = smul.u32 16, %s152
          %s156 = ssub.s32 8192, 8192
          %157 = vsyncadd %s147, %s156
          %s158 = sadd.s32 %s19, %s154
          %s159 = smul.addr %s153, 16
          %s160 = sadd.s32 %s158, %s159
          %s161 = smul.addr %s160, 64
          %s162 = scalar_lea.hbm %s0, %s161
          %s163 = sshll.u32 %s150, 4
          %s164 = int_to_ptr.vmem [resolvable:$true] %s163
          %169 = dma.hbm_to_vmem [thread:$0]  %s162, 8192, %s164, %s147, 64, 64, 4
        $region20: #{s4decoder_forward.6} parent=15 // pred_fallthru
          _
        // Predicated region
        $region21: #{s4decoder_forward.6} parent=15 // pred_check
          %p170 = pneg %p90
        $region22: #{s4decoder_forward.6} parent=15 // pred_check_branch
          %172 = sbr.rel (%p170) target = $region24
        $region23: #{s4decoder_forward.6} parent=15 // pred_region
          %s173 = sand.u32 %s80, 1
          %s174 = sand.u32 %s80, 1
          %s175 = smul.addr %s174, 8
          %s176 = scalar_lea.vmem [#allocation5], %s175
          %p177 = scmp.lt.s32.totalorder %s20, %s19
          %s178 = scalar_select %p177, %s20, %s19
          %s179 = sadd.s32 %s178, %s18
          %s180 = smul.addr %s179, 4
          %s181 = scalar_lea.vmem %s1, %s180
          // Predicated region
          $region25: #{s4decoder_forward.6} parent=23 // pred_check
            _
          $region26: #{s4decoder_forward.6} parent=23 // pred_check_branch
            %183 = sbr.rel (0) target = $region28
          $region27: #{s4decoder_forward.6} parent=23 // pred_region
            // Predicated region
            $region29: #{s4decoder_forward.6} parent=27 // pred_check
              _
            $region30: #{s4decoder_forward.6} parent=27 // pred_check_branch
              %185 = sbr.rel target = $region32
            $region31: #{s4decoder_forward.6} parent=27 // pred_region
              // Predicated region
              $region44: #{s4decoder_forward.6} parent=31 // pred_check
                _
              $region45: #{s4decoder_forward.6} parent=31 // pred_check_branch
                %202 = sbr.rel (0) target = $region47
              $region46: #{s4decoder_forward.6} parent=31 // pred_region
                loop: start=0, step=1, limit=1
                $region48: #{s4decoder_forward.6} parent=46 // loop_pre_header
                  _
                $region49: #{s4decoder_forward.6} parent=46 // loop_header
                  %s204 = sphi 0, %s208
                  %p205 = scmp.ge.s32.totalorder %s204, 1
                  %s209 = sphi %s181, %s181
                  %s210 = sphi %s176, %s176
                $region50: #{s4decoder_forward.6} parent=46 // loop_header_branch
                  %207 = sbr.rel (%p205) target = $region54
                $region51: #{s4decoder_forward.6} parent=46 // loop_body
                  _
                $region52: #{s4decoder_forward.6} parent=46 // loop_footer
                  %s208 = sadd.s32 1, %s204
                $region53: #{s4decoder_forward.6} parent=46 // loop_footer_branch
                  %203 = sbr.rel target = $region49
                $region54: #{s4decoder_forward.6} parent=46 // loop_exit
                  _
                loop: start=0, step=1, limit=1
                $region55: #{s4decoder_forward.6} parent=46 // loop_pre_header
                  _
                $region56: #{s4decoder_forward.6} parent=46 // loop_header
                  %s213 = sphi 0, %s217
                  %p214 = scmp.ge.s32.totalorder %s213, 1
                  %s218 = sphi %s181, %s181
                  %s219 = sphi %s176, %s176
                $region57: #{s4decoder_forward.6} parent=46 // loop_header_branch
                  %216 = sbr.rel (%p214) target = $region61
                $region58: #{s4decoder_forward.6} parent=46 // loop_body
                  %v220 = vld [vmem:[%s218] sm:$0xf]
                  %221 = vst [vmem:[%s219] sm:$0xf] %v220
                  %v222 = vld [vmem:[%s218 + $0x8] sm:$0xf]
                  %223 = vst [vmem:[%s219 + $0x4] sm:$0xf] %v222
                $region59: #{s4decoder_forward.6} parent=46 // loop_footer
                  %s217 = sadd.s32 1, %s213
                $region60: #{s4decoder_forward.6} parent=46 // loop_footer_branch
                  %212 = sbr.rel target = $region56
                $region61: #{s4decoder_forward.6} parent=46 // loop_exit
                  _
              $region47: #{s4decoder_forward.6} parent=31 // pred_fallthru
                _
            $region32: #{s4decoder_forward.6} parent=27 // pred_fallthru
              _
            // Predicated region
            $region33: #{s4decoder_forward.6} parent=27 // pred_check
              _
            $region34: #{s4decoder_forward.6} parent=27 // pred_check_branch
              %187 = sbr.rel (0) target = $region36
            $region35: #{s4decoder_forward.6} parent=27 // pred_region
              loop: start=0, step=1, limit=1
              $region37: #{s4decoder_forward.6} parent=35 // loop_pre_header
                _
              $region38: #{s4decoder_forward.6} parent=35 // loop_header
                %s190 = sphi 0, %s194
                %p191 = scmp.ge.s32.totalorder %s190, 1
                %s195 = sphi %s181, %s181
                %s196 = sphi %s176, %s176
              $region39: #{s4decoder_forward.6} parent=35 // loop_header_branch
                %193 = sbr.rel (%p191) target = $region43
              $region40: #{s4decoder_forward.6} parent=35 // loop_body
                %v197 = vld [vmem:[%s195] sm:$0xf]
                %198 = vst [vmem:[%s196] sm:$0xf] %v197
                %v199 = vld [vmem:[%s195 + $0x8] sm:$0xf]
                %200 = vst [vmem:[%s196 + $0x4] sm:$0xf] %v199
              $region41: #{s4decoder_forward.6} parent=35 // loop_footer
                %s194 = sadd.s32 1, %s190
              $region42: #{s4decoder_forward.6} parent=35 // loop_footer_branch
                %189 = sbr.rel target = $region38
              $region43: #{s4decoder_forward.6} parent=35 // loop_exit
                _
            $region36: #{s4decoder_forward.6} parent=27 // pred_fallthru
              _
          $region28: #{s4decoder_forward.6} parent=23 // pred_fallthru
            _
          %224 = vnop
        $region24: #{s4decoder_forward.6} parent=15 // pred_fallthru
          _
      $region16: #{s4decoder_forward.6} parent=5 // pred_fallthru
        _
      %p225 = scmp.le.s32.totalorder 1, %s11
      %p226 = scmp.lt.s32.totalorder %s11, 3
      %p227 = pnand %p225, %p226
      %p228 = pneg %p227
      // Predicated region
      $region62: #{s4decoder_forward.6} parent=5 // pred_check
        _
      $region63: #{s4decoder_forward.6} parent=5 // pred_check_branch
        %230 = sbr.rel (%p227) target = $region65
      $region64: #{s4decoder_forward.6} parent=5 // pred_region
        %s231 = ssub.s32 %s11, 1
        %s232 = sand.u32 %s51, 1
        %s233 = scalar_lea.sflag [#allocation4], %s232
        %s234 = sand.u32 %s51, 1
        %s235 = smul.addr %s234, 512
        %s236 = scalar_lea.vmem [#allocation3], %s235
        // Predicated region
        $region66: #{s4decoder_forward.6} parent=64 // pred_check
          %p237 = pneg %p64
        $region67: #{s4decoder_forward.6} parent=64 // pred_check_branch
          %239 = sbr.rel (%p237) target = $region69
        $region68: #{s4decoder_forward.6} parent=64 // pred_region
          %240 = dma.done %s233, 8192
        $region69: #{s4decoder_forward.6} parent=64 // pred_fallthru
          _
        %s241 = sand.u32 %s83, 1
        %s242 = sand.u32 %s83, 1
        %s243 = smul.addr %s242, 8
        %s244 = scalar_lea.vmem [#allocation5], %s243
        // Predicated region
        $region70: #{s4decoder_forward.6} parent=64 // pred_check
          %p245 = pneg %p96
        $region71: #{s4decoder_forward.6} parent=64 // pred_check_branch
          %247 = sbr.rel (%p245) target = $region73
        $region72: #{s4decoder_forward.6} parent=64 // pred_region
          _
        $region73: #{s4decoder_forward.6} parent=64 // pred_fallthru
          _
        %s248 = sand.u32 %s51, 1
        %s249 = scalar_lea.sflag [#allocation4], %s248
        %s250 = sand.u32 %s51, 1
        %s251 = smul.addr %s250, 512
        %s252 = scalar_lea.vmem [#allocation3], %s251
        %p253 = pneg %p64
        %p254 = pneg %p61
        %s255 = sand.u32 %s83, 1
        %s256 = sand.u32 %s83, 1
        %s257 = smul.addr %s256, 8
        %s258 = scalar_lea.vmem [#allocation5], %s257
        %p259 = pneg %p96
        %p260 = pneg %p93
        %p261 = pneg %p124
        %p262 = pneg %p121
        %s263 = sand.u32 %s111, 1
        %s264 = sand.u32 %s111, 1
        %s265 = smul.addr %s264, 8
        %s266 = scalar_lea.vmem [#allocation6], %s265
        %p267 = scmp.lt.s32.totalorder %s23, %s22
        %s268 = scalar_select %p267, %s23, %s22
        %s269 = smul.u32 8, %s21
        %s270 = smul.u32 16, %s268
        %p271 = scmp.lt.s32.totalorder %s23, %s22
        %s272 = scalar_select %p271, %s23, %s22
        %p274 = scmp.eq.s32.totalorder %s23, 0
        // Predicated region
        $region74: #{s4decoder_forward.6} parent=64 // pred_check
          %p275 = pneg %p274
        $region75: #{s4decoder_forward.6} parent=64 // pred_check_branch
          %277 = sbr.rel (%p275) target = $region77
        $region76: #{s4decoder_forward.6} parent=64 // pred_region
          %278 = vst [vmem:[#allocation2] sm:$0x3] 0.0
          %279 = vst [vmem:[#allocation2 + $0x2] sm:$0x3] 0.0
          %280 = vst [vmem:[#allocation2 + $0x4] sm:$0x3] 0.0
          %281 = vst [vmem:[#allocation2 + $0x6] sm:$0x3] 0.0
          %282 = vst [vmem:[#allocation2 + $0x8] sm:$0x3] 0.0
          %283 = vst [vmem:[#allocation2 + $0xa] sm:$0x3] 0.0
          %284 = vst [vmem:[#allocation2 + $0xc] sm:$0x3] 0.0
          %285 = vst [vmem:[#allocation2 + $0xe] sm:$0x3] 0.0
        $region77: #{s4decoder_forward.6} parent=64 // pred_fallthru
          _
        %p286 = scmp.le.s32.totalorder %s23, %s22
        // Predicated region
        $region78: #{s4decoder_forward.6} parent=64 // pred_check
          %p287 = pneg %p286
        $region79: #{s4decoder_forward.6} parent=64 // pred_check_branch
          %289 = sbr.rel (%p287) target = $region81
        $region80: #{s4decoder_forward.6} parent=64 // pred_region
          %v290 = vld [vmem:[#allocation2] sm:$0x3]
          %v291 = vld [vmem:[#allocation2 + $0x2] sm:$0x3]
          %v292 = vld [vmem:[#allocation2 + $0x4] sm:$0x3]
          %v293 = vld [vmem:[#allocation2 + $0x6] sm:$0x3]
          %v294 = vld [vmem:[#allocation2 + $0x8] sm:$0x3]
          %v295 = vld [vmem:[#allocation2 + $0xa] sm:$0x3]
          %v296 = vld [vmem:[#allocation2 + $0xc] sm:$0x3]
          %v297 = vld [vmem:[#allocation2 + $0xe] sm:$0x3]
          %v298 = vld [vmem:[%s244] sm:$0xf]
          %v299 = vld [vmem:[%s244 + $0x4] sm:$0xf]
          %v300 = vld [vmem:[%s236] sm:$0xf]
          %v301 = vld [vmem:[%s236 + $0x4] sm:$0xf]
          %v302 = vld [vmem:[%s236 + $0x8] sm:$0xf]
          %v303 = vld [vmem:[%s236 + $0xc] sm:$0xf]
          %v304 = vld [vmem:[%s236 + $0x10] sm:$0xf]
          %v305 = vld [vmem:[%s236 + $0x14] sm:$0xf]
          %v306 = vld [vmem:[%s236 + $0x18] sm:$0xf]
          %v307 = vld [vmem:[%s236 + $0x1c] sm:$0xf]
          %v308 = vld [vmem:[%s236 + $0x20] sm:$0xf]
          %v309 = vld [vmem:[%s236 + $0x24] sm:$0xf]
          %v310 = vld [vmem:[%s236 + $0x28] sm:$0xf]
          %v311 = vld [vmem:[%s236 + $0x2c] sm:$0xf]
          %v312 = vld [vmem:[%s236 + $0x30] sm:$0xf]
          %v313 = vld [vmem:[%s236 + $0x34] sm:$0xf]
          %v314 = vld [vmem:[%s236 + $0x38] sm:$0xf]
          %v315 = vld [vmem:[%s236 + $0x3c] sm:$0xf]
          %v316 = vld [vmem:[%s236 + $0x40] sm:$0xf]
          %v317 = vld [vmem:[%s236 + $0x44] sm:$0xf]
          %v318 = vld [vmem:[%s236 + $0x48] sm:$0xf]
          %v319 = vld [vmem:[%s236 + $0x4c] sm:$0xf]
          %v320 = vld [vmem:[%s236 + $0x50] sm:$0xf]
          %v321 = vld [vmem:[%s236 + $0x54] sm:$0xf]
          %v322 = vld [vmem:[%s236 + $0x58] sm:$0xf]
          %v323 = vld [vmem:[%s236 + $0x5c] sm:$0xf]
          %v324 = vld [vmem:[%s236 + $0x60] sm:$0xf]
          %v325 = vld [vmem:[%s236 + $0x64] sm:$0xf]
          %v326 = vld [vmem:[%s236 + $0x68] sm:$0xf]
          %v327 = vld [vmem:[%s236 + $0x6c] sm:$0xf]
          %v328 = vld [vmem:[%s236 + $0x70] sm:$0xf]
          %v329 = vld [vmem:[%s236 + $0x74] sm:$0xf]
          %v330 = vld [vmem:[%s236 + $0x78] sm:$0xf]
          %v331 = vld [vmem:[%s236 + $0x7c] sm:$0xf]
          %v332 = vld [vmem:[%s236 + $0x80] sm:$0xf]
          %v333 = vld [vmem:[%s236 + $0x84] sm:$0xf]
          %v334 = vld [vmem:[%s236 + $0x88] sm:$0xf]
          %v335 = vld [vmem:[%s236 + $0x8c] sm:$0xf]
          %v336 = vld [vmem:[%s236 + $0x90] sm:$0xf]
          %v337 = vld [vmem:[%s236 + $0x94] sm:$0xf]
          %v338 = vld [vmem:[%s236 + $0x98] sm:$0xf]
          %v339 = vld [vmem:[%s236 + $0x9c] sm:$0xf]
          %v340 = vld [vmem:[%s236 + $0xa0] sm:$0xf]
          %v341 = vld [vmem:[%s236 + $0xa4] sm:$0xf]
          %v342 = vld [vmem:[%s236 + $0xa8] sm:$0xf]
          %v343 = vld [vmem:[%s236 + $0xac] sm:$0xf]
          %v344 = vld [vmem:[%s236 + $0xb0] sm:$0xf]
          %v345 = vld [vmem:[%s236 + $0xb4] sm:$0xf]
          %v346 = vld [vmem:[%s236 + $0xb8] sm:$0xf]
          %v347 = vld [vmem:[%s236 + $0xbc] sm:$0xf]
          %v348 = vld [vmem:[%s236 + $0xc0] sm:$0xf]
          %v349 = vld [vmem:[%s236 + $0xc4] sm:$0xf]
          %v350 = vld [vmem:[%s236 + $0xc8] sm:$0xf]
          %v351 = vld [vmem:[%s236 + $0xcc] sm:$0xf]
          %v352 = vld [vmem:[%s236 + $0xd0] sm:$0xf]
          %v353 = vld [vmem:[%s236 + $0xd4] sm:$0xf]
          %v354 = vld [vmem:[%s236 + $0xd8] sm:$0xf]
          %v355 = vld [vmem:[%s236 + $0xdc] sm:$0xf]
          %v356 = vld [vmem:[%s236 + $0xe0] sm:$0xf]
          %v357 = vld [vmem:[%s236 + $0xe4] sm:$0xf]
          %v358 = vld [vmem:[%s236 + $0xe8] sm:$0xf]
          %v359 = vld [vmem:[%s236 + $0xec] sm:$0xf]
          %v360 = vld [vmem:[%s236 + $0xf0] sm:$0xf]
          %v361 = vld [vmem:[%s236 + $0xf4] sm:$0xf]
          %v362 = vld [vmem:[%s236 + $0xf8] sm:$0xf]
          %v363 = vld [vmem:[%s236 + $0xfc] sm:$0xf]
          %v364 = vld [vmem:[%s236 + $0x100] sm:$0xf]
          %v365 = vld [vmem:[%s236 + $0x104] sm:$0xf]
          %v366 = vld [vmem:[%s236 + $0x108] sm:$0xf]
          %v367 = vld [vmem:[%s236 + $0x10c] sm:$0xf]
          %v368 = vld [vmem:[%s236 + $0x110] sm:$0xf]
          %v369 = vld [vmem:[%s236 + $0x114] sm:$0xf]
          %v370 = vld [vmem:[%s236 + $0x118] sm:$0xf]
          %v371 = vld [vmem:[%s236 + $0x11c] sm:$0xf]
          %v372 = vld [vmem:[%s236 + $0x120] sm:$0xf]
          %v373 = vld [vmem:[%s236 + $0x124] sm:$0xf]
          %v374 = vld [vmem:[%s236 + $0x128] sm:$0xf]
          %v375 = vld [vmem:[%s236 + $0x12c] sm:$0xf]
          %v376 = vld [vmem:[%s236 + $0x130] sm:$0xf]
          %v377 = vld [vmem:[%s236 + $0x134] sm:$0xf]
          %v378 = vld [vmem:[%s236 + $0x138] sm:$0xf]
          %v379 = vld [vmem:[%s236 + $0x13c] sm:$0xf]
          %v380 = vld [vmem:[%s236 + $0x140] sm:$0xf]
          %v381 = vld [vmem:[%s236 + $0x144] sm:$0xf]
          %v382 = vld [vmem:[%s236 + $0x148] sm:$0xf]
          %v383 = vld [vmem:[%s236 + $0x14c] sm:$0xf]
          %v384 = vld [vmem:[%s236 + $0x150] sm:$0xf]
          %v385 = vld [vmem:[%s236 + $0x154] sm:$0xf]
          %v386 = vld [vmem:[%s236 + $0x158] sm:$0xf]
          %v387 = vld [vmem:[%s236 + $0x15c] sm:$0xf]
          %v388 = vld [vmem:[%s236 + $0x160] sm:$0xf]
          %v389 = vld [vmem:[%s236 + $0x164] sm:$0xf]
          %v390 = vld [vmem:[%s236 + $0x168] sm:$0xf]
          %v391 = vld [vmem:[%s236 + $0x16c] sm:$0xf]
          %v392 = vld [vmem:[%s236 + $0x170] sm:$0xf]
          %v393 = vld [vmem:[%s236 + $0x174] sm:$0xf]
          %v394 = vld [vmem:[%s236 + $0x178] sm:$0xf]
          %v395 = vld [vmem:[%s236 + $0x17c] sm:$0xf]
          %v396 = vld [vmem:[%s236 + $0x180] sm:$0xf]
          %v397 = vld [vmem:[%s236 + $0x184] sm:$0xf]
          %v398 = vld [vmem:[%s236 + $0x188] sm:$0xf]
          %v399 = vld [vmem:[%s236 + $0x18c] sm:$0xf]
          %v400 = vld [vmem:[%s236 + $0x190] sm:$0xf]
          %v401 = vld [vmem:[%s236 + $0x194] sm:$0xf]
          %v402 = vld [vmem:[%s236 + $0x198] sm:$0xf]
          %v403 = vld [vmem:[%s236 + $0x19c] sm:$0xf]
          %v404 = vld [vmem:[%s236 + $0x1a0] sm:$0xf]
          %v405 = vld [vmem:[%s236 + $0x1a4] sm:$0xf]
          %v406 = vld [vmem:[%s236 + $0x1a8] sm:$0xf]
          %v407 = vld [vmem:[%s236 + $0x1ac] sm:$0xf]
          %v408 = vld [vmem:[%s236 + $0x1b0] sm:$0xf]
          %v409 = vld [vmem:[%s236 + $0x1b4] sm:$0xf]
          %v410 = vld [vmem:[%s236 + $0x1b8] sm:$0xf]
          %v411 = vld [vmem:[%s236 + $0x1bc] sm:$0xf]
          %v412 = vld [vmem:[%s236 + $0x1c0] sm:$0xf]
          %v413 = vld [vmem:[%s236 + $0x1c4] sm:$0xf]
          %v414 = vld [vmem:[%s236 + $0x1c8] sm:$0xf]
          %v415 = vld [vmem:[%s236 + $0x1cc] sm:$0xf]
          %v416 = vld [vmem:[%s236 + $0x1d0] sm:$0xf]
          %v417 = vld [vmem:[%s236 + $0x1d4] sm:$0xf]
          %v418 = vld [vmem:[%s236 + $0x1d8] sm:$0xf]
          %v419 = vld [vmem:[%s236 + $0x1dc] sm:$0xf]
          %v420 = vld [vmem:[%s236 + $0x1e0] sm:$0xf]
          %v421 = vld [vmem:[%s236 + $0x1e4] sm:$0xf]
          %v422 = vld [vmem:[%s236 + $0x1e8] sm:$0xf]
          %v423 = vld [vmem:[%s236 + $0x1ec] sm:$0xf]
          %v424 = vld [vmem:[%s236 + $0x1f0] sm:$0xf]
          %v425 = vld [vmem:[%s236 + $0x1f4] sm:$0xf]
          %v426 = vld [vmem:[%s236 + $0x1f8] sm:$0xf]
          %v427 = vld [vmem:[%s236 + $0x1fc] sm:$0xf]
          %v430 = vpack.i.b16 %v299, %v298
          %v431 = vshrl.u32 %v298, 16
          %v432 = vshrl.u32 %v299, 16
          %v433 = vpack.i.b16 %v432, %v431
          %v436 = vunpack.c.l.s4 1983009808
          %v437 = vunpack.c.0.s8 %v436
          %v438 = vlaneseq
          %v439 = vshrl.u32 %v438, 7
          %v440 = vsub.s32 %v437, %v439
          %v441 = vrot.slane %v430, %v440
          %v442 = vcombine.high %v441, 0
          %v444 = vunpack.c.l.s4 1934713408
          %v445 = vunpack.c.0.s8 %v444
          %v446 = vlaneseq
          %v447 = vshrl.u32 %v446, 7
          %v448 = vsub.s32 %v445, %v447
          %v449 = vrot.slane %v441, %v448
          %v451 = vunpack.c.l.s4 1934713408
          %v452 = vunpack.c.0.s8 %v451
          %v453 = vlaneseq
          %v454 = vshrl.u32 %v453, 7
          %v455 = vsub.s32 %v452, %v454
          %v456 = vrot.slane %v442, %v455
          %v457 = vcombine.high %v449, 0
          %v458 = vcombine.high %v456, 0
          %v461 = vunpack.c.l.s4 1983009808
          %v462 = vunpack.c.0.s8 %v461
          %v463 = vlaneseq
          %v464 = vshrl.u32 %v463, 7
          %v465 = vsub.s32 %v462, %v464
          %v466 = vrot.slane %v433, %v465
          %v467 = vcombine.high %v466, 0
          %v469 = vunpack.c.l.s4 1934713408
          %v470 = vunpack.c.0.s8 %v469
          %v471 = vlaneseq
          %v472 = vshrl.u32 %v471, 7
          %v473 = vsub.s32 %v470, %v472
          %v474 = vrot.slane %v466, %v473
          %v476 = vunpack.c.l.s4 1934713408
          %v477 = vunpack.c.0.s8 %v476
          %v478 = vlaneseq
          %v479 = vshrl.u32 %v478, 7
          %v480 = vsub.s32 %v477, %v479
          %v481 = vrot.slane %v467, %v480
          %v482 = vcombine.high %v474, 0
          %v483 = vcombine.high %v481, 0
          %v500 = vunpack.c.l.b16 %v300
          %v501 = vunpack.c.l.b16 %v301
          %v502 = vunpack.c.l.b16 %v302
          %v503 = vunpack.c.l.b16 %v303
          %v504 = vunpack.c.l.b16 %v304
          %v505 = vunpack.c.l.b16 %v305
          %v506 = vunpack.c.l.b16 %v306
          %v507 = vunpack.c.l.b16 %v307
          %v508 = vunpack.c.l.b16 %v308
          %v509 = vunpack.c.l.b16 %v309
          %v510 = vunpack.c.l.b16 %v310
          %v511 = vunpack.c.l.b16 %v311
          %v512 = vunpack.c.l.b16 %v312
          %v513 = vunpack.c.l.b16 %v313
          %v514 = vunpack.c.l.b16 %v314
          %v515 = vunpack.c.l.b16 %v315
          %v516 = vpack.c.b16 %v501, %v500
          %v517 = vpack.c.b16 %v503, %v502
          %v518 = vpack.c.b16 %v505, %v504
          %v519 = vpack.c.b16 %v507, %v506
          %v520 = vpack.c.b16 %v509, %v508
          %v521 = vpack.c.b16 %v511, %v510
          %v522 = vpack.c.b16 %v513, %v512
          %v523 = vpack.c.b16 %v515, %v514
          %532 = vmatprep.subr.bf16.mxu0 0
          %533 = vmatpush1.bf16.msra.mxu0 %v516
          %534 = vmatprep.subr.bf16.mxu0 0
          %535 = vmatpush1.bf16.msra.mxu0 %v517
          %536 = vmatprep.subr.bf16.mxu0 0
          %537 = vmatpush1.bf16.msra.mxu0 %v518
          %538 = vmatprep.subr.bf16.mxu0 0
          %539 = vmatpush1.bf16.msra.mxu0 %v519
          %540 = vmatprep.subr.bf16.mxu0 0
          %541 = vmatpush1.bf16.msra.mxu0 %v520
          %542 = vmatprep.subr.bf16.mxu0 0
          %543 = vmatpush1.bf16.msra.mxu0 %v521
          %544 = vmatprep.subr.bf16.mxu0 0
          %545 = vmatpush1.bf16.msra.mxu0 %v522
          %546 = vmatprep.subr.bf16.mxu0 0
          %547 = vmatpush1.bf16.msra.mxu0 %v523
          %548 = vmatprep.subr.bf16.mxu0 0
          %549 = vmatpush1.bf16.msra.mxu0 0
          %550 = vmatprep.subr.bf16.mxu0 0
          %551 = vmatpush1.bf16.msra.mxu0 0
          %552 = vmatprep.subr.bf16.mxu0 0
          %553 = vmatpush1.bf16.msra.mxu0 0
          %554 = vmatprep.subr.bf16.mxu0 0
          %555 = vmatpush1.bf16.msra.mxu0 0
          %556 = vmatprep.subr.bf16.mxu0 0
          %557 = vmatpush1.bf16.msra.mxu0 0
          %558 = vmatprep.subr.bf16.mxu0 0
          %559 = vmatpush1.bf16.msra.mxu0 0
          %560 = vmatprep.subr.bf16.mxu0 0
          %561 = vmatpush1.bf16.msra.mxu0 0
          %562 = vmatprep.subr.bf16.mxu0 0
          %563 = vmatpush1.bf16.msra.mxu0 0
          %564 = vmatprep.mubr.bf16.mxu0 0
          %565 = vmatmul.mubr.bf16.gmra.mrb[0].mxu0 %v449
          %v566 = vpop.f32.mrb[0].mxu0
          %v567 = vadd.f32 0.0, %v566
          %v568 = vpop.f32.mrb[0].mxu0
          %v569 = vpop.f32.mrb[0].mxu0
          %v570 = vpop.f32.mrb[0].mxu0
          %571 = vdwg.mxu0
          %v588 = vunpack.c.l.b16 %v316
          %v589 = vunpack.c.l.b16 %v317
          %v590 = vunpack.c.l.b16 %v318
          %v591 = vunpack.c.l.b16 %v319
          %v592 = vunpack.c.l.b16 %v320
          %v593 = vunpack.c.l.b16 %v321
          %v594 = vunpack.c.l.b16 %v322
          %v595 = vunpack.c.l.b16 %v323
          %v596 = vunpack.c.l.b16 %v324
          %v597 = vunpack.c.l.b16 %v325
          %v598 = vunpack.c.l.b16 %v326
          %v599 = vunpack.c.l.b16 %v327
          %v600 = vunpack.c.l.b16 %v328
          %v601 = vunpack.c.l.b16 %v329
          %v602 = vunpack.c.l.b16 %v330
          %v603 = vunpack.c.l.b16 %v331
          %v604 = vpack.c.b16 %v589, %v588
          %v605 = vpack.c.b16 %v591, %v590
          %v606 = vpack.c.b16 %v593, %v592
          %v607 = vpack.c.b16 %v595, %v594
          %v608 = vpack.c.b16 %v597, %v596
          %v609 = vpack.c.b16 %v599, %v598
          %v610 = vpack.c.b16 %v601, %v600
          %v611 = vpack.c.b16 %v603, %v602
          %620 = vmatprep.subr.bf16.mxu0 0
          %621 = vmatpush1.bf16.msra.mxu0 %v604
          %622 = vmatprep.subr.bf16.mxu0 0
          %623 = vmatpush1.bf16.msra.mxu0 %v605
          %624 = vmatprep.subr.bf16.mxu0 0
          %625 = vmatpush1.bf16.msra.mxu0 %v606
          %626 = vmatprep.subr.bf16.mxu0 0
          %627 = vmatpush1.bf16.msra.mxu0 %v607
          %628 = vmatprep.subr.bf16.mxu0 0
          %629 = vmatpush1.bf16.msra.mxu0 %v608
          %630 = vmatprep.subr.bf16.mxu0 0
          %631 = vmatpush1.bf16.msra.mxu0 %v609
          %632 = vmatprep.subr.bf16.mxu0 0
          %633 = vmatpush1.bf16.msra.mxu0 %v610
          %634 = vmatprep.subr.bf16.mxu0 0
          %635 = vmatpush1.bf16.msra.mxu0 %v611
          %636 = vmatprep.subr.bf16.mxu0 0
          %637 = vmatpush1.bf16.msra.mxu0 0
          %638 = vmatprep.subr.bf16.mxu0 0
          %639 = vmatpush1.bf16.msra.mxu0 0
          %640 = vmatprep.subr.bf16.mxu0 0
          %641 = vmatpush1.bf16.msra.mxu0 0
          %642 = vmatprep.subr.bf16.mxu0 0
          %643 = vmatpush1.bf16.msra.mxu0 0
          %644 = vmatprep.subr.bf16.mxu0 0
          %645 = vmatpush1.bf16.msra.mxu0 0
          %646 = vmatprep.subr.bf16.mxu0 0
          %647 = vmatpush1.bf16.msra.mxu0 0
          %648 = vmatprep.subr.bf16.mxu0 0
          %649 = vmatpush1.bf16.msra.mxu0 0
          %650 = vmatprep.subr.bf16.mxu0 0
          %651 = vmatpush1.bf16.msra.mxu0 0
          %652 = vmatprep.mubr.bf16.mxu0 0
          %653 = vmatmul.mubr.bf16.gmra.mrb[0].mxu0 %v474
          %v654 = vpop.f32.mrb[0].mxu0
          %v655 = vadd.f32 0.0, %v654
          %v656 = vpop.f32.mrb[0].mxu0
          %v657 = vpop.f32.mrb[0].mxu0
          %v658 = vpop.f32.mrb[0].mxu0
          %659 = vdwg.mxu0
          %v676 = vunpack.c.l.b16 %v332
          %v677 = vunpack.c.l.b16 %v333
          %v678 = vunpack.c.l.b16 %v334
          %v679 = vunpack.c.l.b16 %v335
          %v680 = vunpack.c.l.b16 %v336
          %v681 = vunpack.c.l.b16 %v337
          %v682 = vunpack.c.l.b16 %v338
          %v683 = vunpack.c.l.b16 %v339
          %v684 = vunpack.c.l.b16 %v340
          %v685 = vunpack.c.l.b16 %v341
          %v686 = vunpack.c.l.b16 %v342
          %v687 = vunpack.c.l.b16 %v343
          %v688 = vunpack.c.l.b16 %v344
          %v689 = vunpack.c.l.b16 %v345
          %v690 = vunpack.c.l.b16 %v346
          %v691 = vunpack.c.l.b16 %v347
          %v692 = vpack.c.b16 %v677, %v676
          %v693 = vpack.c.b16 %v679, %v678
          %v694 = vpack.c.b16 %v681, %v680
          %v695 = vpack.c.b16 %v683, %v682
          %v696 = vpack.c.b16 %v685, %v684
          %v697 = vpack.c.b16 %v687, %v686
          %v698 = vpack.c.b16 %v689, %v688
          %v699 = vpack.c.b16 %v691, %v690
          %708 = vmatprep.subr.bf16.mxu0 0
          %709 = vmatpush1.bf16.msra.mxu0 %v692
          %710 = vmatprep.subr.bf16.mxu0 0
          %711 = vmatpush1.bf16.msra.mxu0 %v693
          %712 = vmatprep.subr.bf16.mxu0 0
          %713 = vmatpush1.bf16.msra.mxu0 %v694
          %714 = vmatprep.subr.bf16.mxu0 0
          %715 = vmatpush1.bf16.msra.mxu0 %v695
          %716 = vmatprep.subr.bf16.mxu0 0
          %717 = vmatpush1.bf16.msra.mxu0 %v696
          %718 = vmatprep.subr.bf16.mxu0 0
          %719 = vmatpush1.bf16.msra.mxu0 %v697
          %720 = vmatprep.subr.bf16.mxu0 0
          %721 = vmatpush1.bf16.msra.mxu0 %v698
          %722 = vmatprep.subr.bf16.mxu0 0
          %723 = vmatpush1.bf16.msra.mxu0 %v699
          %724 = vmatprep.subr.bf16.mxu0 0
          %725 = vmatpush1.bf16.msra.mxu0 0
          %726 = vmatprep.subr.bf16.mxu0 0
          %727 = vmatpush1.bf16.msra.mxu0 0
          %728 = vmatprep.subr.bf16.mxu0 0
          %729 = vmatpush1.bf16.msra.mxu0 0
          %730 = vmatprep.subr.bf16.mxu0 0
          %731 = vmatpush1.bf16.msra.mxu0 0
          %732 = vmatprep.subr.bf16.mxu0 0
          %733 = vmatpush1.bf16.msra.mxu0 0
          %734 = vmatprep.subr.bf16.mxu0 0
          %735 = vmatpush1.bf16.msra.mxu0 0
          %736 = vmatprep.subr.bf16.mxu0 0
          %737 = vmatpush1.bf16.msra.mxu0 0
          %738 = vmatprep.subr.bf16.mxu0 0
          %739 = vmatpush1.bf16.msra.mxu0 0
          %740 = vmatprep.mubr.bf16.mxu0 0
          %741 = vmatmul.mubr.bf16.gmra.mrb[0].mxu0 %v457
          %v742 = vpop.f32.mrb[0].mxu0
          %v743 = vadd.f32 0.0, %v742
          %v744 = vpop.f32.mrb[0].mxu0
          %v745 = vpop.f32.mrb[0].mxu0
          %v746 = vpop.f32.mrb[0].mxu0
          %747 = vdwg.mxu0
          %v764 = vunpack.c.l.b16 %v348
          %v765 = vunpack.c.l.b16 %v349
          %v766 = vunpack.c.l.b16 %v350
          %v767 = vunpack.c.l.b16 %v351
          %v768 = vunpack.c.l.b16 %v352
          %v769 = vunpack.c.l.b16 %v353
          %v770 = vunpack.c.l.b16 %v354
          %v771 = vunpack.c.l.b16 %v355
          %v772 = vunpack.c.l.b16 %v356
          %v773 = vunpack.c.l.b16 %v357
          %v774 = vunpack.c.l.b16 %v358
          %v775 = vunpack.c.l.b16 %v359
          %v776 = vunpack.c.l.b16 %v360
          %v777 = vunpack.c.l.b16 %v361
          %v778 = vunpack.c.l.b16 %v362
          %v779 = vunpack.c.l.b16 %v363
          %v780 = vpack.c.b16 %v765, %v764
          %v781 = vpack.c.b16 %v767, %v766
          %v782 = vpack.c.b16 %v769, %v768
          %v783 = vpack.c.b16 %v771, %v770
          %v784 = vpack.c.b16 %v773, %v772
          %v785 = vpack.c.b16 %v775, %v774
          %v786 = vpack.c.b16 %v777, %v776
          %v787 = vpack.c.b16 %v779, %v778
          %796 = vmatprep.subr.bf16.mxu0 0
          %797 = vmatpush1.bf16.msra.mxu0 %v780
          %798 = vmatprep.subr.bf16.mxu0 0
          %799 = vmatpush1.bf16.msra.mxu0 %v781
          %800 = vmatprep.subr.bf16.mxu0 0
          %801 = vmatpush1.bf16.msra.mxu0 %v782
          %802 = vmatprep.subr.bf16.mxu0 0
          %803 = vmatpush1.bf16.msra.mxu0 %v783
          %804 = vmatprep.subr.bf16.mxu0 0
          %805 = vmatpush1.bf16.msra.mxu0 %v784
          %806 = vmatprep.subr.bf16.mxu0 0
          %807 = vmatpush1.bf16.msra.mxu0 %v785
          %808 = vmatprep.subr.bf16.mxu0 0
          %809 = vmatpush1.bf16.msra.mxu0 %v786
          %810 = vmatprep.subr.bf16.mxu0 0
          %811 = vmatpush1.bf16.msra.mxu0 %v787
          %812 = vmatprep.subr.bf16.mxu0 0
          %813 = vmatpush1.bf16.msra.mxu0 0
          %814 = vmatprep.subr.bf16.mxu0 0
          %815 = vmatpush1.bf16.msra.mxu0 0
          %816 = vmatprep.subr.bf16.mxu0 0
          %817 = vmatpush1.bf16.msra.mxu0 0
          %818 = vmatprep.subr.bf16.mxu0 0
          %819 = vmatpush1.bf16.msra.mxu0 0
          %820 = vmatprep.subr.bf16.mxu0 0
          %821 = vmatpush1.bf16.msra.mxu0 0
          %822 = vmatprep.subr.bf16.mxu0 0
          %823 = vmatpush1.bf16.msra.mxu0 0
          %824 = vmatprep.subr.bf16.mxu0 0
          %825 = vmatpush1.bf16.msra.mxu0 0
          %826 = vmatprep.subr.bf16.mxu0 0
          %827 = vmatpush1.bf16.msra.mxu0 0
          %828 = vmatprep.mubr.bf16.mxu0 0
          %829 = vmatmul.mubr.bf16.gmra.mrb[0].mxu0 %v482
          %v830 = vpop.f32.mrb[0].mxu0
          %v831 = vadd.f32 0.0, %v830
          %v832 = vpop.f32.mrb[0].mxu0
          %v833 = vpop.f32.mrb[0].mxu0
          %v834 = vpop.f32.mrb[0].mxu0
          %835 = vdwg.mxu0
          %v852 = vunpack.c.l.b16 %v364
          %v853 = vunpack.c.l.b16 %v365
          %v854 = vunpack.c.l.b16 %v366
          %v855 = vunpack.c.l.b16 %v367
          %v856 = vunpack.c.l.b16 %v368
          %v857 = vunpack.c.l.b16 %v369
          %v858 = vunpack.c.l.b16 %v370
          %v859 = vunpack.c.l.b16 %v371
          %v860 = vunpack.c.l.b16 %v372
          %v861 = vunpack.c.l.b16 %v373
          %v862 = vunpack.c.l.b16 %v374
          %v863 = vunpack.c.l.b16 %v375
          %v864 = vunpack.c.l.b16 %v376
          %v865 = vunpack.c.l.b16 %v377
          %v866 = vunpack.c.l.b16 %v378
          %v867 = vunpack.c.l.b16 %v379
          %v868 = vpack.c.b16 %v853, %v852
          %v869 = vpack.c.b16 %v855, %v854
          %v870 = vpack.c.b16 %v857, %v856
          %v871 = vpack.c.b16 %v859, %v858
          %v872 = vpack.c.b16 %v861, %v860
          %v873 = vpack.c.b16 %v863, %v862
          %v874 = vpack.c.b16 %v865, %v864
          %v875 = vpack.c.b16 %v867, %v866
          %884 = vmatprep.subr.bf16.mxu0 0
          %885 = vmatpush1.bf16.msra.mxu0 %v868
          %886 = vmatprep.subr.bf16.mxu0 0
          %887 = vmatpush1.bf16.msra.mxu0 %v869
          %888 = vmatprep.subr.bf16.mxu0 0
          %889 = vmatpush1.bf16.msra.mxu0 %v870
          %890 = vmatprep.subr.bf16.mxu0 0
          %891 = vmatpush1.bf16.msra.mxu0 %v871
          %892 = vmatprep.subr.bf16.mxu0 0
          %893 = vmatpush1.bf16.msra.mxu0 %v872
          %894 = vmatprep.subr.bf16.mxu0 0
          %895 = vmatpush1.bf16.msra.mxu0 %v873
          %896 = vmatprep.subr.bf16.mxu0 0
          %897 = vmatpush1.bf16.msra.mxu0 %v874
          %898 = vmatprep.subr.bf16.mxu0 0
          %899 = vmatpush1.bf16.msra.mxu0 %v875
          %900 = vmatprep.subr.bf16.mxu0 0
          %901 = vmatpush1.bf16.msra.mxu0 0
          %902 = vmatprep.subr.bf16.mxu0 0
          %903 = vmatpush1.bf16.msra.mxu0 0
          %904 = vmatprep.subr.bf16.mxu0 0
          %905 = vmatpush1.bf16.msra.mxu0 0
          %906 = vmatprep.subr.bf16.mxu0 0
          %907 = vmatpush1.bf16.msra.mxu0 0
          %908 = vmatprep.subr.bf16.mxu0 0
          %909 = vmatpush1.bf16.msra.mxu0 0
          %910 = vmatprep.subr.bf16.mxu0 0
          %911 = vmatpush1.bf16.msra.mxu0 0
          %912 = vmatprep.subr.bf16.mxu0 0
          %913 = vmatpush1.bf16.msra.mxu0 0
          %914 = vmatprep.subr.bf16.mxu0 0
          %915 = vmatpush1.bf16.msra.mxu0 0
          %916 = vmatprep.mubr.bf16.mxu0 0
          %917 = vmatmul.mubr.bf16.gmra.mrb[0].mxu0 %v456
          %v918 = vpop.f32.mrb[0].mxu0
          %v919 = vadd.f32 0.0, %v918
          %v920 = vpop.f32.mrb[0].mxu0
          %v921 = vpop.f32.mrb[0].mxu0
          %v922 = vpop.f32.mrb[0].mxu0
          %923 = vdwg.mxu0
          %v940 = vunpack.c.l.b16 %v380
          %v941 = vunpack.c.l.b16 %v381
          %v942 = vunpack.c.l.b16 %v382
          %v943 = vunpack.c.l.b16 %v383
          %v944 = vunpack.c.l.b16 %v384
          %v945 = vunpack.c.l.b16 %v385
          %v946 = vunpack.c.l.b16 %v386
          %v947 = vunpack.c.l.b16 %v387
          %v948 = vunpack.c.l.b16 %v388
          %v949 = vunpack.c.l.b16 %v389
          %v950 = vunpack.c.l.b16 %v390
          %v951 = vunpack.c.l.b16 %v391
          %v952 = vunpack.c.l.b16 %v392
          %v953 = vunpack.c.l.b16 %v393
          %v954 = vunpack.c.l.b16 %v394
          %v955 = vunpack.c.l.b16 %v395
          %v956 = vpack.c.b16 %v941, %v940
          %v957 = vpack.c.b16 %v943, %v942
          %v958 = vpack.c.b16 %v945, %v944
          %v959 = vpack.c.b16 %v947, %v946
          %v960 = vpack.c.b16 %v949, %v948
          %v961 = vpack.c.b16 %v951, %v950
          %v962 = vpack.c.b16 %v953, %v952
          %v963 = vpack.c.b16 %v955, %v954
          %972 = vmatprep.subr.bf16.mxu0 0
          %973 = vmatpush1.bf16.msra.mxu0 %v956
          %974 = vmatprep.subr.bf16.mxu0 0
          %975 = vmatpush1.bf16.msra.mxu0 %v957
          %976 = vmatprep.subr.bf16.mxu0 0
          %977 = vmatpush1.bf16.msra.mxu0 %v958
          %978 = vmatprep.subr.bf16.mxu0 0
          %979 = vmatpush1.bf16.msra.mxu0 %v959
          %980 = vmatprep.subr.bf16.mxu0 0
          %981 = vmatpush1.bf16.msra.mxu0 %v960
          %982 = vmatprep.subr.bf16.mxu0 0
          %983 = vmatpush1.bf16.msra.mxu0 %v961
          %984 = vmatprep.subr.bf16.mxu0 0
          %985 = vmatpush1.bf16.msra.mxu0 %v962
          %986 = vmatprep.subr.bf16.mxu0 0
          %987 = vmatpush1.bf16.msra.mxu0 %v963
          %988 = vmatprep.subr.bf16.mxu0 0
          %989 = vmatpush1.bf16.msra.mxu0 0
          %990 = vmatprep.subr.bf16.mxu0 0
          %991 = vmatpush1.bf16.msra.mxu0 0
          %992 = vmatprep.subr.bf16.mxu0 0
          %993 = vmatpush1.bf16.msra.mxu0 0
          %994 = vmatprep.subr.bf16.mxu0 0
          %995 = vmatpush1.bf16.msra.mxu0 0
          %996 = vmatprep.subr.bf16.mxu0 0
          %997 = vmatpush1.bf16.msra.mxu0 0
          %998 = vmatprep.subr.bf16.mxu0 0
          %999 = vmatpush1.bf16.msra.mxu0 0
          %1000 = vmatprep.subr.bf16.mxu0 0
          %1001 = vmatpush1.bf16.msra.mxu0 0
          %1002 = vmatprep.subr.bf16.mxu0 0
          %1003 = vmatpush1.bf16.msra.mxu0 0
          %1004 = vmatprep.mubr.bf16.mxu0 0
          %1005 = vmatmul.mubr.bf16.gmra.mrb[0].mxu0 %v481
          %v1006 = vpop.f32.mrb[0].mxu0
          %v1007 = vadd.f32 0.0, %v1006
          %v1008 = vpop.f32.mrb[0].mxu0
          %v1009 = vpop.f32.mrb[0].mxu0
          %v1010 = vpop.f32.mrb[0].mxu0
          %1011 = vdwg.mxu0
          %v1028 = vunpack.c.l.b16 %v396
          %v1029 = vunpack.c.l.b16 %v397
          %v1030 = vunpack.c.l.b16 %v398
          %v1031 = vunpack.c.l.b16 %v399
          %v1032 = vunpack.c.l.b16 %v400
          %v1033 = vunpack.c.l.b16 %v401
          %v1034 = vunpack.c.l.b16 %v402
          %v1035 = vunpack.c.l.b16 %v403
          %v1036 = vunpack.c.l.b16 %v404
          %v1037 = vunpack.c.l.b16 %v405
          %v1038 = vunpack.c.l.b16 %v406
          %v1039 = vunpack.c.l.b16 %v407
          %v1040 = vunpack.c.l.b16 %v408
          %v1041 = vunpack.c.l.b16 %v409
          %v1042 = vunpack.c.l.b16 %v410
          %v1043 = vunpack.c.l.b16 %v411
          %v1044 = vpack.c.b16 %v1029, %v1028
          %v1045 = vpack.c.b16 %v1031, %v1030
          %v1046 = vpack.c.b16 %v1033, %v1032
          %v1047 = vpack.c.b16 %v1035, %v1034
          %v1048 = vpack.c.b16 %v1037, %v1036
          %v1049 = vpack.c.b16 %v1039, %v1038
          %v1050 = vpack.c.b16 %v1041, %v1040
          %v1051 = vpack.c.b16 %v1043, %v1042
          %1060 = vmatprep.subr.bf16.mxu0 0
          %1061 = vmatpush1.bf16.msra.mxu0 %v1044
          %1062 = vmatprep.subr.bf16.mxu0 0
          %1063 = vmatpush1.bf16.msra.mxu0 %v1045
          %1064 = vmatprep.subr.bf16.mxu0 0
          %1065 = vmatpush1.bf16.msra.mxu0 %v1046
          %1066 = vmatprep.subr.bf16.mxu0 0
          %1067 = vmatpush1.bf16.msra.mxu0 %v1047
          %1068 = vmatprep.subr.bf16.mxu0 0
          %1069 = vmatpush1.bf16.msra.mxu0 %v1048
          %1070 = vmatprep.subr.bf16.mxu0 0
          %1071 = vmatpush1.bf16.msra.mxu0 %v1049
          %1072 = vmatprep.subr.bf16.mxu0 0
          %1073 = vmatpush1.bf16.msra.mxu0 %v1050
          %1074 = vmatprep.subr.bf16.mxu0 0
          %1075 = vmatpush1.bf16.msra.mxu0 %v1051
          %1076 = vmatprep.subr.bf16.mxu0 0
          %1077 = vmatpush1.bf16.msra.mxu0 0
          %1078 = vmatprep.subr.bf16.mxu0 0
          %1079 = vmatpush1.bf16.msra.mxu0 0
          %1080 = vmatprep.subr.bf16.mxu0 0
          %1081 = vmatpush1.bf16.msra.mxu0 0
          %1082 = vmatprep.subr.bf16.mxu0 0
          %1083 = vmatpush1.bf16.msra.mxu0 0
          %1084 = vmatprep.subr.bf16.mxu0 0
          %1085 = vmatpush1.bf16.msra.mxu0 0
          %1086 = vmatprep.subr.bf16.mxu0 0
          %1087 = vmatpush1.bf16.msra.mxu0 0
          %1088 = vmatprep.subr.bf16.mxu0 0
          %1089 = vmatpush1.bf16.msra.mxu0 0
          %1090 = vmatprep.subr.bf16.mxu0 0
          %1091 = vmatpush1.bf16.msra.mxu0 0
          %1092 = vmatprep.mubr.bf16.mxu0 0
          %1093 = vmatmul.mubr.bf16.gmra.mrb[0].mxu0 %v458
          %v1094 = vpop.f32.mrb[0].mxu0
          %v1095 = vadd.f32 0.0, %v1094
          %v1096 = vpop.f32.mrb[0].mxu0
          %v1097 = vpop.f32.mrb[0].mxu0
          %v1098 = vpop.f32.mrb[0].mxu0
          %1099 = vdwg.mxu0
          %v1116 = vunpack.c.l.b16 %v412
          %v1117 = vunpack.c.l.b16 %v413
          %v1118 = vunpack.c.l.b16 %v414
          %v1119 = vunpack.c.l.b16 %v415
          %v1120 = vunpack.c.l.b16 %v416
          %v1121 = vunpack.c.l.b16 %v417
          %v1122 = vunpack.c.l.b16 %v418
          %v1123 = vunpack.c.l.b16 %v419
          %v1124 = vunpack.c.l.b16 %v420
          %v1125 = vunpack.c.l.b16 %v421
          %v1126 = vunpack.c.l.b16 %v422
          %v1127 = vunpack.c.l.b16 %v423
          %v1128 = vunpack.c.l.b16 %v424
          %v1129 = vunpack.c.l.b16 %v425
          %v1130 = vunpack.c.l.b16 %v426
          %v1131 = vunpack.c.l.b16 %v427
          %v1132 = vpack.c.b16 %v1117, %v1116
          %v1133 = vpack.c.b16 %v1119, %v1118
          %v1134 = vpack.c.b16 %v1121, %v1120
          %v1135 = vpack.c.b16 %v1123, %v1122
          %v1136 = vpack.c.b16 %v1125, %v1124
          %v1137 = vpack.c.b16 %v1127, %v1126
          %v1138 = vpack.c.b16 %v1129, %v1128
          %v1139 = vpack.c.b16 %v1131, %v1130
          %1148 = vmatprep.subr.bf16.mxu0 0
          %1149 = vmatpush1.bf16.msra.mxu0 %v1132
          %1150 = vmatprep.subr.bf16.mxu0 0
          %1151 = vmatpush1.bf16.msra.mxu0 %v1133
          %1152 = vmatprep.subr.bf16.mxu0 0
          %1153 = vmatpush1.bf16.msra.mxu0 %v1134
          %1154 = vmatprep.subr.bf16.mxu0 0
          %1155 = vmatpush1.bf16.msra.mxu0 %v1135
          %1156 = vmatprep.subr.bf16.mxu0 0
          %1157 = vmatpush1.bf16.msra.mxu0 %v1136
          %1158 = vmatprep.subr.bf16.mxu0 0
          %1159 = vmatpush1.bf16.msra.mxu0 %v1137
          %1160 = vmatprep.subr.bf16.mxu0 0
          %1161 = vmatpush1.bf16.msra.mxu0 %v1138
          %1162 = vmatprep.subr.bf16.mxu0 0
          %1163 = vmatpush1.bf16.msra.mxu0 %v1139
          %1164 = vmatprep.subr.bf16.mxu0 0
          %1165 = vmatpush1.bf16.msra.mxu0 0
          %1166 = vmatprep.subr.bf16.mxu0 0
          %1167 = vmatpush1.bf16.msra.mxu0 0
          %1168 = vmatprep.subr.bf16.mxu0 0
          %1169 = vmatpush1.bf16.msra.mxu0 0
          %1170 = vmatprep.subr.bf16.mxu0 0
          %1171 = vmatpush1.bf16.msra.mxu0 0
          %1172 = vmatprep.subr.bf16.mxu0 0
          %1173 = vmatpush1.bf16.msra.mxu0 0
          %1174 = vmatprep.subr.bf16.mxu0 0
          %1175 = vmatpush1.bf16.msra.mxu0 0
          %1176 = vmatprep.subr.bf16.mxu0 0
          %1177 = vmatpush1.bf16.msra.mxu0 0
          %1178 = vmatprep.subr.bf16.mxu0 0
          %1179 = vmatpush1.bf16.msra.mxu0 0
          %1180 = vmatprep.mubr.bf16.mxu0 0
          %1181 = vmatmul.mubr.bf16.gmra.mrb[0].mxu0 %v483
          %v1182 = vpop.f32.mrb[0].mxu0
          %v1183 = vadd.f32 0.0, %v1182
          %v1184 = vpop.f32.mrb[0].mxu0
          %v1185 = vpop.f32.mrb[0].mxu0
          %v1186 = vpop.f32.mrb[0].mxu0
          %1187 = vdwg.mxu0
          %v1188 = vadd.f32 %v290, %v567
          %v1189 = vadd.f32 %v291, %v655
          %v1190 = vadd.f32 %v292, %v743
          %v1191 = vadd.f32 %v293, %v831
          %v1192 = vadd.f32 %v294, %v919
          %v1193 = vadd.f32 %v295, %v1007
          %v1194 = vadd.f32 %v296, %v1095
          %v1195 = vadd.f32 %v297, %v1183
          %1196 = vst [vmem:[#allocation2] sm:$0x3] %v1188
          %1197 = vst [vmem:[#allocation2 + $0x2] sm:$0x3] %v1189
          %1198 = vst [vmem:[#allocation2 + $0x4] sm:$0x3] %v1190
          %1199 = vst [vmem:[#allocation2 + $0x6] sm:$0x3] %v1191
          %1200 = vst [vmem:[#allocation2 + $0x8] sm:$0x3] %v1192
          %1201 = vst [vmem:[#allocation2 + $0xa] sm:$0x3] %v1193
          %1202 = vst [vmem:[#allocation2 + $0xc] sm:$0x3] %v1194
          %1203 = vst [vmem:[#allocation2 + $0xe] sm:$0x3] %v1195
        $region81: #{s4decoder_forward.6} parent=64 // pred_fallthru
          _
        // Predicated region
        $region82: #{s4decoder_forward.6} parent=64 // pred_check
          %p1204 = pneg %p274
        $region83: #{s4decoder_forward.6} parent=64 // pred_check_branch
          %1206 = sbr.rel (%p1204) target = $region85
        $region84: #{s4decoder_forward.6} parent=64 // pred_region
          %v1207 = vld [vmem:[#allocation2] sm:$0x3]
          %v1208 = vld [vmem:[#allocation2 + $0x2] sm:$0x3]
          %v1209 = vld [vmem:[#allocation2 + $0x4] sm:$0x3]
          %v1210 = vld [vmem:[#allocation2 + $0x6] sm:$0x3]
          %v1211 = vld [vmem:[#allocation2 + $0x8] sm:$0x3]
          %v1212 = vld [vmem:[#allocation2 + $0xa] sm:$0x3]
          %v1213 = vld [vmem:[#allocation2 + $0xc] sm:$0x3]
          %v1214 = vld [vmem:[#allocation2 + $0xe] sm:$0x3]
          %v1215 = vpack.c.bf16 %v1207, %v1207
          %v1218 = vunpack.c.l.s4 1966171168
          %v1219 = vunpack.c.0.s8 %v1218
          %v1220 = vlaneseq
          %v1221 = vshrl.u32 %v1220, 7
          %v1222 = vsub.s32 %v1219, %v1221
          %v1223 = vrot.slane %v1215, %v1222
          %v1225 = vunpack.c.l.s4 1966171168
          %v1226 = vunpack.c.0.s8 %v1225
          %v1227 = vlaneseq
          %v1228 = vshrl.u32 %v1227, 7
          %v1229 = vsub.s32 %v1226, %v1228
          %v1230 = vrot.slane %v1223, %v1229
          %v1231 = vunpack.i.l.s16 %v1230
          %v1232 = vunpack.i.h.s16 %v1230
          %v1233 = vpack.i.b16 %v1231, %v1231
          %v1234 = vpack.i.b16 %v1232, %v1232
          %v1236 = vunpack.c.l.s4 286326784
          %v1237 = vunpack.c.0.s8 %v1236
          %v1238 = vlaneseq
          %v1239 = vshrl.u32 %v1238, 7
          %v1240 = vsub.s32 %v1237, %v1239
          %v1241 = vrot.slane %v1233, %v1240
          %v1243 = vunpack.c.l.s4 286326784
          %v1244 = vunpack.c.0.s8 %v1243
          %v1245 = vlaneseq
          %v1246 = vshrl.u32 %v1245, 7
          %v1247 = vsub.s32 %v1244, %v1246
          %v1248 = vrot.slane %v1234, %v1247
          %vm1251 = vcmask 1040384
          %vm1252 = vsmask.f32 256
          %vm1253 = vmand %vm1251, %vm1252
          %v1254 = vld [vmem:[%s266] sm:$0x1]
          %v1255 = vsel %vm1253, %v1241, %v1254
          %1256 = vst [vmem:[%s266] sm:$0x1] %v1255
          %v1257 = vld [vmem:[%s266 + $0x4] sm:$0x1]
          %v1258 = vsel %vm1253, %v1248, %v1257
          %1259 = vst [vmem:[%s266 + $0x4] sm:$0x1] %v1258
          %v1260 = vpack.c.bf16 %v1208, %v1208
          %v1263 = vunpack.c.l.s4 1966171168
          %v1264 = vunpack.c.0.s8 %v1263
          %v1265 = vlaneseq
          %v1266 = vshrl.u32 %v1265, 7
          %v1267 = vsub.s32 %v1264, %v1266
          %v1268 = vrot.slane %v1260, %v1267
          %v1270 = vunpack.c.l.s4 1966171168
          %v1271 = vunpack.c.0.s8 %v1270
          %v1272 = vlaneseq
          %v1273 = vshrl.u32 %v1272, 7
          %v1274 = vsub.s32 %v1271, %v1273
          %v1275 = vrot.slane %v1268, %v1274
          %v1276 = vunpack.i.l.s16 %v1275
          %v1277 = vunpack.i.h.s16 %v1275
          %v1278 = vpack.i.b16 %v1276, %v1276
          %v1279 = vpack.i.b16 %v1277, %v1277
          %v1281 = vunpack.c.l.s4 286326784
          %v1282 = vunpack.c.0.s8 %v1281
          %v1283 = vlaneseq
          %v1284 = vshrl.u32 %v1283, 7
          %v1285 = vsub.s32 %v1282, %v1284
          %v1286 = vrot.slane %v1278, %v1285
          %v1288 = vunpack.c.l.s4 286326784
          %v1289 = vunpack.c.0.s8 %v1288
          %v1290 = vlaneseq
          %v1291 = vshrl.u32 %v1290, 7
          %v1292 = vsub.s32 %v1289, %v1291
          %v1293 = vrot.slane %v1279, %v1292
          %vm1296 = vsmask.f32 7938
          %vm1297 = vmand %vm1251, %vm1296
          %v1298 = vld [vmem:[%s266] sm:$0x1]
          %v1299 = vsel %vm1297, %v1286, %v1298
          %1300 = vst [vmem:[%s266] sm:$0x1] %v1299
          %v1301 = vld [vmem:[%s266 + $0x4] sm:$0x1]
          %v1302 = vsel %vm1297, %v1293, %v1301
          %1303 = vst [vmem:[%s266 + $0x4] sm:$0x1] %v1302
          %v1304 = vpack.c.bf16 %v1209, %v1209
          %v1307 = vunpack.c.l.s4 1966171168
          %v1308 = vunpack.c.0.s8 %v1307
          %v1309 = vlaneseq
          %v1310 = vshrl.u32 %v1309, 7
          %v1311 = vsub.s32 %v1308, %v1310
          %v1312 = vrot.slane %v1304, %v1311
          %v1314 = vunpack.c.l.s4 1966171168
          %v1315 = vunpack.c.0.s8 %v1314
          %v1316 = vlaneseq
          %v1317 = vshrl.u32 %v1316, 7
          %v1318 = vsub.s32 %v1315, %v1317
          %v1319 = vrot.slane %v1312, %v1318
          %v1320 = vunpack.i.l.s16 %v1319
          %v1321 = vunpack.i.h.s16 %v1319
          %v1322 = vpack.i.b16 %v1320, %v1320
          %v1323 = vpack.i.b16 %v1321, %v1321
          %v1325 = vunpack.c.l.s4 286326784
          %v1326 = vunpack.c.0.s8 %v1325
          %v1327 = vlaneseq
          %v1328 = vshrl.u32 %v1327, 7
          %v1329 = vsub.s32 %v1326, %v1328
          %v1330 = vrot.slane %v1322, %v1329
          %v1332 = vunpack.c.l.s4 286326784
          %v1333 = vunpack.c.0.s8 %v1332
          %v1334 = vlaneseq
          %v1335 = vshrl.u32 %v1334, 7
          %v1336 = vsub.s32 %v1333, %v1335
          %v1337 = vrot.slane %v1323, %v1336
          %vm1340 = vcmask 1041409
          %vm1341 = vsmask.f32 1280
          %vm1342 = vmand %vm1340, %vm1341
          %v1343 = vld [vmem:[%s266] sm:$0x2]
          %v1344 = vsel %vm1342, %v1330, %v1343
          %1345 = vst [vmem:[%s266] sm:$0x2] %v1344
          %v1346 = vld [vmem:[%s266 + $0x4] sm:$0x2]
          %v1347 = vsel %vm1342, %v1337, %v1346
          %1348 = vst [vmem:[%s266 + $0x4] sm:$0x2] %v1347
          %v1349 = vpack.c.bf16 %v1210, %v1210
          %v1352 = vunpack.c.l.s4 1966171168
          %v1353 = vunpack.c.0.s8 %v1352
          %v1354 = vlaneseq
          %v1355 = vshrl.u32 %v1354, 7
          %v1356 = vsub.s32 %v1353, %v1355
          %v1357 = vrot.slane %v1349, %v1356
          %v1359 = vunpack.c.l.s4 1966171168
          %v1360 = vunpack.c.0.s8 %v1359
          %v1361 = vlaneseq
          %v1362 = vshrl.u32 %v1361, 7
          %v1363 = vsub.s32 %v1360, %v1362
          %v1364 = vrot.slane %v1357, %v1363
          %v1365 = vunpack.i.l.s16 %v1364
          %v1366 = vunpack.i.h.s16 %v1364
          %v1367 = vpack.i.b16 %v1365, %v1365
          %v1368 = vpack.i.b16 %v1366, %v1366
          %v1370 = vunpack.c.l.s4 286326784
          %v1371 = vunpack.c.0.s8 %v1370
          %v1372 = vlaneseq
          %v1373 = vshrl.u32 %v1372, 7
          %v1374 = vsub.s32 %v1371, %v1373
          %v1375 = vrot.slane %v1367, %v1374
          %v1377 = vunpack.c.l.s4 286326784
          %v1378 = vunpack.c.0.s8 %v1377
          %v1379 = vlaneseq
          %v1380 = vshrl.u32 %v1379, 7
          %v1381 = vsub.s32 %v1378, %v1380
          %v1382 = vrot.slane %v1368, %v1381
          %vm1385 = vsmask.f32 7942
          %vm1386 = vmand %vm1340, %vm1385
          %v1387 = vld [vmem:[%s266] sm:$0x2]
          %v1388 = vsel %vm1386, %v1375, %v1387
          %1389 = vst [vmem:[%s266] sm:$0x2] %v1388
          %v1390 = vld [vmem:[%s266 + $0x4] sm:$0x2]
          %v1391 = vsel %vm1386, %v1382, %v1390
          %1392 = vst [vmem:[%s266 + $0x4] sm:$0x2] %v1391
          %v1393 = vpack.c.bf16 %v1211, %v1211
          %v1396 = vunpack.c.l.s4 1966171168
          %v1397 = vunpack.c.0.s8 %v1396
          %v1398 = vlaneseq
          %v1399 = vshrl.u32 %v1398, 7
          %v1400 = vsub.s32 %v1397, %v1399
          %v1401 = vrot.slane %v1393, %v1400
          %v1403 = vunpack.c.l.s4 1966171168
          %v1404 = vunpack.c.0.s8 %v1403
          %v1405 = vlaneseq
          %v1406 = vshrl.u32 %v1405, 7
          %v1407 = vsub.s32 %v1404, %v1406
          %v1408 = vrot.slane %v1401, %v1407
          %v1409 = vunpack.i.l.s16 %v1408
          %v1410 = vunpack.i.h.s16 %v1408
          %v1411 = vpack.i.b16 %v1409, %v1409
          %v1412 = vpack.i.b16 %v1410, %v1410
          %v1414 = vunpack.c.l.s4 286326784
          %v1415 = vunpack.c.0.s8 %v1414
          %v1416 = vlaneseq
          %v1417 = vshrl.u32 %v1416, 7
          %v1418 = vsub.s32 %v1415, %v1417
          %v1419 = vrot.slane %v1411, %v1418
          %v1421 = vunpack.c.l.s4 286326784
          %v1422 = vunpack.c.0.s8 %v1421
          %v1423 = vlaneseq
          %v1424 = vshrl.u32 %v1423, 7
          %v1425 = vsub.s32 %v1422, %v1424
          %v1426 = vrot.slane %v1412, %v1425
          %vm1429 = vcmask 1042434
          %vm1430 = vsmask.f32 2304
          %vm1431 = vmand %vm1429, %vm1430
          %v1432 = vld [vmem:[%s266] sm:$0x4]
          %v1433 = vsel %vm1431, %v1419, %v1432
          %1434 = vst [vmem:[%s266] sm:$0x4] %v1433
          %v1435 = vld [vmem:[%s266 + $0x4] sm:$0x4]
          %v1436 = vsel %vm1431, %v1426, %v1435
          %1437 = vst [vmem:[%s266 + $0x4] sm:$0x4] %v1436
          %v1438 = vpack.c.bf16 %v1212, %v1212
          %v1441 = vunpack.c.l.s4 1966171168
          %v1442 = vunpack.c.0.s8 %v1441
          %v1443 = vlaneseq
          %v1444 = vshrl.u32 %v1443, 7
          %v1445 = vsub.s32 %v1442, %v1444
          %v1446 = vrot.slane %v1438, %v1445
          %v1448 = vunpack.c.l.s4 1966171168
          %v1449 = vunpack.c.0.s8 %v1448
          %v1450 = vlaneseq
          %v1451 = vshrl.u32 %v1450, 7
          %v1452 = vsub.s32 %v1449, %v1451
          %v1453 = vrot.slane %v1446, %v1452
          %v1454 = vunpack.i.l.s16 %v1453
          %v1455 = vunpack.i.h.s16 %v1453
          %v1456 = vpack.i.b16 %v1454, %v1454
          %v1457 = vpack.i.b16 %v1455, %v1455
          %v1459 = vunpack.c.l.s4 286326784
          %v1460 = vunpack.c.0.s8 %v1459
          %v1461 = vlaneseq
          %v1462 = vshrl.u32 %v1461, 7
          %v1463 = vsub.s32 %v1460, %v1462
          %v1464 = vrot.slane %v1456, %v1463
          %v1466 = vunpack.c.l.s4 286326784
          %v1467 = vunpack.c.0.s8 %v1466
          %v1468 = vlaneseq
          %v1469 = vshrl.u32 %v1468, 7
          %v1470 = vsub.s32 %v1467, %v1469
          %v1471 = vrot.slane %v1457, %v1470
          %vm1474 = vsmask.f32 7946
          %vm1475 = vmand %vm1429, %vm1474
          %v1476 = vld [vmem:[%s266] sm:$0x4]
          %v1477 = vsel %vm1475, %v1464, %v1476
          %1478 = vst [vmem:[%s266] sm:$0x4] %v1477
          %v1479 = vld [vmem:[%s266 + $0x4] sm:$0x4]
          %v1480 = vsel %vm1475, %v1471, %v1479
          %1481 = vst [vmem:[%s266 + $0x4] sm:$0x4] %v1480
          %v1482 = vpack.c.bf16 %v1213, %v1213
          %v1485 = vunpack.c.l.s4 1966171168
          %v1486 = vunpack.c.0.s8 %v1485
          %v1487 = vlaneseq
          %v1488 = vshrl.u32 %v1487, 7
          %v1489 = vsub.s32 %v1486, %v1488
          %v1490 = vrot.slane %v1482, %v1489
          %v1492 = vunpack.c.l.s4 1966171168
          %v1493 = vunpack.c.0.s8 %v1492
          %v1494 = vlaneseq
          %v1495 = vshrl.u32 %v1494, 7
          %v1496 = vsub.s32 %v1493, %v1495
          %v1497 = vrot.slane %v1490, %v1496
          %v1498 = vunpack.i.l.s16 %v1497
          %v1499 = vunpack.i.h.s16 %v1497
          %v1500 = vpack.i.b16 %v1498, %v1498
          %v1501 = vpack.i.b16 %v1499, %v1499
          %v1503 = vunpack.c.l.s4 286326784
          %v1504 = vunpack.c.0.s8 %v1503
          %v1505 = vlaneseq
          %v1506 = vshrl.u32 %v1505, 7
          %v1507 = vsub.s32 %v1504, %v1506
          %v1508 = vrot.slane %v1500, %v1507
          %v1510 = vunpack.c.l.s4 286326784
          %v1511 = vunpack.c.0.s8 %v1510
          %v1512 = vlaneseq
          %v1513 = vshrl.u32 %v1512, 7
          %v1514 = vsub.s32 %v1511, %v1513
          %v1515 = vrot.slane %v1501, %v1514
          %vm1518 = vcmask 1043459
          %vm1519 = vsmask.f32 3328
          %vm1520 = vmand %vm1518, %vm1519
          %v1521 = vld [vmem:[%s266] sm:$0x8]
          %v1522 = vsel %vm1520, %v1508, %v1521
          %1523 = vst [vmem:[%s266] sm:$0x8] %v1522
          %v1524 = vld [vmem:[%s266 + $0x4] sm:$0x8]
          %v1525 = vsel %vm1520, %v1515, %v1524
          %1526 = vst [vmem:[%s266 + $0x4] sm:$0x8] %v1525
          %v1527 = vpack.c.bf16 %v1214, %v1214
          %v1530 = vunpack.c.l.s4 1966171168
          %v1531 = vunpack.c.0.s8 %v1530
          %v1532 = vlaneseq
          %v1533 = vshrl.u32 %v1532, 7
          %v1534 = vsub.s32 %v1531, %v1533
          %v1535 = vrot.slane %v1527, %v1534
          %v1537 = vunpack.c.l.s4 1966171168
          %v1538 = vunpack.c.0.s8 %v1537
          %v1539 = vlaneseq
          %v1540 = vshrl.u32 %v1539, 7
          %v1541 = vsub.s32 %v1538, %v1540
          %v1542 = vrot.slane %v1535, %v1541
          %v1543 = vunpack.i.l.s16 %v1542
          %v1544 = vunpack.i.h.s16 %v1542
          %v1545 = vpack.i.b16 %v1543, %v1543
          %v1546 = vpack.i.b16 %v1544, %v1544
          %v1548 = vunpack.c.l.s4 286326784
          %v1549 = vunpack.c.0.s8 %v1548
          %v1550 = vlaneseq
          %v1551 = vshrl.u32 %v1550, 7
          %v1552 = vsub.s32 %v1549, %v1551
          %v1553 = vrot.slane %v1545, %v1552
          %v1555 = vunpack.c.l.s4 286326784
          %v1556 = vunpack.c.0.s8 %v1555
          %v1557 = vlaneseq
          %v1558 = vshrl.u32 %v1557, 7
          %v1559 = vsub.s32 %v1556, %v1558
          %v1560 = vrot.slane %v1546, %v1559
          %vm1563 = vsmask.f32 7950
          %vm1564 = vmand %vm1518, %vm1563
          %v1565 = vld [vmem:[%s266] sm:$0x8]
          %v1566 = vsel %vm1564, %v1553, %v1565
          %1567 = vst [vmem:[%s266] sm:$0x8] %v1566
          %v1568 = vld [vmem:[%s266 + $0x4] sm:$0x8]
          %v1569 = vsel %vm1564, %v1560, %v1568
          %1570 = vst [vmem:[%s266 + $0x4] sm:$0x8] %v1569
        $region85: #{s4decoder_forward.6} parent=64 // pred_fallthru
          _
        %s1571 = sand.u32 %s111, 1
        %s1572 = sand.u32 %s111, 1
        %s1573 = smul.addr %s1572, 8
        %s1574 = scalar_lea.vmem [#allocation6], %s1573
        // Predicated region
        $region86: #{s4decoder_forward.6} parent=64 // pred_check
          %p1575 = pneg %p121
        $region87: #{s4decoder_forward.6} parent=64 // pred_check_branch
          %1577 = sbr.rel (%p1575) target = $region89
        $region88: #{s4decoder_forward.6} parent=64 // pred_region
          %s1578 = sadd.s32 %s22, %s21
          %s1579 = smul.addr %s1578, 4
          %s1580 = scalar_lea.vmem %s2, %s1579
          // Predicated region
          $region90: #{s4decoder_forward.6} parent=88 // pred_check
            _
          $region91: #{s4decoder_forward.6} parent=88 // pred_check_branch
            %1582 = sbr.rel (0) target = $region93
          $region92: #{s4decoder_forward.6} parent=88 // pred_region
            // Predicated region
            $region94: #{s4decoder_forward.6} parent=92 // pred_check
              _
            $region95: #{s4decoder_forward.6} parent=92 // pred_check_branch
              %1584 = sbr.rel target = $region97
            $region96: #{s4decoder_forward.6} parent=92 // pred_region
              // Predicated region
              $region109: #{s4decoder_forward.6} parent=96 // pred_check
                _
              $region110: #{s4decoder_forward.6} parent=96 // pred_check_branch
                %1601 = sbr.rel (0) target = $region112
              $region111: #{s4decoder_forward.6} parent=96 // pred_region
                loop: start=0, step=1, limit=1
                $region113: #{s4decoder_forward.6} parent=111 // loop_pre_header
                  _
                $region114: #{s4decoder_forward.6} parent=111 // loop_header
                  %s1603 = sphi 0, %s1607
                  %p1604 = scmp.ge.s32.totalorder %s1603, 1
                  %s1608 = sphi %s1574, %s1574
                  %s1609 = sphi %s1580, %s1580
                $region115: #{s4decoder_forward.6} parent=111 // loop_header_branch
                  %1606 = sbr.rel (%p1604) target = $region119
                $region116: #{s4decoder_forward.6} parent=111 // loop_body
                  _
                $region117: #{s4decoder_forward.6} parent=111 // loop_footer
                  %s1607 = sadd.s32 1, %s1603
                $region118: #{s4decoder_forward.6} parent=111 // loop_footer_branch
                  %1602 = sbr.rel target = $region114
                $region119: #{s4decoder_forward.6} parent=111 // loop_exit
                  _
                loop: start=0, step=1, limit=1
                $region120: #{s4decoder_forward.6} parent=111 // loop_pre_header
                  _
                $region121: #{s4decoder_forward.6} parent=111 // loop_header
                  %s1612 = sphi 0, %s1616
                  %p1613 = scmp.ge.s32.totalorder %s1612, 1
                  %s1617 = sphi %s1574, %s1574
                  %s1618 = sphi %s1580, %s1580
                $region122: #{s4decoder_forward.6} parent=111 // loop_header_branch
                  %1615 = sbr.rel (%p1613) target = $region126
                $region123: #{s4decoder_forward.6} parent=111 // loop_body
                  %v1619 = vld [vmem:[%s1617] sm:$0xf]
                  %1620 = vst [vmem:[%s1618] sm:$0xf] %v1619
                  %v1621 = vld [vmem:[%s1617 + $0x4] sm:$0xf]
                  %1622 = vst [vmem:[%s1618 + $0x8] sm:$0xf] %v1621
                $region124: #{s4decoder_forward.6} parent=111 // loop_footer
                  %s1616 = sadd.s32 1, %s1612
                $region125: #{s4decoder_forward.6} parent=111 // loop_footer_branch
                  %1611 = sbr.rel target = $region121
                $region126: #{s4decoder_forward.6} parent=111 // loop_exit
                  _
              $region112: #{s4decoder_forward.6} parent=96 // pred_fallthru
                _
            $region97: #{s4decoder_forward.6} parent=92 // pred_fallthru
              _
            // Predicated region
            $region98: #{s4decoder_forward.6} parent=92 // pred_check
              _
            $region99: #{s4decoder_forward.6} parent=92 // pred_check_branch
              %1586 = sbr.rel (0) target = $region101
            $region100: #{s4decoder_forward.6} parent=92 // pred_region
              loop: start=0, step=1, limit=1
              $region102: #{s4decoder_forward.6} parent=100 // loop_pre_header
                _
              $region103: #{s4decoder_forward.6} parent=100 // loop_header
                %s1589 = sphi 0, %s1593
                %p1590 = scmp.ge.s32.totalorder %s1589, 1
                %s1594 = sphi %s1574, %s1574
                %s1595 = sphi %s1580, %s1580
              $region104: #{s4decoder_forward.6} parent=100 // loop_header_branch
                %1592 = sbr.rel (%p1590) target = $region108
              $region105: #{s4decoder_forward.6} parent=100 // loop_body
                %v1596 = vld [vmem:[%s1594] sm:$0xf]
                %1597 = vst [vmem:[%s1595] sm:$0xf] %v1596
                %v1598 = vld [vmem:[%s1594 + $0x4] sm:$0xf]
                %1599 = vst [vmem:[%s1595 + $0x8] sm:$0xf] %v1598
              $region106: #{s4decoder_forward.6} parent=100 // loop_footer
                %s1593 = sadd.s32 1, %s1589
              $region107: #{s4decoder_forward.6} parent=100 // loop_footer_branch
                %1588 = sbr.rel target = $region103
              $region108: #{s4decoder_forward.6} parent=100 // loop_exit
                _
            $region101: #{s4decoder_forward.6} parent=92 // pred_fallthru
              _
          $region93: #{s4decoder_forward.6} parent=88 // pred_fallthru
            _
          %1623 = vnop
        $region89: #{s4decoder_forward.6} parent=64 // pred_fallthru
          _
      $region65: #{s4decoder_forward.6} parent=5 // pred_fallthru
        _
      %p1624 = scmp.le.s32.totalorder 2, %s11
      // Predicated region
      $region127: #{s4decoder_forward.6} parent=5 // pred_check
        %p1625 = pneg %p1624
      $region128: #{s4decoder_forward.6} parent=5 // pred_check_branch
        %1627 = sbr.rel (%p1625) target = $region130
      $region129: #{s4decoder_forward.6} parent=5 // pred_region
        %s1628 = ssub.s32 %s11, 2
        // Predicated region
        $region131: #{s4decoder_forward.6} parent=129 // pred_check
          %p1629 = pneg %p127
        $region132: #{s4decoder_forward.6} parent=129 // pred_check_branch
          %1631 = sbr.rel (%p1629) target = $region134
        $region133: #{s4decoder_forward.6} parent=129 // pred_region
          %s1632 = sand.u32 %s112, 1
          %s1633 = sand.u32 %s112, 1
          %s1634 = smul.addr %s1633, 8
          %s1635 = scalar_lea.vmem [#allocation6], %s1634
        $region134: #{s4decoder_forward.6} parent=129 // pred_fallthru
          _
      $region130: #{s4decoder_forward.6} parent=5 // pred_fallthru
        _
    $region6: #{s4decoder_forward.6} parent=1 // loop_footer
      %s15 = sadd.s32 1, %s11
    $region7: #{s4decoder_forward.6} parent=1 // loop_footer_branch
      %10 = sbr.rel target = $region3
    $region8: #{s4decoder_forward.6} parent=1 // loop_exit
      _
    %1636 = vsyncpa [#allocation4], 1
    %s1637 = scalar_lea.sflag [#allocation4], 1
    %1638 = vsyncpa %s1637, 1

// kernel: s4decoder_forward.9
$region0: #{s4decoder_forward.9}
  #allocation0 [shape = 'u32[]', space=smem, size = 0x4, offset = 0x4, fixed_abs, tag = 'smem constant byte address 0x4 - core index']
  #allocation1 [shape = 'u32[144,128]{1,0:T(1,128)}', space=vmem, size = 0x12000, scoped, tag = 'internal scratch']
  #allocation2 [shape = 'f32[1,1]{1,0:T(1,128)S(1)}', space=vmem, size = 0x200, scoped, tag = 'scoped memory for s4decoder_forward.9']
  %s0 = inlined_call_operand.vmem [shape: bf16[2,16,128], index: 0, kind: input, shape index: {}]
  %s1 = inlined_call_operand.vmem [shape: bf16[2,16,128], index: 1, kind: input, shape index: {}]
  %s2 = inlined_call_operand.vmem [shape: f32[2,16,128], index: 2, kind: input, shape index: {}]
  %s3 = inlined_call_operand.vmem [shape: f32[16,1], index: 3, kind: input, shape index: {}]
  %s4 = inlined_call_operand.vmem [shape: bf16[16,16], index: 4, kind: input, shape index: {}]
  %s5 = inlined_call_operand.vmem [shape: f32[16,1], index: 5, kind: input, shape index: {}]
  %s6 = inlined_call_operand.vmem [shape: f32[16,1], index: 6, kind: input, shape index: {}]
  %s7 = inlined_call_operand.vmem [shape: f32[16,1], index: 7, kind: input, shape index: {}]
  %s8 = inlined_call_operand.vmem [shape: bf16[32,16], index: 8, kind: input, shape index: {}]
  %s9 = inlined_call_operand.vmem [shape: f32[32,1], index: 9, kind: input, shape index: {}]
  %s10 = inlined_call_operand.vmem [shape: bf16[16,32], index: 10, kind: input, shape index: {}]
  %s11 = inlined_call_operand.vmem [shape: f32[16,1], index: 11, kind: input, shape index: {}]
  %s12 = inlined_call_operand.vmem [shape: f32[16,1], index: 12, kind: input, shape index: {}]
  %s13 = inlined_call_operand.<no memory space> [shape: f32[1,1], index: 13, kind: input, shape index: {}]
  %s14 = inlined_call_operand.hbm [shape: f32[2,128], index: 14, kind: output, shape index: {}]
  %s15 = sld [smem:[#allocation0]]
  $region66: #{s4decoder_forward.9} parent=0
    _
  %s17 = ssub.s32 1, %s15
  %s18 = scalar_select 0, %s17, %s15
  %v19 = vstv %s13
  %20 = vst [vmem:[#allocation2] sm:$0x1] %v19
  $region1: #{s4decoder_forward.9} parent=0
    #allocation3 [shape = 'u8[1024]{0}', space=vmem, size = 0x400, scoped, tag = 'output window, operand 0, single buffered']
    #allocation4 [shape = 's32[1]{0}', space=sflag, size = 0x4, scoped, tag = 'scoped memory for s4decoder_forward.9']
    %21 = vsyncpa [#allocation4], 0
    // Predicated region
    $region2: #{s4decoder_forward.9} parent=1 // pred_check
      _
    $region3: #{s4decoder_forward.9} parent=1 // pred_check_branch
      %23 = sbr.rel (0) target = $region5
    $region4: #{s4decoder_forward.9} parent=1 // pred_region
      _
    $region5: #{s4decoder_forward.9} parent=1 // pred_fallthru
      _
    // Predicated region
    $region6: #{s4decoder_forward.9} parent=1 // pred_check
      _
    $region7: #{s4decoder_forward.9} parent=1 // pred_check_branch
      %25 = sbr.rel (0) target = $region9
    $region8: #{s4decoder_forward.9} parent=1 // pred_region
      _
    $region9: #{s4decoder_forward.9} parent=1 // pred_fallthru
      _
    // Predicated region
    $region10: #{s4decoder_forward.9} parent=1 // pred_check
      _
    $region11: #{s4decoder_forward.9} parent=1 // pred_check_branch
      %27 = sbr.rel (0) target = $region13
    $region12: #{s4decoder_forward.9} parent=1 // pred_region
      _
    $region13: #{s4decoder_forward.9} parent=1 // pred_fallthru
      _
    // Predicated region
    $region14: #{s4decoder_forward.9} parent=1 // pred_check
      _
    $region15: #{s4decoder_forward.9} parent=1 // pred_check_branch
      %29 = sbr.rel (0) target = $region17
    $region16: #{s4decoder_forward.9} parent=1 // pred_region
      _
    $region17: #{s4decoder_forward.9} parent=1 // pred_fallthru
      _
    // Predicated region
    $region18: #{s4decoder_forward.9} parent=1 // pred_check
      _
    $region19: #{s4decoder_forward.9} parent=1 // pred_check_branch
      %31 = sbr.rel (0) target = $region21
    $region20: #{s4decoder_forward.9} parent=1 // pred_region
      _
    $region21: #{s4decoder_forward.9} parent=1 // pred_fallthru
      _
    // Predicated region
    $region22: #{s4decoder_forward.9} parent=1 // pred_check
      _
    $region23: #{s4decoder_forward.9} parent=1 // pred_check_branch
      %33 = sbr.rel (0) target = $region25
    $region24: #{s4decoder_forward.9} parent=1 // pred_region
      _
    $region25: #{s4decoder_forward.9} parent=1 // pred_fallthru
      _
    // Predicated region
    $region26: #{s4decoder_forward.9} parent=1 // pred_check
      _
    $region27: #{s4decoder_forward.9} parent=1 // pred_check_branch
      %35 = sbr.rel (0) target = $region29
    $region28: #{s4decoder_forward.9} parent=1 // pred_region
      _
    $region29: #{s4decoder_forward.9} parent=1 // pred_fallthru
      _
    // Predicated region
    $region30: #{s4decoder_forward.9} parent=1 // pred_check
      _
    $region31: #{s4decoder_forward.9} parent=1 // pred_check_branch
      %37 = sbr.rel (0) target = $region33
    $region32: #{s4decoder_forward.9} parent=1 // pred_region
      _
    $region33: #{s4decoder_forward.9} parent=1 // pred_fallthru
      _
    // Predicated region
    $region34: #{s4decoder_forward.9} parent=1 // pred_check
      _
    $region35: #{s4decoder_forward.9} parent=1 // pred_check_branch
      %39 = sbr.rel (0) target = $region37
    $region36: #{s4decoder_forward.9} parent=1 // pred_region
      _
    $region37: #{s4decoder_forward.9} parent=1 // pred_fallthru
      _
    // Predicated region
    $region38: #{s4decoder_forward.9} parent=1 // pred_check
      _
    $region39: #{s4decoder_forward.9} parent=1 // pred_check_branch
      %41 = sbr.rel (0) target = $region41
    $region40: #{s4decoder_forward.9} parent=1 // pred_region
      _
    $region41: #{s4decoder_forward.9} parent=1 // pred_fallthru
      _
    // Predicated region
    $region42: #{s4decoder_forward.9} parent=1 // pred_check
      _
    $region43: #{s4decoder_forward.9} parent=1 // pred_check_branch
      %43 = sbr.rel (0) target = $region45
    $region44: #{s4decoder_forward.9} parent=1 // pred_region
      _
    $region45: #{s4decoder_forward.9} parent=1 // pred_fallthru
      _
    // Predicated region
    $region46: #{s4decoder_forward.9} parent=1 // pred_check
      _
    $region47: #{s4decoder_forward.9} parent=1 // pred_check_branch
      %45 = sbr.rel (0) target = $region49
    $region48: #{s4decoder_forward.9} parent=1 // pred_region
      _
    $region49: #{s4decoder_forward.9} parent=1 // pred_fallthru
      _
    // Predicated region
    $region50: #{s4decoder_forward.9} parent=1 // pred_check
      _
    $region51: #{s4decoder_forward.9} parent=1 // pred_check_branch
      %47 = sbr.rel (0) target = $region53
    $region52: #{s4decoder_forward.9} parent=1 // pred_region
      _
    $region53: #{s4decoder_forward.9} parent=1 // pred_fallthru
      _
    // Predicated region
    $region54: #{s4decoder_forward.9} parent=1 // pred_check
      _
    $region55: #{s4decoder_forward.9} parent=1 // pred_check_branch
      %49 = sbr.rel (0) target = $region57
    $region56: #{s4decoder_forward.9} parent=1 // pred_region
      _
    $region57: #{s4decoder_forward.9} parent=1 // pred_fallthru
      _
    %v51 = vld [vmem:[%s3] sm:$0xff]
    %v52 = vld [vmem:[%s3 + $0x8] sm:$0xff]
    %v53 = vld [vmem:[%s4] sm:$0xf]
    %v54 = vld [vmem:[%s4 + $0x4] sm:$0xf]
    %v55 = vld [vmem:[%s5] sm:$0xff]
    %v56 = vld [vmem:[%s5 + $0x8] sm:$0xff]
    %v57 = vld [vmem:[%s6] sm:$0xff]
    %v58 = vld [vmem:[%s6 + $0x8] sm:$0xff]
    %v59 = vld [vmem:[%s7] sm:$0xff]
    %v60 = vld [vmem:[%s7 + $0x8] sm:$0xff]
    %v61 = vld [vmem:[%s8] sm:$0xf]
    %v62 = vld [vmem:[%s8 + $0x4] sm:$0xf]
    %v63 = vld [vmem:[%s8 + $0x8] sm:$0xf]
    %v64 = vld [vmem:[%s8 + $0xc] sm:$0xf]
    %v65 = vld [vmem:[%s9] sm:$0xff]
    %v66 = vld [vmem:[%s9 + $0x8] sm:$0xff]
    %v67 = vld [vmem:[%s9 + $0x10] sm:$0xff]
    %v68 = vld [vmem:[%s9 + $0x18] sm:$0xff]
    %v69 = vld [vmem:[%s10] sm:$0xf]
    %v70 = vld [vmem:[%s10 + $0x4] sm:$0xf]
    %v71 = vld [vmem:[%s11] sm:$0xff]
    %v72 = vld [vmem:[%s11 + $0x8] sm:$0xff]
    %v73 = vld [vmem:[%s12] sm:$0xff]
    %v74 = vld [vmem:[%s12 + $0x8] sm:$0xff]
    %v75 = vld [vmem:[#allocation2] sm:$0x1]
    %v76 = vld [vmem:[%s0] sm:$0xf]
    %v77 = vld [vmem:[%s0 + $0x4] sm:$0xf]
    %v78 = vunpack.c.l.bf16 %v76
    %v79 = vunpack.c.l.bf16 %v77
    %v80 = vld [vmem:[%s1] sm:$0xf]
    %v81 = vld [vmem:[%s1 + $0x4] sm:$0xf]
    %v82 = vunpack.c.l.bf16 %v80
    %v83 = vunpack.c.l.bf16 %v81
    %v84 = vld [vmem:[%s2] sm:$0xff]
    %v85 = vld [vmem:[%s2 + $0x8] sm:$0xff]
    %87 = vset.pattern.permute.xlu0 0
    %88 = vperm.xlu0 %87, %v51
    %v89 = vpop.permute.xlu0 %88
    %92 = vset.pattern.permute.xlu0 0
    %93 = vperm.xlu0 %92, %v52
    %v94 = vpop.permute.xlu0 %93
    %v96 = vmul.f32 %v82, %v89
    %v97 = vmul.f32 %v83, %v94
    %v98 = vadd.f32 %v78, %v96
    %v99 = vadd.f32 %v79, %v97
    %v100 = vmul.f32 %v98, %v98
    %v101 = vmul.f32 %v99, %v99
    %v102 = vmul.f32 %v98, %v100
    %v103 = vmul.f32 %v99, %v101
    %v104 = vmul.f32 %v102, 0.044715
    %v105 = vmul.f32 %v103, 0.044715
    %v106 = vadd.f32 %v98, %v104
    %v107 = vadd.f32 %v99, %v105
    %v108 = vmul.f32 %v106, 0.7978846
    %v109 = vmul.f32 %v107, 0.7978846
    %v110 = vtanh.pop %v108
    %v111 = vtanh.pop %v109
    %v112 = vadd.f32 %v110, 1.0
    %v113 = vadd.f32 %v111, 1.0
    %v114 = vmul.f32 %v112, 0.5
    %v115 = vmul.f32 %v113, 0.5
    %v116 = vmul.f32 %v98, %v114
    %v117 = vmul.f32 %v99, %v115
    %v118 = vpack.c.bf16 %v117, %v116
    %120 = vset.pattern.permute.xlu0 0
    %121 = vperm.xlu0 %120, %v55
    %v122 = vpop.permute.xlu0 %121
    %125 = vset.pattern.permute.xlu0 0
    %126 = vperm.xlu0 %125, %v56
    %v127 = vpop.permute.xlu0 %126
    %v131 = vunpack.c.l.b16 %v53
    %v132 = vunpack.c.l.b16 %v54
    %v133 = vpack.c.b16 %v132, %v131
    %vm134 = vcmask 130048
    %v136 = vsel %vm134, %v133, 0
    %138 = vmatprep.subr.bf16.mxu0 0
    %139 = vmatpush1.bf16.msra.mxu0 %v118
    %140 = vmatprep.subr.bf16.mxu0 0
    %141 = vmatpush1.bf16.msra.mxu0 0
    %142 = vmatprep.subr.bf16.mxu0 0
    %143 = vmatpush1.bf16.msra.mxu0 0
    %144 = vmatprep.subr.bf16.mxu0 0
    %145 = vmatpush1.bf16.msra.mxu0 0
    %146 = vmatprep.subr.bf16.mxu0 0
    %147 = vmatpush1.bf16.msra.mxu0 0
    %148 = vmatprep.subr.bf16.mxu0 0
    %149 = vmatpush1.bf16.msra.mxu0 0
    %150 = vmatprep.subr.bf16.mxu0 0
    %151 = vmatpush1.bf16.msra.mxu0 0
    %152 = vmatprep.subr.bf16.mxu0 0
    %153 = vmatpush1.bf16.msra.mxu0 0
    %154 = vmatprep.subr.bf16.mxu0 0
    %155 = vmatpush1.bf16.msra.mxu0 0
    %156 = vmatprep.subr.bf16.mxu0 0
    %157 = vmatpush1.bf16.msra.mxu0 0
    %158 = vmatprep.subr.bf16.mxu0 0
    %159 = vmatpush1.bf16.msra.mxu0 0
    %160 = vmatprep.subr.bf16.mxu0 0
    %161 = vmatpush1.bf16.msra.mxu0 0
    %162 = vmatprep.subr.bf16.mxu0 0
    %163 = vmatpush1.bf16.msra.mxu0 0
    %164 = vmatprep.subr.bf16.mxu0 0
    %165 = vmatpush1.bf16.msra.mxu0 0
    %166 = vmatprep.subr.bf16.mxu0 0
    %167 = vmatpush1.bf16.msra.mxu0 0
    %168 = vmatprep.subr.bf16.mxu0 0
    %169 = vmatpush1.bf16.msra.mxu0 0
    %170 = vmatprep.mubr.bf16.mxu0 0
    %171 = vmatmul.mubr.bf16.gmra.mrb[0].mxu0 %v136
    %v172 = vpop.f32.mrb[0].mxu0
    %v173 = vadd.f32 %v122, %v172
    %v174 = vpop.f32.mrb[0].mxu0
    %v175 = vpop.f32.mrb[0].mxu0
    %v176 = vadd.f32 %v127, %v175
    %v177 = vpop.f32.mrb[0].mxu0
    %178 = vdwg.mxu0
    %v179 = vadd.f32 %v84, %v173
    %v180 = vadd.f32 %v85, %v176
    %v181 = vadd.f32 %v179, %v180
    %v182 = vrot.slane %v181, 4
    %v183 = vadd.f32 %v181, %v182
    %v184 = vrot.slane %v183, 2
    %v185 = vadd.f32 %v183, %v184
    %v186 = vrot.slane %v185, 1
    %v187 = vadd.f32 %v185, %v186
    %v188 = vrcp.pop 16.0
    %v189 = vmul.f32 %v187, %v188
    %v190 = vsub.f32 %v179, %v189
    %v191 = vsub.f32 %v180, %v189
    %v192 = vmul.f32 %v190, %v190
    %v193 = vmul.f32 %v191, %v191
    %v194 = vadd.f32 %v192, %v193
    %v195 = vrot.slane %v194, 4
    %v196 = vadd.f32 %v194, %v195
    %v197 = vrot.slane %v196, 2
    %v198 = vadd.f32 %v196, %v197
    %v199 = vrot.slane %v198, 1
    %v200 = vadd.f32 %v198, %v199
    %v201 = vmul.f32 %v200, %v188
    %v202 = vadd.f32 %v201, 1e-05
    %v203 = vrsqrt.pop %v202
    %v204 = vmul.f32 %v190, %v203
    %v205 = vmul.f32 %v191, %v203
    %207 = vset.pattern.permute.xlu0 0
    %208 = vperm.xlu0 %207, %v57
    %v209 = vpop.permute.xlu0 %208
    %212 = vset.pattern.permute.xlu0 0
    %213 = vperm.xlu0 %212, %v58
    %v214 = vpop.permute.xlu0 %213
    %v216 = vmul.f32 %v204, %v209
    %v217 = vmul.f32 %v205, %v214
    %219 = vset.pattern.permute.xlu0 0
    %220 = vperm.xlu0 %219, %v59
    %v221 = vpop.permute.xlu0 %220
    %224 = vset.pattern.permute.xlu0 0
    %225 = vperm.xlu0 %224, %v60
    %v226 = vpop.permute.xlu0 %225
    %v228 = vadd.f32 %v216, %v221
    %v229 = vadd.f32 %v217, %v226
    %v230 = vpack.c.bf16 %v229, %v228
    %232 = vset.pattern.permute.xlu0 0
    %233 = vperm.xlu0 %232, %v65
    %v234 = vpop.permute.xlu0 %233
    %237 = vset.pattern.permute.xlu0 0
    %238 = vperm.xlu0 %237, %v66
    %v239 = vpop.permute.xlu0 %238
    %242 = vset.pattern.permute.xlu0 0
    %243 = vperm.xlu0 %242, %v67
    %v244 = vpop.permute.xlu0 %243
    %247 = vset.pattern.permute.xlu0 0
    %248 = vperm.xlu0 %247, %v68
    %v249 = vpop.permute.xlu0 %248
    %v255 = vunpack.c.l.b16 %v61
    %v256 = vunpack.c.l.b16 %v62
    %v257 = vunpack.c.l.b16 %v63
    %v258 = vunpack.c.l.b16 %v64
    %v259 = vpack.c.b16 %v256, %v255
    %v260 = vpack.c.b16 %v258, %v257
    %v262 = vsel %vm134, %v259, 0
    %v265 = vsel %vm134, %v260, 0
    %267 = vmatprep.subr.bf16.mxu0 0
    %268 = vmatpush1.bf16.msra.mxu0 %v230
    %269 = vmatprep.subr.bf16.mxu0 0
    %270 = vmatpush1.bf16.msra.mxu0 0
    %271 = vmatprep.subr.bf16.mxu0 0
    %272 = vmatpush1.bf16.msra.mxu0 0
    %273 = vmatprep.subr.bf16.mxu0 0
    %274 = vmatpush1.bf16.msra.mxu0 0
    %275 = vmatprep.subr.bf16.mxu0 0
    %276 = vmatpush1.bf16.msra.mxu0 0
    %277 = vmatprep.subr.bf16.mxu0 0
    %278 = vmatpush1.bf16.msra.mxu0 0
    %279 = vmatprep.subr.bf16.mxu0 0
    %280 = vmatpush1.bf16.msra.mxu0 0
    %281 = vmatprep.subr.bf16.mxu0 0
    %282 = vmatpush1.bf16.msra.mxu0 0
    %283 = vmatprep.subr.bf16.mxu0 0
    %284 = vmatpush1.bf16.msra.mxu0 0
    %285 = vmatprep.subr.bf16.mxu0 0
    %286 = vmatpush1.bf16.msra.mxu0 0
    %287 = vmatprep.subr.bf16.mxu0 0
    %288 = vmatpush1.bf16.msra.mxu0 0
    %289 = vmatprep.subr.bf16.mxu0 0
    %290 = vmatpush1.bf16.msra.mxu0 0
    %291 = vmatprep.subr.bf16.mxu0 0
    %292 = vmatpush1.bf16.msra.mxu0 0
    %293 = vmatprep.subr.bf16.mxu0 0
    %294 = vmatpush1.bf16.msra.mxu0 0
    %295 = vmatprep.subr.bf16.mxu0 0
    %296 = vmatpush1.bf16.msra.mxu0 0
    %297 = vmatprep.subr.bf16.mxu0 0
    %298 = vmatpush1.bf16.msra.mxu0 0
    %299 = vmatprep.mubr.bf16.mxu0 0
    %300 = vmatmul.mubr.bf16.gmra.mrb[0].mxu0 %v262
    %v301 = vpop.f32.mrb[0].mxu0
    %v302 = vadd.f32 %v234, %v301
    %v303 = vpop.f32.mrb[0].mxu0
    %v304 = vpop.f32.mrb[0].mxu0
    %v305 = vadd.f32 %v239, %v304
    %v306 = vpop.f32.mrb[0].mxu0
    %307 = vmatprep.mubr.bf16.mxu0 0
    %308 = vmatmul.mubr.bf16.gmra.mrb[0].mxu0 %v265
    %v309 = vpop.f32.mrb[0].mxu0
    %v310 = vadd.f32 %v244, %v309
    %v311 = vpop.f32.mrb[0].mxu0
    %v312 = vpop.f32.mrb[0].mxu0
    %v313 = vadd.f32 %v249, %v312
    %v314 = vpop.f32.mrb[0].mxu0
    %315 = vdwg.mxu0
    %v316 = vmul.f32 %v302, %v302
    %v317 = vmul.f32 %v305, %v305
    %v318 = vmul.f32 %v310, %v310
    %v319 = vmul.f32 %v313, %v313
    %v320 = vmul.f32 %v302, %v316
    %v321 = vmul.f32 %v305, %v317
    %v322 = vmul.f32 %v310, %v318
    %v323 = vmul.f32 %v313, %v319
    %v324 = vmul.f32 %v320, 0.044715
    %v325 = vmul.f32 %v321, 0.044715
    %v326 = vmul.f32 %v322, 0.044715
    %v327 = vmul.f32 %v323, 0.044715
    %v328 = vadd.f32 %v302, %v324
    %v329 = vadd.f32 %v305, %v325
    %v330 = vadd.f32 %v310, %v326
    %v331 = vadd.f32 %v313, %v327
    %v332 = vmul.f32 %v328, 0.7978846
    %v333 = vmul.f32 %v329, 0.7978846
    %v334 = vmul.f32 %v330, 0.7978846
    %v335 = vmul.f32 %v331, 0.7978846
    %v336 = vtanh.pop %v332
    %v337 = vtanh.pop %v333
    %v338 = vtanh.pop %v334
    %v339 = vtanh.pop %v335
    %v340 = vadd.f32 %v336, 1.0
    %v341 = vadd.f32 %v337, 1.0
    %v342 = vadd.f32 %v338, 1.0
    %v343 = vadd.f32 %v339, 1.0
    %v344 = vmul.f32 %v340, 0.5
    %v345 = vmul.f32 %v341, 0.5
    %v346 = vmul.f32 %v342, 0.5
    %v347 = vmul.f32 %v343, 0.5
    %v348 = vmul.f32 %v302, %v344
    %v349 = vmul.f32 %v305, %v345
    %v350 = vmul.f32 %v310, %v346
    %v351 = vmul.f32 %v313, %v347
    %v352 = vpack.c.bf16 %v349, %v348
    %v353 = vpack.c.bf16 %v351, %v350
    %355 = vset.pattern.permute.xlu0 0
    %356 = vperm.xlu0 %355, %v71
    %v357 = vpop.permute.xlu0 %356
    %360 = vset.pattern.permute.xlu0 0
    %361 = vperm.xlu0 %360, %v72
    %v362 = vpop.permute.xlu0 %361
    %v366 = vunpack.c.l.b16 %v69
    %v367 = vunpack.c.l.b16 %v70
    %v368 = vpack.c.b16 %v367, %v366
    %vm369 = vcmask 261120
    %v371 = vsel %vm369, %v368, 0
    %373 = vmatprep.subr.bf16.mxu0 0
    %374 = vmatpush1.bf16.msra.mxu0 %v352
    %375 = vmatprep.subr.bf16.mxu0 0
    %376 = vmatpush1.bf16.msra.mxu0 %v353
    %377 = vmatprep.subr.bf16.mxu0 0
    %378 = vmatpush1.bf16.msra.mxu0 0
    %379 = vmatprep.subr.bf16.mxu0 0
    %380 = vmatpush1.bf16.msra.mxu0 0
    %381 = vmatprep.subr.bf16.mxu0 0
    %382 = vmatpush1.bf16.msra.mxu0 0
    %383 = vmatprep.subr.bf16.mxu0 0
    %384 = vmatpush1.bf16.msra.mxu0 0
    %385 = vmatprep.subr.bf16.mxu0 0
    %386 = vmatpush1.bf16.msra.mxu0 0
    %387 = vmatprep.subr.bf16.mxu0 0
    %388 = vmatpush1.bf16.msra.mxu0 0
    %389 = vmatprep.subr.bf16.mxu0 0
    %390 = vmatpush1.bf16.msra.mxu0 0
    %391 = vmatprep.subr.bf16.mxu0 0
    %392 = vmatpush1.bf16.msra.mxu0 0
    %393 = vmatprep.subr.bf16.mxu0 0
    %394 = vmatpush1.bf16.msra.mxu0 0
    %395 = vmatprep.subr.bf16.mxu0 0
    %396 = vmatpush1.bf16.msra.mxu0 0
    %397 = vmatprep.subr.bf16.mxu0 0
    %398 = vmatpush1.bf16.msra.mxu0 0
    %399 = vmatprep.subr.bf16.mxu0 0
    %400 = vmatpush1.bf16.msra.mxu0 0
    %401 = vmatprep.subr.bf16.mxu0 0
    %402 = vmatpush1.bf16.msra.mxu0 0
    %403 = vmatprep.subr.bf16.mxu0 0
    %404 = vmatpush1.bf16.msra.mxu0 0
    %405 = vmatprep.mubr.bf16.mxu0 0
    %406 = vmatmul.mubr.bf16.gmra.mrb[0].mxu0 %v371
    %v407 = vpop.f32.mrb[0].mxu0
    %v408 = vadd.f32 %v357, %v407
    %v409 = vpop.f32.mrb[0].mxu0
    %v410 = vpop.f32.mrb[0].mxu0
    %v411 = vadd.f32 %v362, %v410
    %v412 = vpop.f32.mrb[0].mxu0
    %413 = vdwg.mxu0
    %v414 = vadd.f32 %v179, %v408
    %v415 = vadd.f32 %v180, %v411
    %417 = vset.pattern.permute.xlu0 0
    %418 = vperm.xlu0 %417, %v73
    %v419 = vpop.permute.xlu0 %418
    %422 = vset.pattern.permute.xlu0 0
    %423 = vperm.xlu0 %422, %v74
    %v424 = vpop.permute.xlu0 %423
    %v426 = vmul.f32 %v414, %v419
    %v427 = vmul.f32 %v415, %v424
    %v428 = vadd.f32 %v426, %v427
    %v429 = vrot.slane %v428, 4
    %v430 = vadd.f32 %v428, %v429
    %v431 = vrot.slane %v430, 2
    %v432 = vadd.f32 %v430, %v431
    %v433 = vrot.slane %v432, 1
    %v434 = vadd.f32 %v432, %v433
    %436 = vset.pattern.permute.xlu0 0
    %437 = vperm.xlu0 %436, %v75
    %v438 = vpop.permute.xlu0 %437
    %v440 = vlaneseq
    %v441 = vshrl.u32 %v440, 7
    %v442 = vsub.s32 0, %v441
    %v443 = vrot.slane %v438, %v442
    %v444 = vadd.f32 %v434, %v443
    %s445 = scalar_lea.vmem %s0, 8
    %v446 = vld [vmem:[%s445] sm:$0xf]
    %v447 = vld [vmem:[%s445 + $0x4] sm:$0xf]
    %v448 = vunpack.c.l.bf16 %v446
    %v449 = vunpack.c.l.bf16 %v447
    %s450 = scalar_lea.vmem %s1, 8
    %v451 = vld [vmem:[%s450] sm:$0xf]
    %v452 = vld [vmem:[%s450 + $0x4] sm:$0xf]
    %v453 = vunpack.c.l.bf16 %v451
    %v454 = vunpack.c.l.bf16 %v452
    %s455 = scalar_lea.vmem %s2, 16
    %v456 = vld [vmem:[%s455] sm:$0xff]
    %v457 = vld [vmem:[%s455 + $0x8] sm:$0xff]
    %v458 = vmul.f32 %v453, %v89
    %v459 = vmul.f32 %v454, %v94
    %v460 = vadd.f32 %v448, %v458
    %v461 = vadd.f32 %v449, %v459
    %v462 = vmul.f32 %v460, %v460
    %v463 = vmul.f32 %v461, %v461
    %v464 = vmul.f32 %v460, %v462
    %v465 = vmul.f32 %v461, %v463
    %v466 = vmul.f32 %v464, 0.044715
    %v467 = vmul.f32 %v465, 0.044715
    %v468 = vadd.f32 %v460, %v466
    %v469 = vadd.f32 %v461, %v467
    %v470 = vmul.f32 %v468, 0.7978846
    %v471 = vmul.f32 %v469, 0.7978846
    %v472 = vtanh.pop %v470
    %v473 = vtanh.pop %v471
    %v474 = vadd.f32 %v472, 1.0
    %v475 = vadd.f32 %v473, 1.0
    %v476 = vmul.f32 %v474, 0.5
    %v477 = vmul.f32 %v475, 0.5
    %v478 = vmul.f32 %v460, %v476
    %v479 = vmul.f32 %v461, %v477
    %v480 = vpack.c.bf16 %v479, %v478
    %481 = vmatprep.subr.bf16.mxu0 0
    %482 = vmatpush1.bf16.msra.mxu0 %v480
    %483 = vmatprep.subr.bf16.mxu0 0
    %484 = vmatpush1.bf16.msra.mxu0 0
    %485 = vmatprep.subr.bf16.mxu0 0
    %486 = vmatpush1.bf16.msra.mxu0 0
    %487 = vmatprep.subr.bf16.mxu0 0
    %488 = vmatpush1.bf16.msra.mxu0 0
    %489 = vmatprep.subr.bf16.mxu0 0
    %490 = vmatpush1.bf16.msra.mxu0 0
    %491 = vmatprep.subr.bf16.mxu0 0
    %492 = vmatpush1.bf16.msra.mxu0 0
    %493 = vmatprep.subr.bf16.mxu0 0
    %494 = vmatpush1.bf16.msra.mxu0 0
    %495 = vmatprep.subr.bf16.mxu0 0
    %496 = vmatpush1.bf16.msra.mxu0 0
    %497 = vmatprep.subr.bf16.mxu0 0
    %498 = vmatpush1.bf16.msra.mxu0 0
    %499 = vmatprep.subr.bf16.mxu0 0
    %500 = vmatpush1.bf16.msra.mxu0 0
    %501 = vmatprep.subr.bf16.mxu0 0
    %502 = vmatpush1.bf16.msra.mxu0 0
    %503 = vmatprep.subr.bf16.mxu0 0
    %504 = vmatpush1.bf16.msra.mxu0 0
    %505 = vmatprep.subr.bf16.mxu0 0
    %506 = vmatpush1.bf16.msra.mxu0 0
    %507 = vmatprep.subr.bf16.mxu0 0
    %508 = vmatpush1.bf16.msra.mxu0 0
    %509 = vmatprep.subr.bf16.mxu0 0
    %510 = vmatpush1.bf16.msra.mxu0 0
    %511 = vmatprep.subr.bf16.mxu0 0
    %512 = vmatpush1.bf16.msra.mxu0 0
    %513 = vmatprep.mubr.bf16.mxu0 0
    %514 = vmatmul.mubr.bf16.gmra.mrb[0].mxu0 %v136
    %v515 = vpop.f32.mrb[0].mxu0
    %v516 = vadd.f32 %v122, %v515
    %v517 = vpop.f32.mrb[0].mxu0
    %v518 = vpop.f32.mrb[0].mxu0
    %v519 = vadd.f32 %v127, %v518
    %v520 = vpop.f32.mrb[0].mxu0
    %521 = vdwg.mxu0
    %v522 = vadd.f32 %v456, %v516
    %v523 = vadd.f32 %v457, %v519
    %v524 = vadd.f32 %v522, %v523
    %v525 = vrot.slane %v524, 4
    %v526 = vadd.f32 %v524, %v525
    %v527 = vrot.slane %v526, 2
    %v528 = vadd.f32 %v526, %v527
    %v529 = vrot.slane %v528, 1
    %v530 = vadd.f32 %v528, %v529
    %v531 = vmul.f32 %v530, %v188
    %v532 = vsub.f32 %v522, %v531
    %v533 = vsub.f32 %v523, %v531
    %v534 = vmul.f32 %v532, %v532
    %v535 = vmul.f32 %v533, %v533
    %v536 = vadd.f32 %v534, %v535
    %v537 = vrot.slane %v536, 4
    %v538 = vadd.f32 %v536, %v537
    %v539 = vrot.slane %v538, 2
    %v540 = vadd.f32 %v538, %v539
    %v541 = vrot.slane %v540, 1
    %v542 = vadd.f32 %v540, %v541
    %v543 = vmul.f32 %v542, %v188
    %v544 = vadd.f32 %v543, 1e-05
    %v545 = vrsqrt.pop %v544
    %v546 = vmul.f32 %v532, %v545
    %v547 = vmul.f32 %v533, %v545
    %v548 = vmul.f32 %v546, %v209
    %v549 = vmul.f32 %v547, %v214
    %v550 = vadd.f32 %v548, %v221
    %v551 = vadd.f32 %v549, %v226
    %v552 = vpack.c.bf16 %v551, %v550
    %553 = vmatprep.subr.bf16.mxu0 0
    %554 = vmatpush1.bf16.msra.mxu0 %v552
    %555 = vmatprep.subr.bf16.mxu0 0
    %556 = vmatpush1.bf16.msra.mxu0 0
    %557 = vmatprep.subr.bf16.mxu0 0
    %558 = vmatpush1.bf16.msra.mxu0 0
    %559 = vmatprep.subr.bf16.mxu0 0
    %560 = vmatpush1.bf16.msra.mxu0 0
    %561 = vmatprep.subr.bf16.mxu0 0
    %562 = vmatpush1.bf16.msra.mxu0 0
    %563 = vmatprep.subr.bf16.mxu0 0
    %564 = vmatpush1.bf16.msra.mxu0 0
    %565 = vmatprep.subr.bf16.mxu0 0
    %566 = vmatpush1.bf16.msra.mxu0 0
    %567 = vmatprep.subr.bf16.mxu0 0
    %568 = vmatpush1.bf16.msra.mxu0 0
    %569 = vmatprep.subr.bf16.mxu0 0
    %570 = vmatpush1.bf16.msra.mxu0 0
    %571 = vmatprep.subr.bf16.mxu0 0
    %572 = vmatpush1.bf16.msra.mxu0 0
    %573 = vmatprep.subr.bf16.mxu0 0
    %574 = vmatpush1.bf16.msra.mxu0 0
    %575 = vmatprep.subr.bf16.mxu0 0
    %576 = vmatpush1.bf16.msra.mxu0 0
    %577 = vmatprep.subr.bf16.mxu0 0
    %578 = vmatpush1.bf16.msra.mxu0 0
    %579 = vmatprep.subr.bf16.mxu0 0
    %580 = vmatpush1.bf16.msra.mxu0 0
    %581 = vmatprep.subr.bf16.mxu0 0
    %582 = vmatpush1.bf16.msra.mxu0 0
    %583 = vmatprep.subr.bf16.mxu0 0
    %584 = vmatpush1.bf16.msra.mxu0 0
    %585 = vmatprep.mubr.bf16.mxu0 0
    %586 = vmatmul.mubr.bf16.gmra.mrb[0].mxu0 %v262
    %v587 = vpop.f32.mrb[0].mxu0
    %v588 = vadd.f32 %v234, %v587
    %v589 = vpop.f32.mrb[0].mxu0
    %v590 = vpop.f32.mrb[0].mxu0
    %v591 = vadd.f32 %v239, %v590
    %v592 = vpop.f32.mrb[0].mxu0
    %593 = vmatprep.mubr.bf16.mxu0 0
    %594 = vmatmul.mubr.bf16.gmra.mrb[0].mxu0 %v265
    %v595 = vpop.f32.mrb[0].mxu0
    %v596 = vadd.f32 %v244, %v595
    %v597 = vpop.f32.mrb[0].mxu0
    %v598 = vpop.f32.mrb[0].mxu0
    %v599 = vadd.f32 %v249, %v598
    %v600 = vpop.f32.mrb[0].mxu0
    %601 = vdwg.mxu0
    %v602 = vmul.f32 %v588, %v588
    %v603 = vmul.f32 %v591, %v591
    %v604 = vmul.f32 %v596, %v596
    %v605 = vmul.f32 %v599, %v599
    %v606 = vmul.f32 %v588, %v602
    %v607 = vmul.f32 %v591, %v603
    %v608 = vmul.f32 %v596, %v604
    %v609 = vmul.f32 %v599, %v605
    %v610 = vmul.f32 %v606, 0.044715
    %v611 = vmul.f32 %v607, 0.044715
    %v612 = vmul.f32 %v608, 0.044715
    %v613 = vmul.f32 %v609, 0.044715
    %v614 = vadd.f32 %v588, %v610
    %v615 = vadd.f32 %v591, %v611
    %v616 = vadd.f32 %v596, %v612
    %v617 = vadd.f32 %v599, %v613
    %v618 = vmul.f32 %v614, 0.7978846
    %v619 = vmul.f32 %v615, 0.7978846
    %v620 = vmul.f32 %v616, 0.7978846
    %v621 = vmul.f32 %v617, 0.7978846
    %v622 = vtanh.pop %v618
    %v623 = vtanh.pop %v619
    %v624 = vtanh.pop %v620
    %v625 = vtanh.pop %v621
    %v626 = vadd.f32 %v622, 1.0
    %v627 = vadd.f32 %v623, 1.0
    %v628 = vadd.f32 %v624, 1.0
    %v629 = vadd.f32 %v625, 1.0
    %v630 = vmul.f32 %v626, 0.5
    %v631 = vmul.f32 %v627, 0.5
    %v632 = vmul.f32 %v628, 0.5
    %v633 = vmul.f32 %v629, 0.5
    %v634 = vmul.f32 %v588, %v630
    %v635 = vmul.f32 %v591, %v631
    %v636 = vmul.f32 %v596, %v632
    %v637 = vmul.f32 %v599, %v633
    %v638 = vpack.c.bf16 %v635, %v634
    %v639 = vpack.c.bf16 %v637, %v636
    %640 = vmatprep.subr.bf16.mxu0 0
    %641 = vmatpush1.bf16.msra.mxu0 %v638
    %642 = vmatprep.subr.bf16.mxu0 0
    %643 = vmatpush1.bf16.msra.mxu0 %v639
    %644 = vmatprep.subr.bf16.mxu0 0
    %645 = vmatpush1.bf16.msra.mxu0 0
    %646 = vmatprep.subr.bf16.mxu0 0
    %647 = vmatpush1.bf16.msra.mxu0 0
    %648 = vmatprep.subr.bf16.mxu0 0
    %649 = vmatpush1.bf16.msra.mxu0 0
    %650 = vmatprep.subr.bf16.mxu0 0
    %651 = vmatpush1.bf16.msra.mxu0 0
    %652 = vmatprep.subr.bf16.mxu0 0
    %653 = vmatpush1.bf16.msra.mxu0 0
    %654 = vmatprep.subr.bf16.mxu0 0
    %655 = vmatpush1.bf16.msra.mxu0 0
    %656 = vmatprep.subr.bf16.mxu0 0
    %657 = vmatpush1.bf16.msra.mxu0 0
    %658 = vmatprep.subr.bf16.mxu0 0
    %659 = vmatpush1.bf16.msra.mxu0 0
    %660 = vmatprep.subr.bf16.mxu0 0
    %661 = vmatpush1.bf16.msra.mxu0 0
    %662 = vmatprep.subr.bf16.mxu0 0
    %663 = vmatpush1.bf16.msra.mxu0 0
    %664 = vmatprep.subr.bf16.mxu0 0
    %665 = vmatpush1.bf16.msra.mxu0 0
    %666 = vmatprep.subr.bf16.mxu0 0
    %667 = vmatpush1.bf16.msra.mxu0 0
    %668 = vmatprep.subr.bf16.mxu0 0
    %669 = vmatpush1.bf16.msra.mxu0 0
    %670 = vmatprep.subr.bf16.mxu0 0
    %671 = vmatpush1.bf16.msra.mxu0 0
    %672 = vmatprep.mubr.bf16.mxu0 0
    %673 = vmatmul.mubr.bf16.gmra.mrb[0].mxu0 %v371
    %v674 = vpop.f32.mrb[0].mxu0
    %v675 = vadd.f32 %v357, %v674
    %v676 = vpop.f32.mrb[0].mxu0
    %v677 = vpop.f32.mrb[0].mxu0
    %v678 = vadd.f32 %v362, %v677
    %v679 = vpop.f32.mrb[0].mxu0
    %680 = vdwg.mxu0
    %v681 = vadd.f32 %v522, %v675
    %v682 = vadd.f32 %v523, %v678
    %v683 = vmul.f32 %v681, %v419
    %v684 = vmul.f32 %v682, %v424
    %v685 = vadd.f32 %v683, %v684
    %v686 = vrot.slane %v685, 4
    %v687 = vadd.f32 %v685, %v686
    %v688 = vrot.slane %v687, 2
    %v689 = vadd.f32 %v687, %v688
    %v690 = vrot.slane %v689, 1
    %v691 = vadd.f32 %v689, %v690
    %v692 = vadd.f32 %v691, %v443
    %vm693 = vcmask 1040384
    %v694 = vsel %vm693, %v444, %v692
    %695 = vst [vmem:[#allocation3] sm:$0x3] %v694
    // Predicated region
    $region58: #{s4decoder_forward.9} parent=1 // pred_check
      _
    $region59: #{s4decoder_forward.9} parent=1 // pred_check_branch
      %697 = sbr.rel (0) target = $region61
    $region60: #{s4decoder_forward.9} parent=1 // pred_region
      %s699 = ssub.s32 32, 32
      %700 = vsyncadd [#allocation4], %s699
      %s702 = sshll.u32 [#allocation3], 4
      %s703 = int_to_ptr.vmem [resolvable:$true] %s702
      %705 = dma.vmem_to_hbm [thread:$0]  %s703, 32, %s14, [#allocation4]
    $region61: #{s4decoder_forward.9} parent=1 // pred_fallthru
      _
    // Predicated region
    $region62: #{s4decoder_forward.9} parent=1 // pred_check
      _
    $region63: #{s4decoder_forward.9} parent=1 // pred_check_branch
      %707 = sbr.rel (0) target = $region65
    $region64: #{s4decoder_forward.9} parent=1 // pred_region
      %708 = dma.done [#allocation4], 32
    $region65: #{s4decoder_forward.9} parent=1 // pred_fallthru
      _
    %709 = vsyncpa [#allocation4], 1

</llo_original>
